<compile_context>
chip_gen: v5e
topology: v5e:2x2
jax: 0.10.0
libtpu: 0.0.40
codegen_flags: <defaults>
</compile_context>

<pallas_src>
import functools

import jax
import jax.numpy as jnp
from jax.experimental import pallas as pl
from jax.experimental.pallas import tpu as pltpu


def _silu(t):
    # t * sigmoid(t), written with plain exp so it lowers to VPU + EUP.
    return t * (1.0 / (1.0 + jnp.exp(-t)))


def _maxpool_same(x, k):
    """Max pool (window k, stride 1, 'same' -inf padding) on (h, w, c), separable."""
    h, w, c = x.shape
    p = k // 2
    ninf = float("-inf")
    # H direction: leading (untiled) dim -> cheap concat + slices.
    pad_h = jnp.full((p, w, c), ninf, x.dtype)
    xh = jnp.concatenate([pad_h, x, pad_h], axis=0)          # (h + 2p, w, c)
    m = xh[0:h]
    for d in range(1, k):
        m = jnp.maximum(m, xh[d:d + h])
    # W direction: sublane dim.
    pad_w = jnp.full((h, p, c), ninf, x.dtype)
    xw = jnp.concatenate([pad_w, m, pad_w], axis=1)          # (h, w + 2p, c)
    out = xw[:, 0:w]
    for d in range(1, k):
        out = jnp.maximum(out, xw[:, d:d + w])
    return out


def _sppf_kernel(x_ref, w1_ref, b1_ref, w2_ref, b2_ref, o_ref, *, k):
    # x_ref:  (h, w, c1)      w1_ref: (c1, c_)     b1_ref: (1, c_)
    # w2_ref: (4c_, c2)       b2_ref: (1, c2)      o_ref:  (h, w, c2)
    h, w, c1 = x_ref.shape
    hw = h * w
    c_ = w1_ref.shape[1]
    c2 = o_ref.shape[-1]

    # cv1: 1x1 conv (+folded BN) + SiLU == channel matmul on the MXU.
    x2d = x_ref[...].reshape(hw, c1)
    t = jnp.dot(x2d, w1_ref[...], preferred_element_type=jnp.float32)
    t = t + b1_ref[...]                                      # (1, c_) broadcast
    x1 = _silu(t).astype(x_ref.dtype)                        # (hw, c_)

    # SPP max-pool pyramid: three chained k x k, stride-1, same-padded pools.
    x1_3d = x1.reshape(h, w, c_)
    y1 = _maxpool_same(x1_3d, k)
    y2 = _maxpool_same(y1, k)
    y3 = _maxpool_same(y2, k)

    # cv2 on concat([x1, y1, y2, y3]) expressed as a block-sum of 4 matmuls.
    w2 = w2_ref[...]
    acc = jnp.dot(x1, w2[0 * c_:1 * c_, :], preferred_element_type=jnp.float32)
    acc = acc + jnp.dot(y1.reshape(hw, c_), w2[1 * c_:2 * c_, :],
                        preferred_element_type=jnp.float32)
    acc = acc + jnp.dot(y2.reshape(hw, c_), w2[2 * c_:3 * c_, :],
                        preferred_element_type=jnp.float32)
    acc = acc + jnp.dot(y3.reshape(hw, c_), w2[3 * c_:4 * c_, :],
                        preferred_element_type=jnp.float32)
    acc = acc + b2_ref[...]                                  # (1, c2) broadcast
    o_ref[...] = _silu(acc).astype(o_ref.dtype).reshape(h, w, c2)


def fuse_conv_bn(conv_w, gamma, beta, mean, var, eps=1e-5):
    """Fold eval-mode BatchNorm into a bias-free 1x1 conv: (cout,cin,1,1) -> (cout,cin), (cout,)."""
    scale = gamma / jnp.sqrt(var + eps)
    w = conv_w[:, :, 0, 0] * scale[:, None]
    b = beta - mean * scale
    return w, b


def sppf_forward(x, params, k=5):
    """x: (b, c1, h, w) NCHW (PyTorch layout). Returns (b, c2, h, w)."""
    b, c1, h, w = x.shape
    w1, b1 = fuse_conv_bn(params["cv1_w"], params["bn1_g"], params["bn1_b"],
                          params["bn1_m"], params["bn1_v"])
    w2, b2 = fuse_conv_bn(params["cv2_w"], params["bn2_g"], params["bn2_b"],
                          params["bn2_m"], params["bn2_v"])
    c_ = w1.shape[0]
    c2 = w2.shape[0]

    # Channels-last inside the kernel: lane-dense matmuls and output stores.
    x_hwc = jnp.transpose(x, (0, 2, 3, 1))                   # (b, h, w, c1)
    w1_k = jnp.transpose(w1, (1, 0)).astype(x.dtype)         # (c1, c_)
    w2_k = jnp.transpose(w2, (1, 0)).astype(x.dtype)         # (4c_, c2)
    b1_k = b1.reshape(1, c_).astype(jnp.float32)
    b2_k = b2.reshape(1, c2).astype(jnp.float32)

    kernel = functools.partial(_sppf_kernel, k=k)
    out_hwc = pl.pallas_call(
        kernel,
        out_shape=jax.ShapeDtypeStruct((b, h, w, c2), x.dtype),
        grid_spec=pltpu.PrefetchScalarGridSpec(
            num_scalar_prefetch=0,
            grid=(b,),
            in_specs=[
                pl.BlockSpec((None, h, w, c1), lambda bi: (bi, 0, 0, 0)),
                pl.BlockSpec((c1, c_), lambda bi: (0, 0)),
                pl.BlockSpec((1, c_), lambda bi: (0, 0)),
                pl.BlockSpec((4 * c_, c2), lambda bi: (0, 0)),
                pl.BlockSpec((1, c2), lambda bi: (0, 0)),
            ],
            out_specs=pl.BlockSpec((None, h, w, c2), lambda bi: (bi, 0, 0, 0)),
        ),
        compiler_params=pltpu.CompilerParams(
            dimension_semantics=("parallel",),
        ),
    )(x_hwc, w1_k, b1_k, w2_k, b2_k)
    return jnp.transpose(out_hwc, (0, 3, 1, 2))              # back to NCHW


def sppf_ref(x, params, k=5, eps=1e-5):
    """Pure-JAX reference matching the PyTorch SPPF forward (eval-mode BN)."""
    def conv_bn_silu(x, w, g, b, m, v):
        y = jnp.einsum("oi,bihw->bohw", w[:, :, 0, 0], x)
        y = (y - m[None, :, None, None]) / jnp.sqrt(v + eps)[None, :, None, None]
        y = y * g[None, :, None, None] + b[None, :, None, None]
        return y * jax.nn.sigmoid(y)

    def maxpool(z):
        p = k // 2
        return jax.lax.reduce_window(
            z, -jnp.inf, jax.lax.max,
            window_dimensions=(1, 1, k, k),
            window_strides=(1, 1, 1, 1),
            padding=((0, 0), (0, 0), (p, p), (p, p)))

    x1 = conv_bn_silu(x, params["cv1_w"], params["bn1_g"], params["bn1_b"],
                      params["bn1_m"], params["bn1_v"])
    y1 = maxpool(x1)
    y2 = maxpool(y1)
    y3 = maxpool(y2)
    cat = jnp.concatenate([x1, y1, y2, y3], axis=1)
    return conv_bn_silu(cat, params["cv2_w"], params["bn2_g"], params["bn2_b"],
                        params["bn2_m"], params["bn2_v"])


if __name__ == "__main__":
    key = jax.random.PRNGKey(0)
    b, c1, c2, h, w, k = 2, 16, 16, 16, 16, 5
    c_ = c1 // 2
    keys = jax.random.split(key, 11)

    x = jax.random.normal(keys[0], (b, c1, h, w), dtype=jnp.float32)
    params = dict(
        cv1_w=0.3 * jax.random.normal(keys[1], (c_, c1, 1, 1), jnp.float32),
        bn1_g=1.0 + 0.1 * jax.random.normal(keys[2], (c_,), jnp.float32),
        bn1_b=0.1 * jax.random.normal(keys[3], (c_,), jnp.float32),
        bn1_m=0.1 * jax.random.normal(keys[4], (c_,), jnp.float32),
        bn1_v=jnp.abs(1.0 + 0.1 * jax.random.normal(keys[5], (c_,), jnp.float32)),
        cv2_w=0.2 * jax.random.normal(keys[6], (c2, 4 * c_, 1, 1), jnp.float32),
        bn2_g=1.0 + 0.1 * jax.random.normal(keys[7], (c2,), jnp.float32),
        bn2_b=0.1 * jax.random.normal(keys[8], (c2,), jnp.float32),
        bn2_m=0.1 * jax.random.normal(keys[9], (c2,), jnp.float32),
        bn2_v=jnp.abs(1.0 + 0.1 * jax.random.normal(keys[10], (c2,), jnp.float32)),
    )

    y = sppf_forward(x, params, k=k)
    jax.block_until_ready(y)

    y_ref = sppf_ref(x, params, k=k)
    assert y.shape == (b, c2, h, w), y.shape
    assert y.dtype == x.dtype
    assert jnp.allclose(y, y_ref, atol=1e-4, rtol=1e-4), \
        float(jnp.max(jnp.abs(y - y_ref)))
    print("KERNEL_OK")
</pallas_src>

<mosaic_0001>
module attributes {stable_mosaic.version = 11 : i64} {
  func.func @_sppf_kernel(%arg0: i32, %arg1: memref<1x16x16x16xf32, #tpu.memory_space<vmem>>, %arg2: memref<16x8xf32, #tpu.memory_space<vmem>>, %arg3: memref<1x8xf32, #tpu.memory_space<vmem>>, %arg4: memref<32x16xf32, #tpu.memory_space<vmem>>, %arg5: memref<1x16xf32, #tpu.memory_space<vmem>>, %arg6: memref<1x16x16x16xf32, #tpu.memory_space<vmem>>) attributes {dimension_semantics = [#tpu.dimension_semantics<parallel>], iteration_bounds = array<i64: 2>, scalar_prefetch = 0 : i64, scratch_operands = 0 : i64, tpu.core_type = #tpu.core_type<tc>, window_params = [{transform_indices = @transform_0, window_bounds = array<i64: 1, 16, 16, 16>}, {pipeline_mode = #tpu.pipeline_mode<synchronous>, transform_indices = @transform_1, window_bounds = array<i64: 16, 8>}, {pipeline_mode = #tpu.pipeline_mode<synchronous>, transform_indices = @transform_2, window_bounds = array<i64: 1, 8>}, {pipeline_mode = #tpu.pipeline_mode<synchronous>, transform_indices = @transform_3, window_bounds = array<i64: 32, 16>}, {pipeline_mode = #tpu.pipeline_mode<synchronous>, transform_indices = @transform_4, window_bounds = array<i64: 1, 16>}, {transform_indices = @transform_5, window_bounds = array<i64: 1, 16, 16, 16>}]} {
    %c0 = arith.constant 0 : index
    %c0_0 = arith.constant 0 : index
    %c0_1 = arith.constant 0 : index
    %c0_2 = arith.constant 0 : index
    %0 = vector.load %arg1[%c0, %c0_0, %c0_1, %c0_2] : memref<1x16x16x16xf32, #tpu.memory_space<vmem>>, vector<1x16x16x16xf32>
    %1 = vector.shape_cast %0 : vector<1x16x16x16xf32> to vector<16x16x16xf32>
    %2 = vector.shape_cast %1 : vector<16x16x16xf32> to vector<256x16xf32>
    %c0_3 = arith.constant 0 : index
    %c0_4 = arith.constant 0 : index
    %3 = vector.load %arg2[%c0_3, %c0_4] : memref<16x8xf32, #tpu.memory_space<vmem>>, vector<16x8xf32>
    %cst = arith.constant dense<0.000000e+00> : vector<256x8xf32>
    %4 = tpu.matmul %2, %3, %cst {dimension_numbers = #tpu.dot_dimension_numbers<[1], [0], [0], [1], [0, 0, 1, 1], [], []>} : vector<256x16xf32>, vector<16x8xf32>, vector<256x8xf32> -> vector<256x8xf32>
    %c0_5 = arith.constant 0 : index
    %c0_6 = arith.constant 0 : index
    %5 = vector.load %arg3[%c0_5, %c0_6] : memref<1x8xf32, #tpu.memory_space<vmem>>, vector<1x8xf32>
    %6 = vector.broadcast %5 : vector<1x8xf32> to vector<256x8xf32>
    %7 = arith.addf %4, %6 : vector<256x8xf32>
    %cst_7 = arith.constant 0.000000e+00 : f32
    %8 = vector.broadcast %cst_7 : f32 to vector<256x8xf32>
    %9 = arith.subf %8, %7 : vector<256x8xf32>
    %10 = math.exp %9 : vector<256x8xf32>
    %cst_8 = arith.constant 1.000000e+00 : f32
    %11 = vector.broadcast %cst_8 : f32 to vector<256x8xf32>
    %12 = arith.addf %11, %10 : vector<256x8xf32>
    %cst_9 = arith.constant 1.000000e+00 : f32
    %13 = vector.broadcast %cst_9 : f32 to vector<256x8xf32>
    %14 = arith.divf %13, %12 : vector<256x8xf32>
    %15 = arith.mulf %7, %14 : vector<256x8xf32>
    %16 = vector.shape_cast %15 : vector<256x8xf32> to vector<16x16x8xf32>
    %cst_10 = arith.constant 0xFF800000 : f32
    %17 = vector.broadcast %cst_10 : f32 to vector<2x16x8xf32>
    %18 = tpu.concatenate %17, %16, %17 in 0 : vector<2x16x8xf32>, vector<16x16x8xf32>, vector<2x16x8xf32> -> vector<20x16x8xf32>
    %19 = vector.extract_strided_slice %18 {offsets = [0, 0, 0], sizes = [16, 16, 8], strides = [1, 1, 1]} : vector<20x16x8xf32> to vector<16x16x8xf32>
    %20 = vector.extract_strided_slice %18 {offsets = [1, 0, 0], sizes = [16, 16, 8], strides = [1, 1, 1]} : vector<20x16x8xf32> to vector<16x16x8xf32>
    %21 = arith.maximumf %19, %20 : vector<16x16x8xf32>
    %22 = vector.extract_strided_slice %18 {offsets = [2, 0, 0], sizes = [16, 16, 8], strides = [1, 1, 1]} : vector<20x16x8xf32> to vector<16x16x8xf32>
    %23 = arith.maximumf %21, %22 : vector<16x16x8xf32>
    %24 = vector.extract_strided_slice %18 {offsets = [3, 0, 0], sizes = [16, 16, 8], strides = [1, 1, 1]} : vector<20x16x8xf32> to vector<16x16x8xf32>
    %25 = arith.maximumf %23, %24 : vector<16x16x8xf32>
    %26 = vector.extract_strided_slice %18 {offsets = [4, 0, 0], sizes = [16, 16, 8], strides = [1, 1, 1]} : vector<20x16x8xf32> to vector<16x16x8xf32>
    %27 = arith.maximumf %25, %26 : vector<16x16x8xf32>
    %cst_11 = arith.constant 0xFF800000 : f32
    %28 = vector.broadcast %cst_11 : f32 to vector<16x2x8xf32>
    %29 = tpu.concatenate %28, %27, %28 in 1 : vector<16x2x8xf32>, vector<16x16x8xf32>, vector<16x2x8xf32> -> vector<16x20x8xf32>
    %30 = vector.extract_strided_slice %29 {offsets = [0, 0, 0], sizes = [16, 16, 8], strides = [1, 1, 1]} : vector<16x20x8xf32> to vector<16x16x8xf32>
    %31 = vector.extract_strided_slice %29 {offsets = [0, 1, 0], sizes = [16, 16, 8], strides = [1, 1, 1]} : vector<16x20x8xf32> to vector<16x16x8xf32>
    %32 = arith.maximumf %30, %31 : vector<16x16x8xf32>
    %33 = vector.extract_strided_slice %29 {offsets = [0, 2, 0], sizes = [16, 16, 8], strides = [1, 1, 1]} : vector<16x20x8xf32> to vector<16x16x8xf32>
    %34 = arith.maximumf %32, %33 : vector<16x16x8xf32>
    %35 = vector.extract_strided_slice %29 {offsets = [0, 3, 0], sizes = [16, 16, 8], strides = [1, 1, 1]} : vector<16x20x8xf32> to vector<16x16x8xf32>
    %36 = arith.maximumf %34, %35 : vector<16x16x8xf32>
    %37 = vector.extract_strided_slice %29 {offsets = [0, 4, 0], sizes = [16, 16, 8], strides = [1, 1, 1]} : vector<16x20x8xf32> to vector<16x16x8xf32>
    %38 = arith.maximumf %36, %37 : vector<16x16x8xf32>
    %cst_12 = arith.constant 0xFF800000 : f32
    %39 = vector.broadcast %cst_12 : f32 to vector<2x16x8xf32>
    %40 = tpu.concatenate %39, %38, %39 in 0 : vector<2x16x8xf32>, vector<16x16x8xf32>, vector<2x16x8xf32> -> vector<20x16x8xf32>
    %41 = vector.extract_strided_slice %40 {offsets = [0, 0, 0], sizes = [16, 16, 8], strides = [1, 1, 1]} : vector<20x16x8xf32> to vector<16x16x8xf32>
    %42 = vector.extract_strided_slice %40 {offsets = [1, 0, 0], sizes = [16, 16, 8], strides = [1, 1, 1]} : vector<20x16x8xf32> to vector<16x16x8xf32>
    %43 = arith.maximumf %41, %42 : vector<16x16x8xf32>
    %44 = vector.extract_strided_slice %40 {offsets = [2, 0, 0], sizes = [16, 16, 8], strides = [1, 1, 1]} : vector<20x16x8xf32> to vector<16x16x8xf32>
    %45 = arith.maximumf %43, %44 : vector<16x16x8xf32>
    %46 = vector.extract_strided_slice %40 {offsets = [3, 0, 0], sizes = [16, 16, 8], strides = [1, 1, 1]} : vector<20x16x8xf32> to vector<16x16x8xf32>
    %47 = arith.maximumf %45, %46 : vector<16x16x8xf32>
    %48 = vector.extract_strided_slice %40 {offsets = [4, 0, 0], sizes = [16, 16, 8], strides = [1, 1, 1]} : vector<20x16x8xf32> to vector<16x16x8xf32>
    %49 = arith.maximumf %47, %48 : vector<16x16x8xf32>
    %cst_13 = arith.constant 0xFF800000 : f32
    %50 = vector.broadcast %cst_13 : f32 to vector<16x2x8xf32>
    %51 = tpu.concatenate %50, %49, %50 in 1 : vector<16x2x8xf32>, vector<16x16x8xf32>, vector<16x2x8xf32> -> vector<16x20x8xf32>
    %52 = vector.extract_strided_slice %51 {offsets = [0, 0, 0], sizes = [16, 16, 8], strides = [1, 1, 1]} : vector<16x20x8xf32> to vector<16x16x8xf32>
    %53 = vector.extract_strided_slice %51 {offsets = [0, 1, 0], sizes = [16, 16, 8], strides = [1, 1, 1]} : vector<16x20x8xf32> to vector<16x16x8xf32>
    %54 = arith.maximumf %52, %53 : vector<16x16x8xf32>
    %55 = vector.extract_strided_slice %51 {offsets = [0, 2, 0], sizes = [16, 16, 8], strides = [1, 1, 1]} : vector<16x20x8xf32> to vector<16x16x8xf32>
    %56 = arith.maximumf %54, %55 : vector<16x16x8xf32>
    %57 = vector.extract_strided_slice %51 {offsets = [0, 3, 0], sizes = [16, 16, 8], strides = [1, 1, 1]} : vector<16x20x8xf32> to vector<16x16x8xf32>
    %58 = arith.maximumf %56, %57 : vector<16x16x8xf32>
    %59 = vector.extract_strided_slice %51 {offsets = [0, 4, 0], sizes = [16, 16, 8], strides = [1, 1, 1]} : vector<16x20x8xf32> to vector<16x16x8xf32>
    %60 = arith.maximumf %58, %59 : vector<16x16x8xf32>
    %cst_14 = arith.constant 0xFF800000 : f32
    %61 = vector.broadcast %cst_14 : f32 to vector<2x16x8xf32>
    %62 = tpu.concatenate %61, %60, %61 in 0 : vector<2x16x8xf32>, vector<16x16x8xf32>, vector<2x16x8xf32> -> vector<20x16x8xf32>
    %63 = vector.extract_strided_slice %62 {offsets = [0, 0, 0], sizes = [16, 16, 8], strides = [1, 1, 1]} : vector<20x16x8xf32> to vector<16x16x8xf32>
    %64 = vector.extract_strided_slice %62 {offsets = [1, 0, 0], sizes = [16, 16, 8], strides = [1, 1, 1]} : vector<20x16x8xf32> to vector<16x16x8xf32>
    %65 = arith.maximumf %63, %64 : vector<16x16x8xf32>
    %66 = vector.extract_strided_slice %62 {offsets = [2, 0, 0], sizes = [16, 16, 8], strides = [1, 1, 1]} : vector<20x16x8xf32> to vector<16x16x8xf32>
    %67 = arith.maximumf %65, %66 : vector<16x16x8xf32>
    %68 = vector.extract_strided_slice %62 {offsets = [3, 0, 0], sizes = [16, 16, 8], strides = [1, 1, 1]} : vector<20x16x8xf32> to vector<16x16x8xf32>
    %69 = arith.maximumf %67, %68 : vector<16x16x8xf32>
    %70 = vector.extract_strided_slice %62 {offsets = [4, 0, 0], sizes = [16, 16, 8], strides = [1, 1, 1]} : vector<20x16x8xf32> to vector<16x16x8xf32>
    %71 = arith.maximumf %69, %70 : vector<16x16x8xf32>
    %cst_15 = arith.constant 0xFF800000 : f32
    %72 = vector.broadcast %cst_15 : f32 to vector<16x2x8xf32>
    %73 = tpu.concatenate %72, %71, %72 in 1 : vector<16x2x8xf32>, vector<16x16x8xf32>, vector<16x2x8xf32> -> vector<16x20x8xf32>
    %74 = vector.extract_strided_slice %73 {offsets = [0, 0, 0], sizes = [16, 16, 8], strides = [1, 1, 1]} : vector<16x20x8xf32> to vector<16x16x8xf32>
    %75 = vector.extract_strided_slice %73 {offsets = [0, 1, 0], sizes = [16, 16, 8], strides = [1, 1, 1]} : vector<16x20x8xf32> to vector<16x16x8xf32>
    %76 = arith.maximumf %74, %75 : vector<16x16x8xf32>
    %77 = vector.extract_strided_slice %73 {offsets = [0, 2, 0], sizes = [16, 16, 8], strides = [1, 1, 1]} : vector<16x20x8xf32> to vector<16x16x8xf32>
    %78 = arith.maximumf %76, %77 : vector<16x16x8xf32>
    %79 = vector.extract_strided_slice %73 {offsets = [0, 3, 0], sizes = [16, 16, 8], strides = [1, 1, 1]} : vector<16x20x8xf32> to vector<16x16x8xf32>
    %80 = arith.maximumf %78, %79 : vector<16x16x8xf32>
    %81 = vector.extract_strided_slice %73 {offsets = [0, 4, 0], sizes = [16, 16, 8], strides = [1, 1, 1]} : vector<16x20x8xf32> to vector<16x16x8xf32>
    %82 = arith.maximumf %80, %81 : vector<16x16x8xf32>
    %c0_16 = arith.constant 0 : index
    %c0_17 = arith.constant 0 : index
    %83 = vector.load %arg4[%c0_16, %c0_17] : memref<32x16xf32, #tpu.memory_space<vmem>>, vector<32x16xf32>
    %84 = vector.extract_strided_slice %83 {offsets = [0, 0], sizes = [8, 16], strides = [1, 1]} : vector<32x16xf32> to vector<8x16xf32>
    %cst_18 = arith.constant dense<0.000000e+00> : vector<256x16xf32>
    %85 = tpu.matmul %15, %84, %cst_18 {dimension_numbers = #tpu.dot_dimension_numbers<[1], [0], [0], [1], [0, 0, 1, 1], [], []>} : vector<256x8xf32>, vector<8x16xf32>, vector<256x16xf32> -> vector<256x16xf32>
    %86 = vector.shape_cast %38 : vector<16x16x8xf32> to vector<256x8xf32>
    %87 = vector.extract_strided_slice %83 {offsets = [8, 0], sizes = [8, 16], strides = [1, 1]} : vector<32x16xf32> to vector<8x16xf32>
    %cst_19 = arith.constant dense<0.000000e+00> : vector<256x16xf32>
    %88 = tpu.matmul %86, %87, %cst_19 {dimension_numbers = #tpu.dot_dimension_numbers<[1], [0], [0], [1], [0, 0, 1, 1], [], []>} : vector<256x8xf32>, vector<8x16xf32>, vector<256x16xf32> -> vector<256x16xf32>
    %89 = arith.addf %85, %88 : vector<256x16xf32>
    %90 = vector.shape_cast %60 : vector<16x16x8xf32> to vector<256x8xf32>
    %91 = vector.extract_strided_slice %83 {offsets = [16, 0], sizes = [8, 16], strides = [1, 1]} : vector<32x16xf32> to vector<8x16xf32>
    %cst_20 = arith.constant dense<0.000000e+00> : vector<256x16xf32>
    %92 = tpu.matmul %90, %91, %cst_20 {dimension_numbers = #tpu.dot_dimension_numbers<[1], [0], [0], [1], [0, 0, 1, 1], [], []>} : vector<256x8xf32>, vector<8x16xf32>, vector<256x16xf32> -> vector<256x16xf32>
    %93 = arith.addf %89, %92 : vector<256x16xf32>
    %94 = vector.shape_cast %82 : vector<16x16x8xf32> to vector<256x8xf32>
    %95 = vector.extract_strided_slice %83 {offsets = [24, 0], sizes = [8, 16], strides = [1, 1]} : vector<32x16xf32> to vector<8x16xf32>
    %cst_21 = arith.constant dense<0.000000e+00> : vector<256x16xf32>
    %96 = tpu.matmul %94, %95, %cst_21 {dimension_numbers = #tpu.dot_dimension_numbers<[1], [0], [0], [1], [0, 0, 1, 1], [], []>} : vector<256x8xf32>, vector<8x16xf32>, vector<256x16xf32> -> vector<256x16xf32>
    %97 = arith.addf %93, %96 : vector<256x16xf32>
    %c0_22 = arith.constant 0 : index
    %c0_23 = arith.constant 0 : index
    %98 = vector.load %arg5[%c0_22, %c0_23] : memref<1x16xf32, #tpu.memory_space<vmem>>, vector<1x16xf32>
    %99 = vector.broadcast %98 : vector<1x16xf32> to vector<256x16xf32>
    %100 = arith.addf %97, %99 : vector<256x16xf32>
    %cst_24 = arith.constant 0.000000e+00 : f32
    %101 = vector.broadcast %cst_24 : f32 to vector<256x16xf32>
    %102 = arith.subf %101, %100 : vector<256x16xf32>
    %103 = math.exp %102 : vector<256x16xf32>
    %cst_25 = arith.constant 1.000000e+00 : f32
    %104 = vector.broadcast %cst_25 : f32 to vector<256x16xf32>
    %105 = arith.addf %104, %103 : vector<256x16xf32>
    %cst_26 = arith.constant 1.000000e+00 : f32
    %106 = vector.broadcast %cst_26 : f32 to vector<256x16xf32>
    %107 = arith.divf %106, %105 : vector<256x16xf32>
    %108 = arith.mulf %100, %107 : vector<256x16xf32>
    %109 = vector.shape_cast %108 : vector<256x16xf32> to vector<16x16x16xf32>
    %c0_27 = arith.constant 0 : index
    %c0_28 = arith.constant 0 : index
    %c0_29 = arith.constant 0 : index
    %c0_30 = arith.constant 0 : index
    %110 = vector.load %arg6[%c0_27, %c0_28, %c0_29, %c0_30] : memref<1x16x16x16xf32, #tpu.memory_space<vmem>>, vector<1x16x16x16xf32>
    %111 = vector.shape_cast %110 : vector<1x16x16x16xf32> to vector<16x16x16xf32>
    %112 = vector.shape_cast %109 : vector<16x16x16xf32> to vector<1x16x16x16xf32>
    tpu.vector_store %arg6[%c0_27, %c0_28, %c0_29, %c0_30], %112 {strides = array<i32>} : memref<1x16x16x16xf32, #tpu.memory_space<vmem>>, vector<1x16x16x16xf32>,
    return
  }
  func.func @transform_0(%arg0: i32) -> (i32, i32, i32, i32) {
    %c0_i32 = arith.constant 0 : i32
    %c0_i32_0 = arith.constant 0 : i32
    %c0_i32_1 = arith.constant 0 : i32
    %c0_i32_2 = arith.constant 0 : i32
    return %arg0, %c0_i32, %c0_i32_0, %c0_i32_1 : i32, i32, i32, i32
  }
  func.func @transform_1(%arg0: i32) -> (i32, i32) {
    %c0_i32 = arith.constant 0 : i32
    %c0_i32_0 = arith.constant 0 : i32
    %c0_i32_1 = arith.constant 0 : i32
    return %c0_i32, %c0_i32_0 : i32, i32
  }
  func.func @transform_2(%arg0: i32) -> (i32, i32) {
    %c0_i32 = arith.constant 0 : i32
    %c0_i32_0 = arith.constant 0 : i32
    %c0_i32_1 = arith.constant 0 : i32
    return %c0_i32, %c0_i32_0 : i32, i32
  }
  func.func @transform_3(%arg0: i32) -> (i32, i32) {
    %c0_i32 = arith.constant 0 : i32
    %c0_i32_0 = arith.constant 0 : i32
    %c0_i32_1 = arith.constant 0 : i32
    return %c0_i32, %c0_i32_0 : i32, i32
  }
  func.func @transform_4(%arg0: i32) -> (i32, i32) {
    %c0_i32 = arith.constant 0 : i32
    %c0_i32_0 = arith.constant 0 : i32
    %c0_i32_1 = arith.constant 0 : i32
    return %c0_i32, %c0_i32_0 : i32, i32
  }
  func.func @transform_5(%arg0: i32) -> (i32, i32, i32, i32) {
    %c0_i32 = arith.constant 0 : i32
    %c0_i32_0 = arith.constant 0 : i32
    %c0_i32_1 = arith.constant 0 : i32
    %c0_i32_2 = arith.constant 0 : i32
    return %arg0, %c0_i32, %c0_i32_0, %c0_i32_1 : i32, i32, i32, i32
  }
}

</mosaic_0001>

<llo_original>
// kernel: tpu_custom_call.1
$region0: #{tpu_custom_call.1}
  #allocation0 [shape = 'u32[]', space=smem, size = 0x4, offset = 0x4, fixed_abs, tag = 'smem constant byte address 0x4 - core index']
  #allocation1 [shape = 'u32[72,128]{1,0:T(1,128)}', space=vmem, size = 0x9000, scoped, tag = 'internal scratch']
  %s0 = inlined_call_operand.hbm [shape: f32[2,16,16,16], index: 0, kind: input, shape index: {}]
  %s1 = inlined_call_operand.vmem [shape: f32[16,8], index: 1, kind: input, shape index: {}]
  %s2 = inlined_call_operand.vmem [shape: f32[1,8], index: 2, kind: input, shape index: {}]
  %s3 = inlined_call_operand.vmem [shape: f32[32,16], index: 3, kind: input, shape index: {}]
  %s4 = inlined_call_operand.vmem [shape: f32[1,16], index: 4, kind: input, shape index: {}]
  %s5 = inlined_call_operand.hbm [shape: f32[2,16,16,16], index: 5, kind: output, shape index: {}]
  %s6 = sld [smem:[#allocation0]]
  $region57: #{tpu_custom_call.1} parent=0
    _
  %s8 = ssub.s32 1, %s6
  %s9 = scalar_select 0, %s8, %s6
  $region1: #{tpu_custom_call.1} parent=0
    #allocation2 [shape = 'u8[262144]{0}', space=vmem, size = 0x40000, scoped, tag = 'input window, operand 0']
    #allocation3 [shape = 's32[2]{0}', space=sflag, size = 0x8, scoped, tag = 'scoped memory for tpu_custom_call.1']
    #allocation4 [shape = 's32[2]{0}', space=sflag, size = 0x8, scoped, tag = 'scoped memory for tpu_custom_call.1']
    #allocation5 [shape = 'u8[262144]{0}', space=vmem, size = 0x40000, scoped, tag = 'output window, operand 0']
    %10 = vsyncpa [#allocation3], 0
    %s11 = scalar_lea.sflag [#allocation3], 1
    %12 = vsyncpa %s11, 0
    %13 = vsyncpa [#allocation4], 0
    %s14 = scalar_lea.sflag [#allocation4], 1
    %15 = vsyncpa %s14, 0
    loop: start=0, step=1, limit=4
    $region2: #{tpu_custom_call.1} parent=1 // loop_pre_header
      _
    $region3: #{tpu_custom_call.1} parent=1 // loop_header
      %s17 = sphi 0, %s21
      %p18 = scmp.ge.s32.totalorder %s17, 4
      %s27 = sphi 0, %s29
      %s30 = sphi 0, %s27
      %s31 = sphi 0, %s30
      %s47 = sphi 0, %s31
      %s51 = sphi 0, %s51
      %s53 = sphi 0, %s51
      %s54 = sphi 0, %s53
      %s68 = sphi 0, %s54
      %s72 = sphi 0, %s72
      %s74 = sphi 0, %s72
      %s75 = sphi 0, %s74
      %s89 = sphi 0, %s75
      %s93 = sphi 0, %s93
      %s95 = sphi 0, %s93
      %s96 = sphi 0, %s95
      %s110 = sphi 0, %s96
      %s114 = sphi 0, %s114
      %s116 = sphi 0, %s114
      %s117 = sphi 0, %s116
      %s131 = sphi 0, %s117
      %s137 = sphi 0, %s139
      %s140 = sphi 0, %s137
      %s141 = sphi 0, %s140
      %s157 = sphi 0, %s141
    $region4: #{tpu_custom_call.1} parent=1 // loop_header_branch
      %20 = sbr.rel (%p18) target = $region8
    $region5: #{tpu_custom_call.1} parent=1 // loop_body
      %s22 = ssub.s32 %s17, 1
      %s23 = ssub.s32 %s17, 2
      %s24 = sadd.s32 %s17, 1
      %s25 = ssub.s32 %s17, %s24
      %p26 = scmp.eq.s32.totalorder %s25, 0
      %s28 = sadd.s32 %s27, 1
      %s29 = scalar_select %p26, %s27, %s28
      %p32 = pneg %p26
      %p33 = scmp.eq.s32.totalorder %s17, 1
      %p34 = por %p32, %p33
      %p35 = scmp.ne.s32.totalorder %s27, %s30
      %p36 = scmp.eq.s32.totalorder %s17, 0
      %p37 = por %p35, %p36
      %p38 = scmp.ne.s32.totalorder %s27, %s30
      %p39 = scmp.eq.s32.totalorder %s22, 1
      %p40 = por %p38, %p39
      %p41 = scmp.ne.s32.totalorder %s30, %s31
      %p42 = scmp.eq.s32.totalorder %s22, 0
      %p43 = por %p41, %p42
      %p44 = scmp.ne.s32.totalorder %s30, %s31
      %p45 = scmp.eq.s32.totalorder %s23, 1
      %p46 = por %p44, %p45
      %p48 = scmp.ne.s32.totalorder %s31, %s47
      %p49 = scmp.eq.s32.totalorder %s23, 0
      %p50 = por %p48, %p49
      %s52 = sadd.s32 %s51, 1
      %p55 = scmp.eq.s32.totalorder %s17, 1
      %p56 = scmp.ne.s32.totalorder %s51, %s53
      %p57 = scmp.eq.s32.totalorder %s17, 0
      %p58 = por %p56, %p57
      %p59 = scmp.ne.s32.totalorder %s51, %s53
      %p60 = scmp.eq.s32.totalorder %s22, 1
      %p61 = por %p59, %p60
      %p62 = scmp.ne.s32.totalorder %s53, %s54
      %p63 = scmp.eq.s32.totalorder %s22, 0
      %p64 = por %p62, %p63
      %p65 = scmp.ne.s32.totalorder %s53, %s54
      %p66 = scmp.eq.s32.totalorder %s23, 1
      %p67 = por %p65, %p66
      %p69 = scmp.ne.s32.totalorder %s54, %s68
      %p70 = scmp.eq.s32.totalorder %s23, 0
      %p71 = por %p69, %p70
      %s73 = sadd.s32 %s72, 1
      %p76 = scmp.eq.s32.totalorder %s17, 1
      %p77 = scmp.ne.s32.totalorder %s72, %s74
      %p78 = scmp.eq.s32.totalorder %s17, 0
      %p79 = por %p77, %p78
      %p80 = scmp.ne.s32.totalorder %s72, %s74
      %p81 = scmp.eq.s32.totalorder %s22, 1
      %p82 = por %p80, %p81
      %p83 = scmp.ne.s32.totalorder %s74, %s75
      %p84 = scmp.eq.s32.totalorder %s22, 0
      %p85 = por %p83, %p84
      %p86 = scmp.ne.s32.totalorder %s74, %s75
      %p87 = scmp.eq.s32.totalorder %s23, 1
      %p88 = por %p86, %p87
      %p90 = scmp.ne.s32.totalorder %s75, %s89
      %p91 = scmp.eq.s32.totalorder %s23, 0
      %p92 = por %p90, %p91
      %s94 = sadd.s32 %s93, 1
      %p97 = scmp.eq.s32.totalorder %s17, 1
      %p98 = scmp.ne.s32.totalorder %s93, %s95
      %p99 = scmp.eq.s32.totalorder %s17, 0
      %p100 = por %p98, %p99
      %p101 = scmp.ne.s32.totalorder %s93, %s95
      %p102 = scmp.eq.s32.totalorder %s22, 1
      %p103 = por %p101, %p102
      %p104 = scmp.ne.s32.totalorder %s95, %s96
      %p105 = scmp.eq.s32.totalorder %s22, 0
      %p106 = por %p104, %p105
      %p107 = scmp.ne.s32.totalorder %s95, %s96
      %p108 = scmp.eq.s32.totalorder %s23, 1
      %p109 = por %p107, %p108
      %p111 = scmp.ne.s32.totalorder %s96, %s110
      %p112 = scmp.eq.s32.totalorder %s23, 0
      %p113 = por %p111, %p112
      %s115 = sadd.s32 %s114, 1
      %p118 = scmp.eq.s32.totalorder %s17, 1
      %p119 = scmp.ne.s32.totalorder %s114, %s116
      %p120 = scmp.eq.s32.totalorder %s17, 0
      %p121 = por %p119, %p120
      %p122 = scmp.ne.s32.totalorder %s114, %s116
      %p123 = scmp.eq.s32.totalorder %s22, 1
      %p124 = por %p122, %p123
      %p125 = scmp.ne.s32.totalorder %s116, %s117
      %p126 = scmp.eq.s32.totalorder %s22, 0
      %p127 = por %p125, %p126
      %p128 = scmp.ne.s32.totalorder %s116, %s117
      %p129 = scmp.eq.s32.totalorder %s23, 1
      %p130 = por %p128, %p129
      %p132 = scmp.ne.s32.totalorder %s117, %s131
      %p133 = scmp.eq.s32.totalorder %s23, 0
      %p134 = por %p132, %p133
      %s135 = ssub.s32 %s17, %s24
      %p136 = scmp.eq.s32.totalorder %s135, 0
      %s138 = sadd.s32 %s137, 1
      %s139 = scalar_select %p136, %s137, %s138
      %p142 = pneg %p136
      %p143 = scmp.eq.s32.totalorder %s17, 1
      %p144 = por %p142, %p143
      %p145 = scmp.ne.s32.totalorder %s137, %s140
      %p146 = scmp.eq.s32.totalorder %s17, 0
      %p147 = por %p145, %p146
      %p148 = scmp.ne.s32.totalorder %s137, %s140
      %p149 = scmp.eq.s32.totalorder %s22, 1
      %p150 = por %p148, %p149
      %p151 = scmp.ne.s32.totalorder %s140, %s141
      %p152 = scmp.eq.s32.totalorder %s22, 0
      %p153 = por %p151, %p152
      %p154 = scmp.ne.s32.totalorder %s140, %s141
      %p155 = scmp.eq.s32.totalorder %s23, 1
      %p156 = por %p154, %p155
      %p158 = scmp.ne.s32.totalorder %s141, %s157
      %p159 = scmp.eq.s32.totalorder %s23, 0
      %p160 = por %p158, %p159
      %p161 = scmp.le.s32.totalorder 1, %s17
      %p162 = scmp.lt.s32.totalorder %s17, 3
      %p163 = pnand %p161, %p162
      %p164 = pneg %p163
      // Predicated region
      $region9: #{tpu_custom_call.1} parent=5 // pred_check
        _
      $region10: #{tpu_custom_call.1} parent=5 // pred_check_branch
        %166 = sbr.rel (%p163) target = $region12
      $region11: #{tpu_custom_call.1} parent=5 // pred_region
        %s167 = ssub.s32 %s17, 1
        // Predicated region
        $region13: #{tpu_custom_call.1} parent=11 // pred_check
          %p168 = pneg %p64
        $region14: #{tpu_custom_call.1} parent=11 // pred_check_branch
          %170 = sbr.rel (%p168) target = $region16
        $region15: #{tpu_custom_call.1} parent=11 // pred_region
          _
        $region16: #{tpu_custom_call.1} parent=11 // pred_fallthru
          _
        // Predicated region
        $region17: #{tpu_custom_call.1} parent=11 // pred_check
          %p171 = pneg %p85
        $region18: #{tpu_custom_call.1} parent=11 // pred_check_branch
          %173 = sbr.rel (%p171) target = $region20
        $region19: #{tpu_custom_call.1} parent=11 // pred_region
          _
        $region20: #{tpu_custom_call.1} parent=11 // pred_fallthru
          _
        // Predicated region
        $region21: #{tpu_custom_call.1} parent=11 // pred_check
          %p174 = pneg %p106
        $region22: #{tpu_custom_call.1} parent=11 // pred_check_branch
          %176 = sbr.rel (%p174) target = $region24
        $region23: #{tpu_custom_call.1} parent=11 // pred_region
          _
        $region24: #{tpu_custom_call.1} parent=11 // pred_fallthru
          _
        // Predicated region
        $region25: #{tpu_custom_call.1} parent=11 // pred_check
          %p177 = pneg %p127
        $region26: #{tpu_custom_call.1} parent=11 // pred_check_branch
          %179 = sbr.rel (%p177) target = $region28
        $region27: #{tpu_custom_call.1} parent=11 // pred_region
          _
        $region28: #{tpu_custom_call.1} parent=11 // pred_fallthru
          _
      $region12: #{tpu_custom_call.1} parent=5 // pred_fallthru
        _
      %p180 = scmp.lt.s32.totalorder %s17, 2
      // Predicated region
      $region29: #{tpu_custom_call.1} parent=5 // pred_check
        %p181 = pneg %p180
      $region30: #{tpu_custom_call.1} parent=5 // pred_check_branch
        %183 = sbr.rel (%p181) target = $region32
      $region31: #{tpu_custom_call.1} parent=5 // pred_region
        // Predicated region
        $region33: #{tpu_custom_call.1} parent=31 // pred_check
          %p184 = pneg %p37
        $region34: #{tpu_custom_call.1} parent=31 // pred_check_branch
          %186 = sbr.rel (%p184) target = $region36
        $region35: #{tpu_custom_call.1} parent=31 // pred_region
          %s187 = sand.u32 %s27, 1
          %s188 = scalar_lea.sflag [#allocation3], %s187
          %s189 = sand.u32 %s27, 1
          %s190 = smul.addr %s189, 256
          %s191 = scalar_lea.vmem [#allocation2], %s190
          %193 = vsyncadd %s188, 0
          %s194 = smul.addr %s17, 32
          %s195 = smul.addr %s194, 8
          %s196 = scalar_lea.hbm %s0, %s195
          %s197 = sshll.u32 %s196, 4
          %s198 = int_to_ptr.hbm [resolvable:$true] %s197
          %s199 = sshll.u32 %s191, 4
          %s200 = int_to_ptr.vmem [resolvable:$true] %s199
          %205 = dma.hbm_to_vmem [thread:$0]  %s198, 4096, %s200, %s188, 128, 128, 8
        $region36: #{tpu_custom_call.1} parent=31 // pred_fallthru
          _
      $region32: #{tpu_custom_call.1} parent=5 // pred_fallthru
        _
      %p206 = scmp.le.s32.totalorder 1, %s17
      %p207 = scmp.lt.s32.totalorder %s17, 3
      %p208 = pnand %p206, %p207
      %p209 = pneg %p208
      // Predicated region
      $region37: #{tpu_custom_call.1} parent=5 // pred_check
        _
      $region38: #{tpu_custom_call.1} parent=5 // pred_check_branch
        %211 = sbr.rel (%p208) target = $region40
      $region39: #{tpu_custom_call.1} parent=5 // pred_region
        %s212 = ssub.s32 %s17, 1
        %s213 = sand.u32 %s30, 1
        %s214 = scalar_lea.sflag [#allocation3], %s213
        %s215 = sand.u32 %s30, 1
        %s216 = smul.addr %s215, 256
        %s217 = scalar_lea.vmem [#allocation2], %s216
        // Predicated region
        $region41: #{tpu_custom_call.1} parent=39 // pred_check
          %p218 = pneg %p43
        $region42: #{tpu_custom_call.1} parent=39 // pred_check_branch
          %220 = sbr.rel (%p218) target = $region44
        $region43: #{tpu_custom_call.1} parent=39 // pred_region
          %222 = dma.done %s214, 4096
        $region44: #{tpu_custom_call.1} parent=39 // pred_fallthru
          _
        %s223 = sand.u32 %s30, 1
        %s224 = scalar_lea.sflag [#allocation3], %s223
        %s225 = sand.u32 %s30, 1
        %s226 = smul.addr %s225, 256
        %s227 = scalar_lea.vmem [#allocation2], %s226
        %p228 = pneg %p43
        %p229 = pneg %p40
        %p230 = pneg %p64
        %p231 = pneg %p61
        %p232 = pneg %p85
        %p233 = pneg %p82
        %p234 = pneg %p106
        %p235 = pneg %p103
        %p236 = pneg %p127
        %p237 = pneg %p124
        %p238 = pneg %p153
        %p239 = pneg %p150
        %s240 = sand.u32 %s140, 1
        %s241 = scalar_lea.sflag [#allocation4], %s240
        %s242 = sand.u32 %s140, 1
        %s243 = smul.addr %s242, 256
        %s244 = scalar_lea.vmem [#allocation5], %s243
        %v245 = vld [vmem:[%s217] sm:$0xff]
        %v246 = vld [vmem:[%s217 + $0x8] sm:$0xff]
        %v247 = vld [vmem:[%s217 + $0x10] sm:$0xff]
        %v248 = vld [vmem:[%s217 + $0x18] sm:$0xff]
        %v249 = vld [vmem:[%s217 + $0x20] sm:$0xff]
        %v250 = vld [vmem:[%s217 + $0x28] sm:$0xff]
        %v251 = vld [vmem:[%s217 + $0x30] sm:$0xff]
        %v252 = vld [vmem:[%s217 + $0x38] sm:$0xff]
        %v253 = vld [vmem:[%s217 + $0x40] sm:$0xff]
        %v254 = vld [vmem:[%s217 + $0x48] sm:$0xff]
        %v255 = vld [vmem:[%s217 + $0x50] sm:$0xff]
        %v256 = vld [vmem:[%s217 + $0x58] sm:$0xff]
        %v257 = vld [vmem:[%s217 + $0x60] sm:$0xff]
        %v258 = vld [vmem:[%s217 + $0x68] sm:$0xff]
        %v259 = vld [vmem:[%s217 + $0x70] sm:$0xff]
        %v260 = vld [vmem:[%s217 + $0x78] sm:$0xff]
        %v261 = vld [vmem:[%s217 + $0x80] sm:$0xff]
        %v262 = vld [vmem:[%s217 + $0x88] sm:$0xff]
        %v263 = vld [vmem:[%s217 + $0x90] sm:$0xff]
        %v264 = vld [vmem:[%s217 + $0x98] sm:$0xff]
        %v265 = vld [vmem:[%s217 + $0xa0] sm:$0xff]
        %v266 = vld [vmem:[%s217 + $0xa8] sm:$0xff]
        %v267 = vld [vmem:[%s217 + $0xb0] sm:$0xff]
        %v268 = vld [vmem:[%s217 + $0xb8] sm:$0xff]
        %v269 = vld [vmem:[%s217 + $0xc0] sm:$0xff]
        %v270 = vld [vmem:[%s217 + $0xc8] sm:$0xff]
        %v271 = vld [vmem:[%s217 + $0xd0] sm:$0xff]
        %v272 = vld [vmem:[%s217 + $0xd8] sm:$0xff]
        %v273 = vld [vmem:[%s217 + $0xe0] sm:$0xff]
        %v274 = vld [vmem:[%s217 + $0xe8] sm:$0xff]
        %v275 = vld [vmem:[%s217 + $0xf0] sm:$0xff]
        %v276 = vld [vmem:[%s217 + $0xf8] sm:$0xff]
        %v277 = vld [vmem:[%s1] sm:$0xff]
        %v278 = vld [vmem:[%s1 + $0x8] sm:$0xff]
        %v279 = vld [vmem:[%s2] sm:$0x1]
        %v281 = vperm.slane %v279, 0
        %vm283 = vcmask 130048
        %v285 = vsel %vm283, %v245, 0
        %v288 = vsel %vm283, %v246, 0
        %v291 = vsel %vm283, %v247, 0
        %v294 = vsel %vm283, %v248, 0
        %v297 = vsel %vm283, %v249, 0
        %v300 = vsel %vm283, %v250, 0
        %v303 = vsel %vm283, %v251, 0
        %v306 = vsel %vm283, %v252, 0
        %v309 = vsel %vm283, %v253, 0
        %v312 = vsel %vm283, %v254, 0
        %v315 = vsel %vm283, %v255, 0
        %v318 = vsel %vm283, %v256, 0
        %v321 = vsel %vm283, %v257, 0
        %v324 = vsel %vm283, %v258, 0
        %v327 = vsel %vm283, %v259, 0
        %v330 = vsel %vm283, %v260, 0
        %v333 = vsel %vm283, %v261, 0
        %v336 = vsel %vm283, %v262, 0
        %v339 = vsel %vm283, %v263, 0
        %v342 = vsel %vm283, %v264, 0
        %v345 = vsel %vm283, %v265, 0
        %v348 = vsel %vm283, %v266, 0
        %v351 = vsel %vm283, %v267, 0
        %v354 = vsel %vm283, %v268, 0
        %v357 = vsel %vm283, %v269, 0
        %v360 = vsel %vm283, %v270, 0
        %v363 = vsel %vm283, %v271, 0
        %v366 = vsel %vm283, %v272, 0
        %v369 = vsel %vm283, %v273, 0
        %v372 = vsel %vm283, %v274, 0
        %v375 = vsel %vm283, %v275, 0
        %v378 = vsel %vm283, %v276, 0
        %380 = vmatpush.msra.mxu0 0.0
        %381 = vmatpush.msra.mxu0 0.0
        %382 = vmatpush.msra.mxu0 0.0
        %383 = vmatpush.msra.mxu0 0.0
        %384 = vmatpush.msra.mxu0 0.0
        %385 = vmatpush.msra.mxu0 0.0
        %386 = vmatpush.msra.mxu0 0.0
        %387 = vmatpush.msra.mxu0 0.0
        %388 = vmatpush.msra.mxu0 0.0
        %389 = vmatpush.msra.mxu0 0.0
        %390 = vmatpush.msra.mxu0 0.0
        %391 = vmatpush.msra.mxu0 0.0
        %392 = vmatpush.msra.mxu0 0.0
        %393 = vmatpush.msra.mxu0 0.0
        %394 = vmatpush.msra.mxu0 %v278
        %395 = vmatpush.msra.mxu0 %v277
        %396 = vmatmul.f32.gmra.mxu0 %v285
        %v397 = vpop.f32.mrf.mxu0
        %v398 = vadd.f32 %v281, %v397
        %399 = vmatmul.f32.gmra.mxu0 %v288
        %v400 = vpop.f32.mrf.mxu0
        %v401 = vadd.f32 %v281, %v400
        %402 = vmatmul.f32.gmra.mxu0 %v291
        %v403 = vpop.f32.mrf.mxu0
        %v404 = vadd.f32 %v281, %v403
        %405 = vmatmul.f32.gmra.mxu0 %v294
        %v406 = vpop.f32.mrf.mxu0
        %v407 = vadd.f32 %v281, %v406
        %408 = vmatmul.f32.gmra.mxu0 %v297
        %v409 = vpop.f32.mrf.mxu0
        %v410 = vadd.f32 %v281, %v409
        %411 = vmatmul.f32.gmra.mxu0 %v300
        %v412 = vpop.f32.mrf.mxu0
        %v413 = vadd.f32 %v281, %v412
        %414 = vmatmul.f32.gmra.mxu0 %v303
        %v415 = vpop.f32.mrf.mxu0
        %v416 = vadd.f32 %v281, %v415
        %417 = vmatmul.f32.gmra.mxu0 %v306
        %v418 = vpop.f32.mrf.mxu0
        %v419 = vadd.f32 %v281, %v418
        %420 = vmatmul.f32.gmra.mxu0 %v309
        %v421 = vpop.f32.mrf.mxu0
        %v422 = vadd.f32 %v281, %v421
        %423 = vmatmul.f32.gmra.mxu0 %v312
        %v424 = vpop.f32.mrf.mxu0
        %v425 = vadd.f32 %v281, %v424
        %426 = vmatmul.f32.gmra.mxu0 %v315
        %v427 = vpop.f32.mrf.mxu0
        %v428 = vadd.f32 %v281, %v427
        %429 = vmatmul.f32.gmra.mxu0 %v318
        %v430 = vpop.f32.mrf.mxu0
        %v431 = vadd.f32 %v281, %v430
        %432 = vmatmul.f32.gmra.mxu0 %v321
        %v433 = vpop.f32.mrf.mxu0
        %v434 = vadd.f32 %v281, %v433
        %435 = vmatmul.f32.gmra.mxu0 %v324
        %v436 = vpop.f32.mrf.mxu0
        %v437 = vadd.f32 %v281, %v436
        %438 = vmatmul.f32.gmra.mxu0 %v327
        %v439 = vpop.f32.mrf.mxu0
        %v440 = vadd.f32 %v281, %v439
        %441 = vmatmul.f32.gmra.mxu0 %v330
        %v442 = vpop.f32.mrf.mxu0
        %v443 = vadd.f32 %v281, %v442
        %444 = vmatmul.f32.gmra.mxu0 %v333
        %v445 = vpop.f32.mrf.mxu0
        %v446 = vadd.f32 %v281, %v445
        %447 = vmatmul.f32.gmra.mxu0 %v336
        %v448 = vpop.f32.mrf.mxu0
        %v449 = vadd.f32 %v281, %v448
        %450 = vmatmul.f32.gmra.mxu0 %v339
        %v451 = vpop.f32.mrf.mxu0
        %v452 = vadd.f32 %v281, %v451
        %453 = vmatmul.f32.gmra.mxu0 %v342
        %v454 = vpop.f32.mrf.mxu0
        %v455 = vadd.f32 %v281, %v454
        %456 = vmatmul.f32.gmra.mxu0 %v345
        %v457 = vpop.f32.mrf.mxu0
        %v458 = vadd.f32 %v281, %v457
        %459 = vmatmul.f32.gmra.mxu0 %v348
        %v460 = vpop.f32.mrf.mxu0
        %v461 = vadd.f32 %v281, %v460
        %462 = vmatmul.f32.gmra.mxu0 %v351
        %v463 = vpop.f32.mrf.mxu0
        %v464 = vadd.f32 %v281, %v463
        %465 = vmatmul.f32.gmra.mxu0 %v354
        %v466 = vpop.f32.mrf.mxu0
        %v467 = vadd.f32 %v281, %v466
        %468 = vmatmul.f32.gmra.mxu0 %v357
        %v469 = vpop.f32.mrf.mxu0
        %v470 = vadd.f32 %v281, %v469
        %471 = vmatmul.f32.gmra.mxu0 %v360
        %v472 = vpop.f32.mrf.mxu0
        %v473 = vadd.f32 %v281, %v472
        %474 = vmatmul.f32.gmra.mxu0 %v363
        %v475 = vpop.f32.mrf.mxu0
        %v476 = vadd.f32 %v281, %v475
        %477 = vmatmul.f32.gmra.mxu0 %v366
        %v478 = vpop.f32.mrf.mxu0
        %v479 = vadd.f32 %v281, %v478
        %480 = vmatmul.f32.gmra.mxu0 %v369
        %v481 = vpop.f32.mrf.mxu0
        %v482 = vadd.f32 %v281, %v481
        %483 = vmatmul.f32.gmra.mxu0 %v372
        %v484 = vpop.f32.mrf.mxu0
        %v485 = vadd.f32 %v281, %v484
        %486 = vmatmul.f32.gmra.mxu0 %v375
        %v487 = vpop.f32.mrf.mxu0
        %v488 = vadd.f32 %v281, %v487
        %489 = vmatmul.f32.gmra.mxu0 %v378
        %v490 = vpop.f32.mrf.mxu0
        %v491 = vadd.f32 %v281, %v490
        %492 = vdwg.mxu0
        %v493 = vsub.f32 0.0, %v398
        %v494 = vsub.f32 0.0, %v401
        %v495 = vsub.f32 0.0, %v404
        %v496 = vsub.f32 0.0, %v407
        %v497 = vsub.f32 0.0, %v410
        %v498 = vsub.f32 0.0, %v413
        %v499 = vsub.f32 0.0, %v416
        %v500 = vsub.f32 0.0, %v419
        %v501 = vsub.f32 0.0, %v422
        %v502 = vsub.f32 0.0, %v425
        %v503 = vsub.f32 0.0, %v428
        %v504 = vsub.f32 0.0, %v431
        %v505 = vsub.f32 0.0, %v434
        %v506 = vsub.f32 0.0, %v437
        %v507 = vsub.f32 0.0, %v440
        %v508 = vsub.f32 0.0, %v443
        %v509 = vsub.f32 0.0, %v446
        %v510 = vsub.f32 0.0, %v449
        %v511 = vsub.f32 0.0, %v452
        %v512 = vsub.f32 0.0, %v455
        %v513 = vsub.f32 0.0, %v458
        %v514 = vsub.f32 0.0, %v461
        %v515 = vsub.f32 0.0, %v464
        %v516 = vsub.f32 0.0, %v467
        %v517 = vsub.f32 0.0, %v470
        %v518 = vsub.f32 0.0, %v473
        %v519 = vsub.f32 0.0, %v476
        %v520 = vsub.f32 0.0, %v479
        %v521 = vsub.f32 0.0, %v482
        %v522 = vsub.f32 0.0, %v485
        %v523 = vsub.f32 0.0, %v488
        %v524 = vsub.f32 0.0, %v491
        %v525 = vmul.f32 %v493, 1.442695
        %v526 = vpow.pop %v525
        %v527 = vmul.f32 %v494, 1.442695
        %v528 = vpow.pop %v527
        %v529 = vmul.f32 %v495, 1.442695
        %v530 = vpow.pop %v529
        %v531 = vmul.f32 %v496, 1.442695
        %v532 = vpow.pop %v531
        %v533 = vmul.f32 %v497, 1.442695
        %v534 = vpow.pop %v533
        %v535 = vmul.f32 %v498, 1.442695
        %v536 = vpow.pop %v535
        %v537 = vmul.f32 %v499, 1.442695
        %v538 = vpow.pop %v537
        %v539 = vmul.f32 %v500, 1.442695
        %v540 = vpow.pop %v539
        %v541 = vmul.f32 %v501, 1.442695
        %v542 = vpow.pop %v541
        %v543 = vmul.f32 %v502, 1.442695
        %v544 = vpow.pop %v543
        %v545 = vmul.f32 %v503, 1.442695
        %v546 = vpow.pop %v545
        %v547 = vmul.f32 %v504, 1.442695
        %v548 = vpow.pop %v547
        %v549 = vmul.f32 %v505, 1.442695
        %v550 = vpow.pop %v549
        %v551 = vmul.f32 %v506, 1.442695
        %v552 = vpow.pop %v551
        %v553 = vmul.f32 %v507, 1.442695
        %v554 = vpow.pop %v553
        %v555 = vmul.f32 %v508, 1.442695
        %v556 = vpow.pop %v555
        %v557 = vmul.f32 %v509, 1.442695
        %v558 = vpow.pop %v557
        %v559 = vmul.f32 %v510, 1.442695
        %v560 = vpow.pop %v559
        %v561 = vmul.f32 %v511, 1.442695
        %v562 = vpow.pop %v561
        %v563 = vmul.f32 %v512, 1.442695
        %v564 = vpow.pop %v563
        %v565 = vmul.f32 %v513, 1.442695
        %v566 = vpow.pop %v565
        %v567 = vmul.f32 %v514, 1.442695
        %v568 = vpow.pop %v567
        %v569 = vmul.f32 %v515, 1.442695
        %v570 = vpow.pop %v569
        %v571 = vmul.f32 %v516, 1.442695
        %v572 = vpow.pop %v571
        %v573 = vmul.f32 %v517, 1.442695
        %v574 = vpow.pop %v573
        %v575 = vmul.f32 %v518, 1.442695
        %v576 = vpow.pop %v575
        %v577 = vmul.f32 %v519, 1.442695
        %v578 = vpow.pop %v577
        %v579 = vmul.f32 %v520, 1.442695
        %v580 = vpow.pop %v579
        %v581 = vmul.f32 %v521, 1.442695
        %v582 = vpow.pop %v581
        %v583 = vmul.f32 %v522, 1.442695
        %v584 = vpow.pop %v583
        %v585 = vmul.f32 %v523, 1.442695
        %v586 = vpow.pop %v585
        %v587 = vmul.f32 %v524, 1.442695
        %v588 = vpow.pop %v587
        %v589 = vadd.f32 %v526, 1.0
        %v590 = vadd.f32 %v528, 1.0
        %v591 = vadd.f32 %v530, 1.0
        %v592 = vadd.f32 %v532, 1.0
        %v593 = vadd.f32 %v534, 1.0
        %v594 = vadd.f32 %v536, 1.0
        %v595 = vadd.f32 %v538, 1.0
        %v596 = vadd.f32 %v540, 1.0
        %v597 = vadd.f32 %v542, 1.0
        %v598 = vadd.f32 %v544, 1.0
        %v599 = vadd.f32 %v546, 1.0
        %v600 = vadd.f32 %v548, 1.0
        %v601 = vadd.f32 %v550, 1.0
        %v602 = vadd.f32 %v552, 1.0
        %v603 = vadd.f32 %v554, 1.0
        %v604 = vadd.f32 %v556, 1.0
        %v605 = vadd.f32 %v558, 1.0
        %v606 = vadd.f32 %v560, 1.0
        %v607 = vadd.f32 %v562, 1.0
        %v608 = vadd.f32 %v564, 1.0
        %v609 = vadd.f32 %v566, 1.0
        %v610 = vadd.f32 %v568, 1.0
        %v611 = vadd.f32 %v570, 1.0
        %v612 = vadd.f32 %v572, 1.0
        %v613 = vadd.f32 %v574, 1.0
        %v614 = vadd.f32 %v576, 1.0
        %v615 = vadd.f32 %v578, 1.0
        %v616 = vadd.f32 %v580, 1.0
        %v617 = vadd.f32 %v582, 1.0
        %v618 = vadd.f32 %v584, 1.0
        %v619 = vadd.f32 %v586, 1.0
        %v620 = vadd.f32 %v588, 1.0
        %v621 = vrcp.pop %v589
        %v622 = vmul.f32 %v589, %v621
        %v623 = vsub.f32 1.0, %v622
        %v624 = vmul.f32 %v621, %v623
        %v625 = vadd.f32 %v621, %v624
        %vm626 = vweird.f32 %v589
        %vm627 = vweird.f32 %v621
        %vm628 = vmor %vm626, %vm627
        %v629 = vsel %vm628, %v621, %v625
        %v630 = vand.u32 2147483647, %v589
        %vm631 = vcmp.eq.f32.partialorder %v630, 8.507059e+37
        %v632 = vand.u32 %v589, 2147483648
        %v633 = vor.u32 1.1754944e-38, %v632
        %v634 = vsel %vm631, %v633, %v629
        %v635 = vmul.f32 1.0, %v634
        %v636 = vrcp.pop %v590
        %v637 = vmul.f32 %v590, %v636
        %v638 = vsub.f32 1.0, %v637
        %v639 = vmul.f32 %v636, %v638
        %v640 = vadd.f32 %v636, %v639
        %vm641 = vweird.f32 %v590
        %vm642 = vweird.f32 %v636
        %vm643 = vmor %vm641, %vm642
        %v644 = vsel %vm643, %v636, %v640
        %v645 = vand.u32 2147483647, %v590
        %vm646 = vcmp.eq.f32.partialorder %v645, 8.507059e+37
        %v647 = vand.u32 %v590, 2147483648
        %v648 = vor.u32 1.1754944e-38, %v647
        %v649 = vsel %vm646, %v648, %v644
        %v650 = vmul.f32 1.0, %v649
        %v651 = vrcp.pop %v591
        %v652 = vmul.f32 %v591, %v651
        %v653 = vsub.f32 1.0, %v652
        %v654 = vmul.f32 %v651, %v653
        %v655 = vadd.f32 %v651, %v654
        %vm656 = vweird.f32 %v591
        %vm657 = vweird.f32 %v651
        %vm658 = vmor %vm656, %vm657
        %v659 = vsel %vm658, %v651, %v655
        %v660 = vand.u32 2147483647, %v591
        %vm661 = vcmp.eq.f32.partialorder %v660, 8.507059e+37
        %v662 = vand.u32 %v591, 2147483648
        %v663 = vor.u32 1.1754944e-38, %v662
        %v664 = vsel %vm661, %v663, %v659
        %v665 = vmul.f32 1.0, %v664
        %v666 = vrcp.pop %v592
        %v667 = vmul.f32 %v592, %v666
        %v668 = vsub.f32 1.0, %v667
        %v669 = vmul.f32 %v666, %v668
        %v670 = vadd.f32 %v666, %v669
        %vm671 = vweird.f32 %v592
        %vm672 = vweird.f32 %v666
        %vm673 = vmor %vm671, %vm672
        %v674 = vsel %vm673, %v666, %v670
        %v675 = vand.u32 2147483647, %v592
        %vm676 = vcmp.eq.f32.partialorder %v675, 8.507059e+37
        %v677 = vand.u32 %v592, 2147483648
        %v678 = vor.u32 1.1754944e-38, %v677
        %v679 = vsel %vm676, %v678, %v674
        %v680 = vmul.f32 1.0, %v679
        %v681 = vrcp.pop %v593
        %v682 = vmul.f32 %v593, %v681
        %v683 = vsub.f32 1.0, %v682
        %v684 = vmul.f32 %v681, %v683
        %v685 = vadd.f32 %v681, %v684
        %vm686 = vweird.f32 %v593
        %vm687 = vweird.f32 %v681
        %vm688 = vmor %vm686, %vm687
        %v689 = vsel %vm688, %v681, %v685
        %v690 = vand.u32 2147483647, %v593
        %vm691 = vcmp.eq.f32.partialorder %v690, 8.507059e+37
        %v692 = vand.u32 %v593, 2147483648
        %v693 = vor.u32 1.1754944e-38, %v692
        %v694 = vsel %vm691, %v693, %v689
        %v695 = vmul.f32 1.0, %v694
        %v696 = vrcp.pop %v594
        %v697 = vmul.f32 %v594, %v696
        %v698 = vsub.f32 1.0, %v697
        %v699 = vmul.f32 %v696, %v698
        %v700 = vadd.f32 %v696, %v699
        %vm701 = vweird.f32 %v594
        %vm702 = vweird.f32 %v696
        %vm703 = vmor %vm701, %vm702
        %v704 = vsel %vm703, %v696, %v700
        %v705 = vand.u32 2147483647, %v594
        %vm706 = vcmp.eq.f32.partialorder %v705, 8.507059e+37
        %v707 = vand.u32 %v594, 2147483648
        %v708 = vor.u32 1.1754944e-38, %v707
        %v709 = vsel %vm706, %v708, %v704
        %v710 = vmul.f32 1.0, %v709
        %v711 = vrcp.pop %v595
        %v712 = vmul.f32 %v595, %v711
        %v713 = vsub.f32 1.0, %v712
        %v714 = vmul.f32 %v711, %v713
        %v715 = vadd.f32 %v711, %v714
        %vm716 = vweird.f32 %v595
        %vm717 = vweird.f32 %v711
        %vm718 = vmor %vm716, %vm717
        %v719 = vsel %vm718, %v711, %v715
        %v720 = vand.u32 2147483647, %v595
        %vm721 = vcmp.eq.f32.partialorder %v720, 8.507059e+37
        %v722 = vand.u32 %v595, 2147483648
        %v723 = vor.u32 1.1754944e-38, %v722
        %v724 = vsel %vm721, %v723, %v719
        %v725 = vmul.f32 1.0, %v724
        %v726 = vrcp.pop %v596
        %v727 = vmul.f32 %v596, %v726
        %v728 = vsub.f32 1.0, %v727
        %v729 = vmul.f32 %v726, %v728
        %v730 = vadd.f32 %v726, %v729
        %vm731 = vweird.f32 %v596
        %vm732 = vweird.f32 %v726
        %vm733 = vmor %vm731, %vm732
        %v734 = vsel %vm733, %v726, %v730
        %v735 = vand.u32 2147483647, %v596
        %vm736 = vcmp.eq.f32.partialorder %v735, 8.507059e+37
        %v737 = vand.u32 %v596, 2147483648
        %v738 = vor.u32 1.1754944e-38, %v737
        %v739 = vsel %vm736, %v738, %v734
        %v740 = vmul.f32 1.0, %v739
        %v741 = vrcp.pop %v597
        %v742 = vmul.f32 %v597, %v741
        %v743 = vsub.f32 1.0, %v742
        %v744 = vmul.f32 %v741, %v743
        %v745 = vadd.f32 %v741, %v744
        %vm746 = vweird.f32 %v597
        %vm747 = vweird.f32 %v741
        %vm748 = vmor %vm746, %vm747
        %v749 = vsel %vm748, %v741, %v745
        %v750 = vand.u32 2147483647, %v597
        %vm751 = vcmp.eq.f32.partialorder %v750, 8.507059e+37
        %v752 = vand.u32 %v597, 2147483648
        %v753 = vor.u32 1.1754944e-38, %v752
        %v754 = vsel %vm751, %v753, %v749
        %v755 = vmul.f32 1.0, %v754
        %v756 = vrcp.pop %v598
        %v757 = vmul.f32 %v598, %v756
        %v758 = vsub.f32 1.0, %v757
        %v759 = vmul.f32 %v756, %v758
        %v760 = vadd.f32 %v756, %v759
        %vm761 = vweird.f32 %v598
        %vm762 = vweird.f32 %v756
        %vm763 = vmor %vm761, %vm762
        %v764 = vsel %vm763, %v756, %v760
        %v765 = vand.u32 2147483647, %v598
        %vm766 = vcmp.eq.f32.partialorder %v765, 8.507059e+37
        %v767 = vand.u32 %v598, 2147483648
        %v768 = vor.u32 1.1754944e-38, %v767
        %v769 = vsel %vm766, %v768, %v764
        %v770 = vmul.f32 1.0, %v769
        %v771 = vrcp.pop %v599
        %v772 = vmul.f32 %v599, %v771
        %v773 = vsub.f32 1.0, %v772
        %v774 = vmul.f32 %v771, %v773
        %v775 = vadd.f32 %v771, %v774
        %vm776 = vweird.f32 %v599
        %vm777 = vweird.f32 %v771
        %vm778 = vmor %vm776, %vm777
        %v779 = vsel %vm778, %v771, %v775
        %v780 = vand.u32 2147483647, %v599
        %vm781 = vcmp.eq.f32.partialorder %v780, 8.507059e+37
        %v782 = vand.u32 %v599, 2147483648
        %v783 = vor.u32 1.1754944e-38, %v782
        %v784 = vsel %vm781, %v783, %v779
        %v785 = vmul.f32 1.0, %v784
        %v786 = vrcp.pop %v600
        %v787 = vmul.f32 %v600, %v786
        %v788 = vsub.f32 1.0, %v787
        %v789 = vmul.f32 %v786, %v788
        %v790 = vadd.f32 %v786, %v789
        %vm791 = vweird.f32 %v600
        %vm792 = vweird.f32 %v786
        %vm793 = vmor %vm791, %vm792
        %v794 = vsel %vm793, %v786, %v790
        %v795 = vand.u32 2147483647, %v600
        %vm796 = vcmp.eq.f32.partialorder %v795, 8.507059e+37
        %v797 = vand.u32 %v600, 2147483648
        %v798 = vor.u32 1.1754944e-38, %v797
        %v799 = vsel %vm796, %v798, %v794
        %v800 = vmul.f32 1.0, %v799
        %v801 = vrcp.pop %v601
        %v802 = vmul.f32 %v601, %v801
        %v803 = vsub.f32 1.0, %v802
        %v804 = vmul.f32 %v801, %v803
        %v805 = vadd.f32 %v801, %v804
        %vm806 = vweird.f32 %v601
        %vm807 = vweird.f32 %v801
        %vm808 = vmor %vm806, %vm807
        %v809 = vsel %vm808, %v801, %v805
        %v810 = vand.u32 2147483647, %v601
        %vm811 = vcmp.eq.f32.partialorder %v810, 8.507059e+37
        %v812 = vand.u32 %v601, 2147483648
        %v813 = vor.u32 1.1754944e-38, %v812
        %v814 = vsel %vm811, %v813, %v809
        %v815 = vmul.f32 1.0, %v814
        %v816 = vrcp.pop %v602
        %v817 = vmul.f32 %v602, %v816
        %v818 = vsub.f32 1.0, %v817
        %v819 = vmul.f32 %v816, %v818
        %v820 = vadd.f32 %v816, %v819
        %vm821 = vweird.f32 %v602
        %vm822 = vweird.f32 %v816
        %vm823 = vmor %vm821, %vm822
        %v824 = vsel %vm823, %v816, %v820
        %v825 = vand.u32 2147483647, %v602
        %vm826 = vcmp.eq.f32.partialorder %v825, 8.507059e+37
        %v827 = vand.u32 %v602, 2147483648
        %v828 = vor.u32 1.1754944e-38, %v827
        %v829 = vsel %vm826, %v828, %v824
        %v830 = vmul.f32 1.0, %v829
        %v831 = vrcp.pop %v603
        %v832 = vmul.f32 %v603, %v831
        %v833 = vsub.f32 1.0, %v832
        %v834 = vmul.f32 %v831, %v833
        %v835 = vadd.f32 %v831, %v834
        %vm836 = vweird.f32 %v603
        %vm837 = vweird.f32 %v831
        %vm838 = vmor %vm836, %vm837
        %v839 = vsel %vm838, %v831, %v835
        %v840 = vand.u32 2147483647, %v603
        %vm841 = vcmp.eq.f32.partialorder %v840, 8.507059e+37
        %v842 = vand.u32 %v603, 2147483648
        %v843 = vor.u32 1.1754944e-38, %v842
        %v844 = vsel %vm841, %v843, %v839
        %v845 = vmul.f32 1.0, %v844
        %v846 = vrcp.pop %v604
        %v847 = vmul.f32 %v604, %v846
        %v848 = vsub.f32 1.0, %v847
        %v849 = vmul.f32 %v846, %v848
        %v850 = vadd.f32 %v846, %v849
        %vm851 = vweird.f32 %v604
        %vm852 = vweird.f32 %v846
        %vm853 = vmor %vm851, %vm852
        %v854 = vsel %vm853, %v846, %v850
        %v855 = vand.u32 2147483647, %v604
        %vm856 = vcmp.eq.f32.partialorder %v855, 8.507059e+37
        %v857 = vand.u32 %v604, 2147483648
        %v858 = vor.u32 1.1754944e-38, %v857
        %v859 = vsel %vm856, %v858, %v854
        %v860 = vmul.f32 1.0, %v859
        %v861 = vrcp.pop %v605
        %v862 = vmul.f32 %v605, %v861
        %v863 = vsub.f32 1.0, %v862
        %v864 = vmul.f32 %v861, %v863
        %v865 = vadd.f32 %v861, %v864
        %vm866 = vweird.f32 %v605
        %vm867 = vweird.f32 %v861
        %vm868 = vmor %vm866, %vm867
        %v869 = vsel %vm868, %v861, %v865
        %v870 = vand.u32 2147483647, %v605
        %vm871 = vcmp.eq.f32.partialorder %v870, 8.507059e+37
        %v872 = vand.u32 %v605, 2147483648
        %v873 = vor.u32 1.1754944e-38, %v872
        %v874 = vsel %vm871, %v873, %v869
        %v875 = vmul.f32 1.0, %v874
        %v876 = vrcp.pop %v606
        %v877 = vmul.f32 %v606, %v876
        %v878 = vsub.f32 1.0, %v877
        %v879 = vmul.f32 %v876, %v878
        %v880 = vadd.f32 %v876, %v879
        %vm881 = vweird.f32 %v606
        %vm882 = vweird.f32 %v876
        %vm883 = vmor %vm881, %vm882
        %v884 = vsel %vm883, %v876, %v880
        %v885 = vand.u32 2147483647, %v606
        %vm886 = vcmp.eq.f32.partialorder %v885, 8.507059e+37
        %v887 = vand.u32 %v606, 2147483648
        %v888 = vor.u32 1.1754944e-38, %v887
        %v889 = vsel %vm886, %v888, %v884
        %v890 = vmul.f32 1.0, %v889
        %v891 = vrcp.pop %v607
        %v892 = vmul.f32 %v607, %v891
        %v893 = vsub.f32 1.0, %v892
        %v894 = vmul.f32 %v891, %v893
        %v895 = vadd.f32 %v891, %v894
        %vm896 = vweird.f32 %v607
        %vm897 = vweird.f32 %v891
        %vm898 = vmor %vm896, %vm897
        %v899 = vsel %vm898, %v891, %v895
        %v900 = vand.u32 2147483647, %v607
        %vm901 = vcmp.eq.f32.partialorder %v900, 8.507059e+37
        %v902 = vand.u32 %v607, 2147483648
        %v903 = vor.u32 1.1754944e-38, %v902
        %v904 = vsel %vm901, %v903, %v899
        %v905 = vmul.f32 1.0, %v904
        %v906 = vrcp.pop %v608
        %v907 = vmul.f32 %v608, %v906
        %v908 = vsub.f32 1.0, %v907
        %v909 = vmul.f32 %v906, %v908
        %v910 = vadd.f32 %v906, %v909
        %vm911 = vweird.f32 %v608
        %vm912 = vweird.f32 %v906
        %vm913 = vmor %vm911, %vm912
        %v914 = vsel %vm913, %v906, %v910
        %v915 = vand.u32 2147483647, %v608
        %vm916 = vcmp.eq.f32.partialorder %v915, 8.507059e+37
        %v917 = vand.u32 %v608, 2147483648
        %v918 = vor.u32 1.1754944e-38, %v917
        %v919 = vsel %vm916, %v918, %v914
        %v920 = vmul.f32 1.0, %v919
        %v921 = vrcp.pop %v609
        %v922 = vmul.f32 %v609, %v921
        %v923 = vsub.f32 1.0, %v922
        %v924 = vmul.f32 %v921, %v923
        %v925 = vadd.f32 %v921, %v924
        %vm926 = vweird.f32 %v609
        %vm927 = vweird.f32 %v921
        %vm928 = vmor %vm926, %vm927
        %v929 = vsel %vm928, %v921, %v925
        %v930 = vand.u32 2147483647, %v609
        %vm931 = vcmp.eq.f32.partialorder %v930, 8.507059e+37
        %v932 = vand.u32 %v609, 2147483648
        %v933 = vor.u32 1.1754944e-38, %v932
        %v934 = vsel %vm931, %v933, %v929
        %v935 = vmul.f32 1.0, %v934
        %v936 = vrcp.pop %v610
        %v937 = vmul.f32 %v610, %v936
        %v938 = vsub.f32 1.0, %v937
        %v939 = vmul.f32 %v936, %v938
        %v940 = vadd.f32 %v936, %v939
        %vm941 = vweird.f32 %v610
        %vm942 = vweird.f32 %v936
        %vm943 = vmor %vm941, %vm942
        %v944 = vsel %vm943, %v936, %v940
        %v945 = vand.u32 2147483647, %v610
        %vm946 = vcmp.eq.f32.partialorder %v945, 8.507059e+37
        %v947 = vand.u32 %v610, 2147483648
        %v948 = vor.u32 1.1754944e-38, %v947
        %v949 = vsel %vm946, %v948, %v944
        %v950 = vmul.f32 1.0, %v949
        %v951 = vrcp.pop %v611
        %v952 = vmul.f32 %v611, %v951
        %v953 = vsub.f32 1.0, %v952
        %v954 = vmul.f32 %v951, %v953
        %v955 = vadd.f32 %v951, %v954
        %vm956 = vweird.f32 %v611
        %vm957 = vweird.f32 %v951
        %vm958 = vmor %vm956, %vm957
        %v959 = vsel %vm958, %v951, %v955
        %v960 = vand.u32 2147483647, %v611
        %vm961 = vcmp.eq.f32.partialorder %v960, 8.507059e+37
        %v962 = vand.u32 %v611, 2147483648
        %v963 = vor.u32 1.1754944e-38, %v962
        %v964 = vsel %vm961, %v963, %v959
        %v965 = vmul.f32 1.0, %v964
        %v966 = vrcp.pop %v612
        %v967 = vmul.f32 %v612, %v966
        %v968 = vsub.f32 1.0, %v967
        %v969 = vmul.f32 %v966, %v968
        %v970 = vadd.f32 %v966, %v969
        %vm971 = vweird.f32 %v612
        %vm972 = vweird.f32 %v966
        %vm973 = vmor %vm971, %vm972
        %v974 = vsel %vm973, %v966, %v970
        %v975 = vand.u32 2147483647, %v612
        %vm976 = vcmp.eq.f32.partialorder %v975, 8.507059e+37
        %v977 = vand.u32 %v612, 2147483648
        %v978 = vor.u32 1.1754944e-38, %v977
        %v979 = vsel %vm976, %v978, %v974
        %v980 = vmul.f32 1.0, %v979
        %v981 = vrcp.pop %v613
        %v982 = vmul.f32 %v613, %v981
        %v983 = vsub.f32 1.0, %v982
        %v984 = vmul.f32 %v981, %v983
        %v985 = vadd.f32 %v981, %v984
        %vm986 = vweird.f32 %v613
        %vm987 = vweird.f32 %v981
        %vm988 = vmor %vm986, %vm987
        %v989 = vsel %vm988, %v981, %v985
        %v990 = vand.u32 2147483647, %v613
        %vm991 = vcmp.eq.f32.partialorder %v990, 8.507059e+37
        %v992 = vand.u32 %v613, 2147483648
        %v993 = vor.u32 1.1754944e-38, %v992
        %v994 = vsel %vm991, %v993, %v989
        %v995 = vmul.f32 1.0, %v994
        %v996 = vrcp.pop %v614
        %v997 = vmul.f32 %v614, %v996
        %v998 = vsub.f32 1.0, %v997
        %v999 = vmul.f32 %v996, %v998
        %v1000 = vadd.f32 %v996, %v999
        %vm1001 = vweird.f32 %v614
        %vm1002 = vweird.f32 %v996
        %vm1003 = vmor %vm1001, %vm1002
        %v1004 = vsel %vm1003, %v996, %v1000
        %v1005 = vand.u32 2147483647, %v614
        %vm1006 = vcmp.eq.f32.partialorder %v1005, 8.507059e+37
        %v1007 = vand.u32 %v614, 2147483648
        %v1008 = vor.u32 1.1754944e-38, %v1007
        %v1009 = vsel %vm1006, %v1008, %v1004
        %v1010 = vmul.f32 1.0, %v1009
        %v1011 = vrcp.pop %v615
        %v1012 = vmul.f32 %v615, %v1011
        %v1013 = vsub.f32 1.0, %v1012
        %v1014 = vmul.f32 %v1011, %v1013
        %v1015 = vadd.f32 %v1011, %v1014
        %vm1016 = vweird.f32 %v615
        %vm1017 = vweird.f32 %v1011
        %vm1018 = vmor %vm1016, %vm1017
        %v1019 = vsel %vm1018, %v1011, %v1015
        %v1020 = vand.u32 2147483647, %v615
        %vm1021 = vcmp.eq.f32.partialorder %v1020, 8.507059e+37
        %v1022 = vand.u32 %v615, 2147483648
        %v1023 = vor.u32 1.1754944e-38, %v1022
        %v1024 = vsel %vm1021, %v1023, %v1019
        %v1025 = vmul.f32 1.0, %v1024
        %v1026 = vrcp.pop %v616
        %v1027 = vmul.f32 %v616, %v1026
        %v1028 = vsub.f32 1.0, %v1027
        %v1029 = vmul.f32 %v1026, %v1028
        %v1030 = vadd.f32 %v1026, %v1029
        %vm1031 = vweird.f32 %v616
        %vm1032 = vweird.f32 %v1026
        %vm1033 = vmor %vm1031, %vm1032
        %v1034 = vsel %vm1033, %v1026, %v1030
        %v1035 = vand.u32 2147483647, %v616
        %vm1036 = vcmp.eq.f32.partialorder %v1035, 8.507059e+37
        %v1037 = vand.u32 %v616, 2147483648
        %v1038 = vor.u32 1.1754944e-38, %v1037
        %v1039 = vsel %vm1036, %v1038, %v1034
        %v1040 = vmul.f32 1.0, %v1039
        %v1041 = vrcp.pop %v617
        %v1042 = vmul.f32 %v617, %v1041
        %v1043 = vsub.f32 1.0, %v1042
        %v1044 = vmul.f32 %v1041, %v1043
        %v1045 = vadd.f32 %v1041, %v1044
        %vm1046 = vweird.f32 %v617
        %vm1047 = vweird.f32 %v1041
        %vm1048 = vmor %vm1046, %vm1047
        %v1049 = vsel %vm1048, %v1041, %v1045
        %v1050 = vand.u32 2147483647, %v617
        %vm1051 = vcmp.eq.f32.partialorder %v1050, 8.507059e+37
        %v1052 = vand.u32 %v617, 2147483648
        %v1053 = vor.u32 1.1754944e-38, %v1052
        %v1054 = vsel %vm1051, %v1053, %v1049
        %v1055 = vmul.f32 1.0, %v1054
        %v1056 = vrcp.pop %v618
        %v1057 = vmul.f32 %v618, %v1056
        %v1058 = vsub.f32 1.0, %v1057
        %v1059 = vmul.f32 %v1056, %v1058
        %v1060 = vadd.f32 %v1056, %v1059
        %vm1061 = vweird.f32 %v618
        %vm1062 = vweird.f32 %v1056
        %vm1063 = vmor %vm1061, %vm1062
        %v1064 = vsel %vm1063, %v1056, %v1060
        %v1065 = vand.u32 2147483647, %v618
        %vm1066 = vcmp.eq.f32.partialorder %v1065, 8.507059e+37
        %v1067 = vand.u32 %v618, 2147483648
        %v1068 = vor.u32 1.1754944e-38, %v1067
        %v1069 = vsel %vm1066, %v1068, %v1064
        %v1070 = vmul.f32 1.0, %v1069
        %v1071 = vrcp.pop %v619
        %v1072 = vmul.f32 %v619, %v1071
        %v1073 = vsub.f32 1.0, %v1072
        %v1074 = vmul.f32 %v1071, %v1073
        %v1075 = vadd.f32 %v1071, %v1074
        %vm1076 = vweird.f32 %v619
        %vm1077 = vweird.f32 %v1071
        %vm1078 = vmor %vm1076, %vm1077
        %v1079 = vsel %vm1078, %v1071, %v1075
        %v1080 = vand.u32 2147483647, %v619
        %vm1081 = vcmp.eq.f32.partialorder %v1080, 8.507059e+37
        %v1082 = vand.u32 %v619, 2147483648
        %v1083 = vor.u32 1.1754944e-38, %v1082
        %v1084 = vsel %vm1081, %v1083, %v1079
        %v1085 = vmul.f32 1.0, %v1084
        %v1086 = vrcp.pop %v620
        %v1087 = vmul.f32 %v620, %v1086
        %v1088 = vsub.f32 1.0, %v1087
        %v1089 = vmul.f32 %v1086, %v1088
        %v1090 = vadd.f32 %v1086, %v1089
        %vm1091 = vweird.f32 %v620
        %vm1092 = vweird.f32 %v1086
        %vm1093 = vmor %vm1091, %vm1092
        %v1094 = vsel %vm1093, %v1086, %v1090
        %v1095 = vand.u32 2147483647, %v620
        %vm1096 = vcmp.eq.f32.partialorder %v1095, 8.507059e+37
        %v1097 = vand.u32 %v620, 2147483648
        %v1098 = vor.u32 1.1754944e-38, %v1097
        %v1099 = vsel %vm1096, %v1098, %v1094
        %v1100 = vmul.f32 1.0, %v1099
        %v1101 = vmul.f32 %v398, %v635
        %v1102 = vmul.f32 %v401, %v650
        %v1103 = vmul.f32 %v404, %v665
        %v1104 = vmul.f32 %v407, %v680
        %v1105 = vmul.f32 %v410, %v695
        %v1106 = vmul.f32 %v413, %v710
        %v1107 = vmul.f32 %v416, %v725
        %v1108 = vmul.f32 %v419, %v740
        %v1109 = vmul.f32 %v422, %v755
        %v1110 = vmul.f32 %v425, %v770
        %v1111 = vmul.f32 %v428, %v785
        %v1112 = vmul.f32 %v431, %v800
        %v1113 = vmul.f32 %v434, %v815
        %v1114 = vmul.f32 %v437, %v830
        %v1115 = vmul.f32 %v440, %v845
        %v1116 = vmul.f32 %v443, %v860
        %v1117 = vmul.f32 %v446, %v875
        %v1118 = vmul.f32 %v449, %v890
        %v1119 = vmul.f32 %v452, %v905
        %v1120 = vmul.f32 %v455, %v920
        %v1121 = vmul.f32 %v458, %v935
        %v1122 = vmul.f32 %v461, %v950
        %v1123 = vmul.f32 %v464, %v965
        %v1124 = vmul.f32 %v467, %v980
        %v1125 = vmul.f32 %v470, %v995
        %v1126 = vmul.f32 %v473, %v1010
        %v1127 = vmul.f32 %v476, %v1025
        %v1128 = vmul.f32 %v479, %v1040
        %v1129 = vmul.f32 %v482, %v1055
        %v1130 = vmul.f32 %v485, %v1070
        %v1131 = vmul.f32 %v488, %v1085
        %v1132 = vmul.f32 %v491, %v1100
        %v1133 = vmax.f32 %v1101, %v1103
        %v1134 = vmax.f32 %v1102, %v1104
        %v1135 = vmax.f32 %v1103, %v1105
        %v1136 = vmax.f32 %v1104, %v1106
        %v1137 = vmax.f32 %v1105, %v1107
        %v1138 = vmax.f32 %v1106, %v1108
        %v1139 = vmax.f32 %v1107, %v1109
        %v1140 = vmax.f32 %v1108, %v1110
        %v1141 = vmax.f32 %v1109, %v1111
        %v1142 = vmax.f32 %v1110, %v1112
        %v1143 = vmax.f32 %v1111, %v1113
        %v1144 = vmax.f32 %v1112, %v1114
        %v1145 = vmax.f32 %v1113, %v1115
        %v1146 = vmax.f32 %v1114, %v1116
        %v1147 = vmax.f32 %v1115, %v1117
        %v1148 = vmax.f32 %v1116, %v1118
        %v1149 = vmax.f32 %v1117, %v1119
        %v1150 = vmax.f32 %v1118, %v1120
        %v1151 = vmax.f32 %v1119, %v1121
        %v1152 = vmax.f32 %v1120, %v1122
        %v1153 = vmax.f32 %v1121, %v1123
        %v1154 = vmax.f32 %v1122, %v1124
        %v1155 = vmax.f32 %v1123, %v1125
        %v1156 = vmax.f32 %v1124, %v1126
        %v1157 = vmax.f32 %v1125, %v1127
        %v1158 = vmax.f32 %v1126, %v1128
        %v1159 = vmax.f32 %v1127, %v1129
        %v1160 = vmax.f32 %v1128, %v1130
        %v1161 = vmax.f32 %v1133, %v1105
        %v1162 = vmax.f32 %v1134, %v1106
        %v1163 = vmax.f32 %v1135, %v1107
        %v1164 = vmax.f32 %v1136, %v1108
        %v1165 = vmax.f32 %v1137, %v1109
        %v1166 = vmax.f32 %v1138, %v1110
        %v1167 = vmax.f32 %v1139, %v1111
        %v1168 = vmax.f32 %v1140, %v1112
        %v1169 = vmax.f32 %v1141, %v1113
        %v1170 = vmax.f32 %v1142, %v1114
        %v1171 = vmax.f32 %v1143, %v1115
        %v1172 = vmax.f32 %v1144, %v1116
        %v1173 = vmax.f32 %v1145, %v1117
        %v1174 = vmax.f32 %v1146, %v1118
        %v1175 = vmax.f32 %v1147, %v1119
        %v1176 = vmax.f32 %v1148, %v1120
        %v1177 = vmax.f32 %v1149, %v1121
        %v1178 = vmax.f32 %v1150, %v1122
        %v1179 = vmax.f32 %v1151, %v1123
        %v1180 = vmax.f32 %v1152, %v1124
        %v1181 = vmax.f32 %v1153, %v1125
        %v1182 = vmax.f32 %v1154, %v1126
        %v1183 = vmax.f32 %v1155, %v1127
        %v1184 = vmax.f32 %v1156, %v1128
        %v1185 = vmax.f32 %v1157, %v1129
        %v1186 = vmax.f32 %v1158, %v1130
        %v1187 = vmax.f32 %v1159, %v1131
        %v1188 = vmax.f32 %v1160, %v1132
        %v1189 = vmax.f32 %v1161, %v1107
        %v1190 = vmax.f32 %v1162, %v1108
        %v1191 = vmax.f32 %v1163, %v1109
        %v1192 = vmax.f32 %v1164, %v1110
        %v1193 = vmax.f32 %v1165, %v1111
        %v1194 = vmax.f32 %v1166, %v1112
        %v1195 = vmax.f32 %v1167, %v1113
        %v1196 = vmax.f32 %v1168, %v1114
        %v1197 = vmax.f32 %v1169, %v1115
        %v1198 = vmax.f32 %v1170, %v1116
        %v1199 = vmax.f32 %v1171, %v1117
        %v1200 = vmax.f32 %v1172, %v1118
        %v1201 = vmax.f32 %v1173, %v1119
        %v1202 = vmax.f32 %v1174, %v1120
        %v1203 = vmax.f32 %v1175, %v1121
        %v1204 = vmax.f32 %v1176, %v1122
        %v1205 = vmax.f32 %v1177, %v1123
        %v1206 = vmax.f32 %v1178, %v1124
        %v1207 = vmax.f32 %v1179, %v1125
        %v1208 = vmax.f32 %v1180, %v1126
        %v1209 = vmax.f32 %v1181, %v1127
        %v1210 = vmax.f32 %v1182, %v1128
        %v1211 = vmax.f32 %v1183, %v1129
        %v1212 = vmax.f32 %v1184, %v1130
        %v1213 = vmax.f32 %v1185, %v1131
        %v1214 = vmax.f32 %v1186, %v1132
        %v1215 = vmax.f32 %v1189, %v1109
        %v1216 = vmax.f32 %v1190, %v1110
        %v1217 = vmax.f32 %v1191, %v1111
        %v1218 = vmax.f32 %v1192, %v1112
        %v1219 = vmax.f32 %v1193, %v1113
        %v1220 = vmax.f32 %v1194, %v1114
        %v1221 = vmax.f32 %v1195, %v1115
        %v1222 = vmax.f32 %v1196, %v1116
        %v1223 = vmax.f32 %v1197, %v1117
        %v1224 = vmax.f32 %v1198, %v1118
        %v1225 = vmax.f32 %v1199, %v1119
        %v1226 = vmax.f32 %v1200, %v1120
        %v1227 = vmax.f32 %v1201, %v1121
        %v1228 = vmax.f32 %v1202, %v1122
        %v1229 = vmax.f32 %v1203, %v1123
        %v1230 = vmax.f32 %v1204, %v1124
        %v1231 = vmax.f32 %v1205, %v1125
        %v1232 = vmax.f32 %v1206, %v1126
        %v1233 = vmax.f32 %v1207, %v1127
        %v1234 = vmax.f32 %v1208, %v1128
        %v1235 = vmax.f32 %v1209, %v1129
        %v1236 = vmax.f32 %v1210, %v1130
        %v1237 = vmax.f32 %v1211, %v1131
        %v1238 = vmax.f32 %v1212, %v1132
        %vm1271 = vcmask 1041408
        %v1272 = vrot.slane %v1161, 6
        %v1273 = vrot.slane %v1162, 6
        %v1274 = vsel %vm1271, %v1272, %v1273
        %v1275 = vrot.slane %v1189, 6
        %v1276 = vrot.slane %v1190, 6
        %v1277 = vsel %vm1271, %v1275, %v1276
        %v1278 = vrot.slane %v1215, 6
        %v1279 = vrot.slane %v1216, 6
        %v1280 = vsel %vm1271, %v1278, %v1279
        %v1281 = vrot.slane %v1217, 6
        %v1282 = vrot.slane %v1218, 6
        %v1283 = vsel %vm1271, %v1281, %v1282
        %v1284 = vrot.slane %v1219, 6
        %v1285 = vrot.slane %v1220, 6
        %v1286 = vsel %vm1271, %v1284, %v1285
        %v1287 = vrot.slane %v1221, 6
        %v1288 = vrot.slane %v1222, 6
        %v1289 = vsel %vm1271, %v1287, %v1288
        %v1290 = vrot.slane %v1223, 6
        %v1291 = vrot.slane %v1224, 6
        %v1292 = vsel %vm1271, %v1290, %v1291
        %v1293 = vrot.slane %v1225, 6
        %v1294 = vrot.slane %v1226, 6
        %v1295 = vsel %vm1271, %v1293, %v1294
        %v1296 = vrot.slane %v1227, 6
        %v1297 = vrot.slane %v1228, 6
        %v1298 = vsel %vm1271, %v1296, %v1297
        %v1299 = vrot.slane %v1229, 6
        %v1300 = vrot.slane %v1230, 6
        %v1301 = vsel %vm1271, %v1299, %v1300
        %v1302 = vrot.slane %v1231, 6
        %v1303 = vrot.slane %v1232, 6
        %v1304 = vsel %vm1271, %v1302, %v1303
        %v1305 = vrot.slane %v1233, 6
        %v1306 = vrot.slane %v1234, 6
        %v1307 = vsel %vm1271, %v1305, %v1306
        %v1308 = vrot.slane %v1235, 6
        %v1309 = vrot.slane %v1236, 6
        %v1310 = vsel %vm1271, %v1308, %v1309
        %v1311 = vrot.slane %v1237, 6
        %v1312 = vrot.slane %v1238, 6
        %v1313 = vsel %vm1271, %v1311, %v1312
        %v1314 = vrot.slane %v1213, 6
        %v1315 = vrot.slane %v1214, 6
        %v1316 = vsel %vm1271, %v1314, %v1315
        %v1317 = vrot.slane %v1187, 6
        %v1318 = vrot.slane %v1188, 6
        %v1319 = vsel %vm1271, %v1317, %v1318
        %v1368 = vsel %vm1271, -inf, %v1272
        %v1369 = vsel %vm1271, -inf, %v1275
        %v1370 = vsel %vm1271, -inf, %v1278
        %v1371 = vsel %vm1271, -inf, %v1281
        %v1372 = vsel %vm1271, -inf, %v1284
        %v1373 = vsel %vm1271, -inf, %v1287
        %v1374 = vsel %vm1271, -inf, %v1290
        %v1375 = vsel %vm1271, -inf, %v1293
        %v1376 = vsel %vm1271, -inf, %v1296
        %v1377 = vsel %vm1271, -inf, %v1299
        %v1378 = vsel %vm1271, -inf, %v1302
        %v1379 = vsel %vm1271, -inf, %v1305
        %v1380 = vsel %vm1271, -inf, %v1308
        %v1381 = vsel %vm1271, -inf, %v1311
        %v1382 = vsel %vm1271, -inf, %v1314
        %v1383 = vsel %vm1271, -inf, %v1317
        %v1384 = vsel %vm1271, %v1273, -inf
        %v1385 = vsel %vm1271, %v1276, -inf
        %v1386 = vsel %vm1271, %v1279, -inf
        %v1387 = vsel %vm1271, %v1282, -inf
        %v1388 = vsel %vm1271, %v1285, -inf
        %v1389 = vsel %vm1271, %v1288, -inf
        %v1390 = vsel %vm1271, %v1291, -inf
        %v1391 = vsel %vm1271, %v1294, -inf
        %v1392 = vsel %vm1271, %v1297, -inf
        %v1393 = vsel %vm1271, %v1300, -inf
        %v1394 = vsel %vm1271, %v1303, -inf
        %v1395 = vsel %vm1271, %v1306, -inf
        %v1396 = vsel %vm1271, %v1309, -inf
        %v1397 = vsel %vm1271, %v1312, -inf
        %v1398 = vsel %vm1271, %v1315, -inf
        %v1399 = vsel %vm1271, %v1318, -inf
        %vm1432 = vcmask 1046528
        %v1433 = vrot.slane %v1368, 1
        %v1434 = vrot.slane %v1274, 1
        %v1435 = vsel %vm1432, %v1433, %v1434
        %v1436 = vrot.slane %v1384, 1
        %v1437 = vsel %vm1432, %v1434, %v1436
        %v1438 = vrot.slane %v1369, 1
        %v1439 = vrot.slane %v1277, 1
        %v1440 = vsel %vm1432, %v1438, %v1439
        %v1441 = vrot.slane %v1385, 1
        %v1442 = vsel %vm1432, %v1439, %v1441
        %v1443 = vrot.slane %v1370, 1
        %v1444 = vrot.slane %v1280, 1
        %v1445 = vsel %vm1432, %v1443, %v1444
        %v1446 = vrot.slane %v1386, 1
        %v1447 = vsel %vm1432, %v1444, %v1446
        %v1448 = vrot.slane %v1371, 1
        %v1449 = vrot.slane %v1283, 1
        %v1450 = vsel %vm1432, %v1448, %v1449
        %v1451 = vrot.slane %v1387, 1
        %v1452 = vsel %vm1432, %v1449, %v1451
        %v1453 = vrot.slane %v1372, 1
        %v1454 = vrot.slane %v1286, 1
        %v1455 = vsel %vm1432, %v1453, %v1454
        %v1456 = vrot.slane %v1388, 1
        %v1457 = vsel %vm1432, %v1454, %v1456
        %v1458 = vrot.slane %v1373, 1
        %v1459 = vrot.slane %v1289, 1
        %v1460 = vsel %vm1432, %v1458, %v1459
        %v1461 = vrot.slane %v1389, 1
        %v1462 = vsel %vm1432, %v1459, %v1461
        %v1463 = vrot.slane %v1374, 1
        %v1464 = vrot.slane %v1292, 1
        %v1465 = vsel %vm1432, %v1463, %v1464
        %v1466 = vrot.slane %v1390, 1
        %v1467 = vsel %vm1432, %v1464, %v1466
        %v1468 = vrot.slane %v1375, 1
        %v1469 = vrot.slane %v1295, 1
        %v1470 = vsel %vm1432, %v1468, %v1469
        %v1471 = vrot.slane %v1391, 1
        %v1472 = vsel %vm1432, %v1469, %v1471
        %v1473 = vrot.slane %v1376, 1
        %v1474 = vrot.slane %v1298, 1
        %v1475 = vsel %vm1432, %v1473, %v1474
        %v1476 = vrot.slane %v1392, 1
        %v1477 = vsel %vm1432, %v1474, %v1476
        %v1478 = vrot.slane %v1377, 1
        %v1479 = vrot.slane %v1301, 1
        %v1480 = vsel %vm1432, %v1478, %v1479
        %v1481 = vrot.slane %v1393, 1
        %v1482 = vsel %vm1432, %v1479, %v1481
        %v1483 = vrot.slane %v1378, 1
        %v1484 = vrot.slane %v1304, 1
        %v1485 = vsel %vm1432, %v1483, %v1484
        %v1486 = vrot.slane %v1394, 1
        %v1487 = vsel %vm1432, %v1484, %v1486
        %v1488 = vrot.slane %v1379, 1
        %v1489 = vrot.slane %v1307, 1
        %v1490 = vsel %vm1432, %v1488, %v1489
        %v1491 = vrot.slane %v1395, 1
        %v1492 = vsel %vm1432, %v1489, %v1491
        %v1493 = vrot.slane %v1380, 1
        %v1494 = vrot.slane %v1310, 1
        %v1495 = vsel %vm1432, %v1493, %v1494
        %v1496 = vrot.slane %v1396, 1
        %v1497 = vsel %vm1432, %v1494, %v1496
        %v1498 = vrot.slane %v1381, 1
        %v1499 = vrot.slane %v1313, 1
        %v1500 = vsel %vm1432, %v1498, %v1499
        %v1501 = vrot.slane %v1397, 1
        %v1502 = vsel %vm1432, %v1499, %v1501
        %v1503 = vrot.slane %v1382, 1
        %v1504 = vrot.slane %v1316, 1
        %v1505 = vsel %vm1432, %v1503, %v1504
        %v1506 = vrot.slane %v1398, 1
        %v1507 = vsel %vm1432, %v1504, %v1506
        %v1508 = vrot.slane %v1383, 1
        %v1509 = vrot.slane %v1319, 1
        %v1510 = vsel %vm1432, %v1508, %v1509
        %v1511 = vrot.slane %v1399, 1
        %v1512 = vsel %vm1432, %v1509, %v1511
        %v1545 = vmax.f32 %v1368, %v1435
        %v1546 = vmax.f32 %v1274, %v1437
        %v1547 = vmax.f32 %v1369, %v1440
        %v1548 = vmax.f32 %v1277, %v1442
        %v1549 = vmax.f32 %v1370, %v1445
        %v1550 = vmax.f32 %v1280, %v1447
        %v1551 = vmax.f32 %v1371, %v1450
        %v1552 = vmax.f32 %v1283, %v1452
        %v1553 = vmax.f32 %v1372, %v1455
        %v1554 = vmax.f32 %v1286, %v1457
        %v1555 = vmax.f32 %v1373, %v1460
        %v1556 = vmax.f32 %v1289, %v1462
        %v1557 = vmax.f32 %v1374, %v1465
        %v1558 = vmax.f32 %v1292, %v1467
        %v1559 = vmax.f32 %v1375, %v1470
        %v1560 = vmax.f32 %v1295, %v1472
        %v1561 = vmax.f32 %v1376, %v1475
        %v1562 = vmax.f32 %v1298, %v1477
        %v1563 = vmax.f32 %v1377, %v1480
        %v1564 = vmax.f32 %v1301, %v1482
        %v1565 = vmax.f32 %v1378, %v1485
        %v1566 = vmax.f32 %v1304, %v1487
        %v1567 = vmax.f32 %v1379, %v1490
        %v1568 = vmax.f32 %v1307, %v1492
        %v1569 = vmax.f32 %v1380, %v1495
        %v1570 = vmax.f32 %v1310, %v1497
        %v1571 = vmax.f32 %v1381, %v1500
        %v1572 = vmax.f32 %v1313, %v1502
        %v1573 = vmax.f32 %v1382, %v1505
        %v1574 = vmax.f32 %v1316, %v1507
        %v1575 = vmax.f32 %v1383, %v1510
        %v1576 = vmax.f32 %v1319, %v1512
        %vm1577 = vcmask 1045504
        %v1578 = vrot.slane %v1368, 2
        %v1579 = vrot.slane %v1274, 2
        %v1580 = vsel %vm1577, %v1578, %v1579
        %v1581 = vrot.slane %v1384, 2
        %v1582 = vsel %vm1577, %v1579, %v1581
        %v1583 = vrot.slane %v1369, 2
        %v1584 = vrot.slane %v1277, 2
        %v1585 = vsel %vm1577, %v1583, %v1584
        %v1586 = vrot.slane %v1385, 2
        %v1587 = vsel %vm1577, %v1584, %v1586
        %v1588 = vrot.slane %v1370, 2
        %v1589 = vrot.slane %v1280, 2
        %v1590 = vsel %vm1577, %v1588, %v1589
        %v1591 = vrot.slane %v1386, 2
        %v1592 = vsel %vm1577, %v1589, %v1591
        %v1593 = vrot.slane %v1371, 2
        %v1594 = vrot.slane %v1283, 2
        %v1595 = vsel %vm1577, %v1593, %v1594
        %v1596 = vrot.slane %v1387, 2
        %v1597 = vsel %vm1577, %v1594, %v1596
        %v1598 = vrot.slane %v1372, 2
        %v1599 = vrot.slane %v1286, 2
        %v1600 = vsel %vm1577, %v1598, %v1599
        %v1601 = vrot.slane %v1388, 2
        %v1602 = vsel %vm1577, %v1599, %v1601
        %v1603 = vrot.slane %v1373, 2
        %v1604 = vrot.slane %v1289, 2
        %v1605 = vsel %vm1577, %v1603, %v1604
        %v1606 = vrot.slane %v1389, 2
        %v1607 = vsel %vm1577, %v1604, %v1606
        %v1608 = vrot.slane %v1374, 2
        %v1609 = vrot.slane %v1292, 2
        %v1610 = vsel %vm1577, %v1608, %v1609
        %v1611 = vrot.slane %v1390, 2
        %v1612 = vsel %vm1577, %v1609, %v1611
        %v1613 = vrot.slane %v1375, 2
        %v1614 = vrot.slane %v1295, 2
        %v1615 = vsel %vm1577, %v1613, %v1614
        %v1616 = vrot.slane %v1391, 2
        %v1617 = vsel %vm1577, %v1614, %v1616
        %v1618 = vrot.slane %v1376, 2
        %v1619 = vrot.slane %v1298, 2
        %v1620 = vsel %vm1577, %v1618, %v1619
        %v1621 = vrot.slane %v1392, 2
        %v1622 = vsel %vm1577, %v1619, %v1621
        %v1623 = vrot.slane %v1377, 2
        %v1624 = vrot.slane %v1301, 2
        %v1625 = vsel %vm1577, %v1623, %v1624
        %v1626 = vrot.slane %v1393, 2
        %v1627 = vsel %vm1577, %v1624, %v1626
        %v1628 = vrot.slane %v1378, 2
        %v1629 = vrot.slane %v1304, 2
        %v1630 = vsel %vm1577, %v1628, %v1629
        %v1631 = vrot.slane %v1394, 2
        %v1632 = vsel %vm1577, %v1629, %v1631
        %v1633 = vrot.slane %v1379, 2
        %v1634 = vrot.slane %v1307, 2
        %v1635 = vsel %vm1577, %v1633, %v1634
        %v1636 = vrot.slane %v1395, 2
        %v1637 = vsel %vm1577, %v1634, %v1636
        %v1638 = vrot.slane %v1380, 2
        %v1639 = vrot.slane %v1310, 2
        %v1640 = vsel %vm1577, %v1638, %v1639
        %v1641 = vrot.slane %v1396, 2
        %v1642 = vsel %vm1577, %v1639, %v1641
        %v1643 = vrot.slane %v1381, 2
        %v1644 = vrot.slane %v1313, 2
        %v1645 = vsel %vm1577, %v1643, %v1644
        %v1646 = vrot.slane %v1397, 2
        %v1647 = vsel %vm1577, %v1644, %v1646
        %v1648 = vrot.slane %v1382, 2
        %v1649 = vrot.slane %v1316, 2
        %v1650 = vsel %vm1577, %v1648, %v1649
        %v1651 = vrot.slane %v1398, 2
        %v1652 = vsel %vm1577, %v1649, %v1651
        %v1653 = vrot.slane %v1383, 2
        %v1654 = vrot.slane %v1319, 2
        %v1655 = vsel %vm1577, %v1653, %v1654
        %v1656 = vrot.slane %v1399, 2
        %v1657 = vsel %vm1577, %v1654, %v1656
        %v1690 = vmax.f32 %v1545, %v1580
        %v1691 = vmax.f32 %v1546, %v1582
        %v1692 = vmax.f32 %v1547, %v1585
        %v1693 = vmax.f32 %v1548, %v1587
        %v1694 = vmax.f32 %v1549, %v1590
        %v1695 = vmax.f32 %v1550, %v1592
        %v1696 = vmax.f32 %v1551, %v1595
        %v1697 = vmax.f32 %v1552, %v1597
        %v1698 = vmax.f32 %v1553, %v1600
        %v1699 = vmax.f32 %v1554, %v1602
        %v1700 = vmax.f32 %v1555, %v1605
        %v1701 = vmax.f32 %v1556, %v1607
        %v1702 = vmax.f32 %v1557, %v1610
        %v1703 = vmax.f32 %v1558, %v1612
        %v1704 = vmax.f32 %v1559, %v1615
        %v1705 = vmax.f32 %v1560, %v1617
        %v1706 = vmax.f32 %v1561, %v1620
        %v1707 = vmax.f32 %v1562, %v1622
        %v1708 = vmax.f32 %v1563, %v1625
        %v1709 = vmax.f32 %v1564, %v1627
        %v1710 = vmax.f32 %v1565, %v1630
        %v1711 = vmax.f32 %v1566, %v1632
        %v1712 = vmax.f32 %v1567, %v1635
        %v1713 = vmax.f32 %v1568, %v1637
        %v1714 = vmax.f32 %v1569, %v1640
        %v1715 = vmax.f32 %v1570, %v1642
        %v1716 = vmax.f32 %v1571, %v1645
        %v1717 = vmax.f32 %v1572, %v1647
        %v1718 = vmax.f32 %v1573, %v1650
        %v1719 = vmax.f32 %v1574, %v1652
        %v1720 = vmax.f32 %v1575, %v1655
        %v1721 = vmax.f32 %v1576, %v1657
        %vm1722 = vcmask 1044480
        %v1723 = vrot.slane %v1368, 3
        %v1724 = vrot.slane %v1274, 3
        %v1725 = vsel %vm1722, %v1723, %v1724
        %v1726 = vrot.slane %v1384, 3
        %v1727 = vsel %vm1722, %v1724, %v1726
        %v1728 = vrot.slane %v1369, 3
        %v1729 = vrot.slane %v1277, 3
        %v1730 = vsel %vm1722, %v1728, %v1729
        %v1731 = vrot.slane %v1385, 3
        %v1732 = vsel %vm1722, %v1729, %v1731
        %v1733 = vrot.slane %v1370, 3
        %v1734 = vrot.slane %v1280, 3
        %v1735 = vsel %vm1722, %v1733, %v1734
        %v1736 = vrot.slane %v1386, 3
        %v1737 = vsel %vm1722, %v1734, %v1736
        %v1738 = vrot.slane %v1371, 3
        %v1739 = vrot.slane %v1283, 3
        %v1740 = vsel %vm1722, %v1738, %v1739
        %v1741 = vrot.slane %v1387, 3
        %v1742 = vsel %vm1722, %v1739, %v1741
        %v1743 = vrot.slane %v1372, 3
        %v1744 = vrot.slane %v1286, 3
        %v1745 = vsel %vm1722, %v1743, %v1744
        %v1746 = vrot.slane %v1388, 3
        %v1747 = vsel %vm1722, %v1744, %v1746
        %v1748 = vrot.slane %v1373, 3
        %v1749 = vrot.slane %v1289, 3
        %v1750 = vsel %vm1722, %v1748, %v1749
        %v1751 = vrot.slane %v1389, 3
        %v1752 = vsel %vm1722, %v1749, %v1751
        %v1753 = vrot.slane %v1374, 3
        %v1754 = vrot.slane %v1292, 3
        %v1755 = vsel %vm1722, %v1753, %v1754
        %v1756 = vrot.slane %v1390, 3
        %v1757 = vsel %vm1722, %v1754, %v1756
        %v1758 = vrot.slane %v1375, 3
        %v1759 = vrot.slane %v1295, 3
        %v1760 = vsel %vm1722, %v1758, %v1759
        %v1761 = vrot.slane %v1391, 3
        %v1762 = vsel %vm1722, %v1759, %v1761
        %v1763 = vrot.slane %v1376, 3
        %v1764 = vrot.slane %v1298, 3
        %v1765 = vsel %vm1722, %v1763, %v1764
        %v1766 = vrot.slane %v1392, 3
        %v1767 = vsel %vm1722, %v1764, %v1766
        %v1768 = vrot.slane %v1377, 3
        %v1769 = vrot.slane %v1301, 3
        %v1770 = vsel %vm1722, %v1768, %v1769
        %v1771 = vrot.slane %v1393, 3
        %v1772 = vsel %vm1722, %v1769, %v1771
        %v1773 = vrot.slane %v1378, 3
        %v1774 = vrot.slane %v1304, 3
        %v1775 = vsel %vm1722, %v1773, %v1774
        %v1776 = vrot.slane %v1394, 3
        %v1777 = vsel %vm1722, %v1774, %v1776
        %v1778 = vrot.slane %v1379, 3
        %v1779 = vrot.slane %v1307, 3
        %v1780 = vsel %vm1722, %v1778, %v1779
        %v1781 = vrot.slane %v1395, 3
        %v1782 = vsel %vm1722, %v1779, %v1781
        %v1783 = vrot.slane %v1380, 3
        %v1784 = vrot.slane %v1310, 3
        %v1785 = vsel %vm1722, %v1783, %v1784
        %v1786 = vrot.slane %v1396, 3
        %v1787 = vsel %vm1722, %v1784, %v1786
        %v1788 = vrot.slane %v1381, 3
        %v1789 = vrot.slane %v1313, 3
        %v1790 = vsel %vm1722, %v1788, %v1789
        %v1791 = vrot.slane %v1397, 3
        %v1792 = vsel %vm1722, %v1789, %v1791
        %v1793 = vrot.slane %v1382, 3
        %v1794 = vrot.slane %v1316, 3
        %v1795 = vsel %vm1722, %v1793, %v1794
        %v1796 = vrot.slane %v1398, 3
        %v1797 = vsel %vm1722, %v1794, %v1796
        %v1798 = vrot.slane %v1383, 3
        %v1799 = vrot.slane %v1319, 3
        %v1800 = vsel %vm1722, %v1798, %v1799
        %v1801 = vrot.slane %v1399, 3
        %v1802 = vsel %vm1722, %v1799, %v1801
        %v1835 = vmax.f32 %v1690, %v1725
        %v1836 = vmax.f32 %v1691, %v1727
        %v1837 = vmax.f32 %v1692, %v1730
        %v1838 = vmax.f32 %v1693, %v1732
        %v1839 = vmax.f32 %v1694, %v1735
        %v1840 = vmax.f32 %v1695, %v1737
        %v1841 = vmax.f32 %v1696, %v1740
        %v1842 = vmax.f32 %v1697, %v1742
        %v1843 = vmax.f32 %v1698, %v1745
        %v1844 = vmax.f32 %v1699, %v1747
        %v1845 = vmax.f32 %v1700, %v1750
        %v1846 = vmax.f32 %v1701, %v1752
        %v1847 = vmax.f32 %v1702, %v1755
        %v1848 = vmax.f32 %v1703, %v1757
        %v1849 = vmax.f32 %v1704, %v1760
        %v1850 = vmax.f32 %v1705, %v1762
        %v1851 = vmax.f32 %v1706, %v1765
        %v1852 = vmax.f32 %v1707, %v1767
        %v1853 = vmax.f32 %v1708, %v1770
        %v1854 = vmax.f32 %v1709, %v1772
        %v1855 = vmax.f32 %v1710, %v1775
        %v1856 = vmax.f32 %v1711, %v1777
        %v1857 = vmax.f32 %v1712, %v1780
        %v1858 = vmax.f32 %v1713, %v1782
        %v1859 = vmax.f32 %v1714, %v1785
        %v1860 = vmax.f32 %v1715, %v1787
        %v1861 = vmax.f32 %v1716, %v1790
        %v1862 = vmax.f32 %v1717, %v1792
        %v1863 = vmax.f32 %v1718, %v1795
        %v1864 = vmax.f32 %v1719, %v1797
        %v1865 = vmax.f32 %v1720, %v1800
        %v1866 = vmax.f32 %v1721, %v1802
        %vm1867 = vcmask 1043456
        %v1868 = vrot.slane %v1368, 4
        %v1869 = vrot.slane %v1274, 4
        %v1870 = vsel %vm1867, %v1868, %v1869
        %v1871 = vrot.slane %v1384, 4
        %v1872 = vsel %vm1867, %v1869, %v1871
        %v1873 = vrot.slane %v1369, 4
        %v1874 = vrot.slane %v1277, 4
        %v1875 = vsel %vm1867, %v1873, %v1874
        %v1876 = vrot.slane %v1385, 4
        %v1877 = vsel %vm1867, %v1874, %v1876
        %v1878 = vrot.slane %v1370, 4
        %v1879 = vrot.slane %v1280, 4
        %v1880 = vsel %vm1867, %v1878, %v1879
        %v1881 = vrot.slane %v1386, 4
        %v1882 = vsel %vm1867, %v1879, %v1881
        %v1883 = vrot.slane %v1371, 4
        %v1884 = vrot.slane %v1283, 4
        %v1885 = vsel %vm1867, %v1883, %v1884
        %v1886 = vrot.slane %v1387, 4
        %v1887 = vsel %vm1867, %v1884, %v1886
        %v1888 = vrot.slane %v1372, 4
        %v1889 = vrot.slane %v1286, 4
        %v1890 = vsel %vm1867, %v1888, %v1889
        %v1891 = vrot.slane %v1388, 4
        %v1892 = vsel %vm1867, %v1889, %v1891
        %v1893 = vrot.slane %v1373, 4
        %v1894 = vrot.slane %v1289, 4
        %v1895 = vsel %vm1867, %v1893, %v1894
        %v1896 = vrot.slane %v1389, 4
        %v1897 = vsel %vm1867, %v1894, %v1896
        %v1898 = vrot.slane %v1374, 4
        %v1899 = vrot.slane %v1292, 4
        %v1900 = vsel %vm1867, %v1898, %v1899
        %v1901 = vrot.slane %v1390, 4
        %v1902 = vsel %vm1867, %v1899, %v1901
        %v1903 = vrot.slane %v1375, 4
        %v1904 = vrot.slane %v1295, 4
        %v1905 = vsel %vm1867, %v1903, %v1904
        %v1906 = vrot.slane %v1391, 4
        %v1907 = vsel %vm1867, %v1904, %v1906
        %v1908 = vrot.slane %v1376, 4
        %v1909 = vrot.slane %v1298, 4
        %v1910 = vsel %vm1867, %v1908, %v1909
        %v1911 = vrot.slane %v1392, 4
        %v1912 = vsel %vm1867, %v1909, %v1911
        %v1913 = vrot.slane %v1377, 4
        %v1914 = vrot.slane %v1301, 4
        %v1915 = vsel %vm1867, %v1913, %v1914
        %v1916 = vrot.slane %v1393, 4
        %v1917 = vsel %vm1867, %v1914, %v1916
        %v1918 = vrot.slane %v1378, 4
        %v1919 = vrot.slane %v1304, 4
        %v1920 = vsel %vm1867, %v1918, %v1919
        %v1921 = vrot.slane %v1394, 4
        %v1922 = vsel %vm1867, %v1919, %v1921
        %v1923 = vrot.slane %v1379, 4
        %v1924 = vrot.slane %v1307, 4
        %v1925 = vsel %vm1867, %v1923, %v1924
        %v1926 = vrot.slane %v1395, 4
        %v1927 = vsel %vm1867, %v1924, %v1926
        %v1928 = vrot.slane %v1380, 4
        %v1929 = vrot.slane %v1310, 4
        %v1930 = vsel %vm1867, %v1928, %v1929
        %v1931 = vrot.slane %v1396, 4
        %v1932 = vsel %vm1867, %v1929, %v1931
        %v1933 = vrot.slane %v1381, 4
        %v1934 = vrot.slane %v1313, 4
        %v1935 = vsel %vm1867, %v1933, %v1934
        %v1936 = vrot.slane %v1397, 4
        %v1937 = vsel %vm1867, %v1934, %v1936
        %v1938 = vrot.slane %v1382, 4
        %v1939 = vrot.slane %v1316, 4
        %v1940 = vsel %vm1867, %v1938, %v1939
        %v1941 = vrot.slane %v1398, 4
        %v1942 = vsel %vm1867, %v1939, %v1941
        %v1943 = vrot.slane %v1383, 4
        %v1944 = vrot.slane %v1319, 4
        %v1945 = vsel %vm1867, %v1943, %v1944
        %v1946 = vrot.slane %v1399, 4
        %v1947 = vsel %vm1867, %v1944, %v1946
        %v1980 = vmax.f32 %v1835, %v1870
        %v1981 = vmax.f32 %v1836, %v1872
        %v1982 = vmax.f32 %v1837, %v1875
        %v1983 = vmax.f32 %v1838, %v1877
        %v1984 = vmax.f32 %v1839, %v1880
        %v1985 = vmax.f32 %v1840, %v1882
        %v1986 = vmax.f32 %v1841, %v1885
        %v1987 = vmax.f32 %v1842, %v1887
        %v1988 = vmax.f32 %v1843, %v1890
        %v1989 = vmax.f32 %v1844, %v1892
        %v1990 = vmax.f32 %v1845, %v1895
        %v1991 = vmax.f32 %v1846, %v1897
        %v1992 = vmax.f32 %v1847, %v1900
        %v1993 = vmax.f32 %v1848, %v1902
        %v1994 = vmax.f32 %v1849, %v1905
        %v1995 = vmax.f32 %v1850, %v1907
        %v1996 = vmax.f32 %v1851, %v1910
        %v1997 = vmax.f32 %v1852, %v1912
        %v1998 = vmax.f32 %v1853, %v1915
        %v1999 = vmax.f32 %v1854, %v1917
        %v2000 = vmax.f32 %v1855, %v1920
        %v2001 = vmax.f32 %v1856, %v1922
        %v2002 = vmax.f32 %v1857, %v1925
        %v2003 = vmax.f32 %v1858, %v1927
        %v2004 = vmax.f32 %v1859, %v1930
        %v2005 = vmax.f32 %v1860, %v1932
        %v2006 = vmax.f32 %v1861, %v1935
        %v2007 = vmax.f32 %v1862, %v1937
        %v2008 = vmax.f32 %v1863, %v1940
        %v2009 = vmax.f32 %v1864, %v1942
        %v2010 = vmax.f32 %v1865, %v1945
        %v2011 = vmax.f32 %v1866, %v1947
        %v2012 = vmax.f32 %v1980, %v1982
        %v2013 = vmax.f32 %v1981, %v1983
        %v2014 = vmax.f32 %v1982, %v1984
        %v2015 = vmax.f32 %v1983, %v1985
        %v2016 = vmax.f32 %v1984, %v1986
        %v2017 = vmax.f32 %v1985, %v1987
        %v2018 = vmax.f32 %v1986, %v1988
        %v2019 = vmax.f32 %v1987, %v1989
        %v2020 = vmax.f32 %v1988, %v1990
        %v2021 = vmax.f32 %v1989, %v1991
        %v2022 = vmax.f32 %v1990, %v1992
        %v2023 = vmax.f32 %v1991, %v1993
        %v2024 = vmax.f32 %v1992, %v1994
        %v2025 = vmax.f32 %v1993, %v1995
        %v2026 = vmax.f32 %v1994, %v1996
        %v2027 = vmax.f32 %v1995, %v1997
        %v2028 = vmax.f32 %v1996, %v1998
        %v2029 = vmax.f32 %v1997, %v1999
        %v2030 = vmax.f32 %v1998, %v2000
        %v2031 = vmax.f32 %v1999, %v2001
        %v2032 = vmax.f32 %v2000, %v2002
        %v2033 = vmax.f32 %v2001, %v2003
        %v2034 = vmax.f32 %v2002, %v2004
        %v2035 = vmax.f32 %v2003, %v2005
        %v2036 = vmax.f32 %v2004, %v2006
        %v2037 = vmax.f32 %v2005, %v2007
        %v2038 = vmax.f32 %v2006, %v2008
        %v2039 = vmax.f32 %v2007, %v2009
        %v2040 = vmax.f32 %v2012, %v1984
        %v2041 = vmax.f32 %v2013, %v1985
        %v2042 = vmax.f32 %v2014, %v1986
        %v2043 = vmax.f32 %v2015, %v1987
        %v2044 = vmax.f32 %v2016, %v1988
        %v2045 = vmax.f32 %v2017, %v1989
        %v2046 = vmax.f32 %v2018, %v1990
        %v2047 = vmax.f32 %v2019, %v1991
        %v2048 = vmax.f32 %v2020, %v1992
        %v2049 = vmax.f32 %v2021, %v1993
        %v2050 = vmax.f32 %v2022, %v1994
        %v2051 = vmax.f32 %v2023, %v1995
        %v2052 = vmax.f32 %v2024, %v1996
        %v2053 = vmax.f32 %v2025, %v1997
        %v2054 = vmax.f32 %v2026, %v1998
        %v2055 = vmax.f32 %v2027, %v1999
        %v2056 = vmax.f32 %v2028, %v2000
        %v2057 = vmax.f32 %v2029, %v2001
        %v2058 = vmax.f32 %v2030, %v2002
        %v2059 = vmax.f32 %v2031, %v2003
        %v2060 = vmax.f32 %v2032, %v2004
        %v2061 = vmax.f32 %v2033, %v2005
        %v2062 = vmax.f32 %v2034, %v2006
        %v2063 = vmax.f32 %v2035, %v2007
        %v2064 = vmax.f32 %v2036, %v2008
        %v2065 = vmax.f32 %v2037, %v2009
        %v2066 = vmax.f32 %v2038, %v2010
        %v2067 = vmax.f32 %v2039, %v2011
        %v2068 = vmax.f32 %v2040, %v1986
        %v2069 = vmax.f32 %v2041, %v1987
        %v2070 = vmax.f32 %v2042, %v1988
        %v2071 = vmax.f32 %v2043, %v1989
        %v2072 = vmax.f32 %v2044, %v1990
        %v2073 = vmax.f32 %v2045, %v1991
        %v2074 = vmax.f32 %v2046, %v1992
        %v2075 = vmax.f32 %v2047, %v1993
        %v2076 = vmax.f32 %v2048, %v1994
        %v2077 = vmax.f32 %v2049, %v1995
        %v2078 = vmax.f32 %v2050, %v1996
        %v2079 = vmax.f32 %v2051, %v1997
        %v2080 = vmax.f32 %v2052, %v1998
        %v2081 = vmax.f32 %v2053, %v1999
        %v2082 = vmax.f32 %v2054, %v2000
        %v2083 = vmax.f32 %v2055, %v2001
        %v2084 = vmax.f32 %v2056, %v2002
        %v2085 = vmax.f32 %v2057, %v2003
        %v2086 = vmax.f32 %v2058, %v2004
        %v2087 = vmax.f32 %v2059, %v2005
        %v2088 = vmax.f32 %v2060, %v2006
        %v2089 = vmax.f32 %v2061, %v2007
        %v2090 = vmax.f32 %v2062, %v2008
        %v2091 = vmax.f32 %v2063, %v2009
        %v2092 = vmax.f32 %v2064, %v2010
        %v2093 = vmax.f32 %v2065, %v2011
        %v2094 = vmax.f32 %v2068, %v1988
        %v2095 = vmax.f32 %v2069, %v1989
        %v2096 = vmax.f32 %v2070, %v1990
        %v2097 = vmax.f32 %v2071, %v1991
        %v2098 = vmax.f32 %v2072, %v1992
        %v2099 = vmax.f32 %v2073, %v1993
        %v2100 = vmax.f32 %v2074, %v1994
        %v2101 = vmax.f32 %v2075, %v1995
        %v2102 = vmax.f32 %v2076, %v1996
        %v2103 = vmax.f32 %v2077, %v1997
        %v2104 = vmax.f32 %v2078, %v1998
        %v2105 = vmax.f32 %v2079, %v1999
        %v2106 = vmax.f32 %v2080, %v2000
        %v2107 = vmax.f32 %v2081, %v2001
        %v2108 = vmax.f32 %v2082, %v2002
        %v2109 = vmax.f32 %v2083, %v2003
        %v2110 = vmax.f32 %v2084, %v2004
        %v2111 = vmax.f32 %v2085, %v2005
        %v2112 = vmax.f32 %v2086, %v2006
        %v2113 = vmax.f32 %v2087, %v2007
        %v2114 = vmax.f32 %v2088, %v2008
        %v2115 = vmax.f32 %v2089, %v2009
        %v2116 = vmax.f32 %v2090, %v2010
        %v2117 = vmax.f32 %v2091, %v2011
        %v2150 = vrot.slane %v2040, 6
        %v2151 = vrot.slane %v2041, 6
        %v2152 = vsel %vm1271, %v2150, %v2151
        %v2153 = vrot.slane %v2068, 6
        %v2154 = vrot.slane %v2069, 6
        %v2155 = vsel %vm1271, %v2153, %v2154
        %v2156 = vrot.slane %v2094, 6
        %v2157 = vrot.slane %v2095, 6
        %v2158 = vsel %vm1271, %v2156, %v2157
        %v2159 = vrot.slane %v2096, 6
        %v2160 = vrot.slane %v2097, 6
        %v2161 = vsel %vm1271, %v2159, %v2160
        %v2162 = vrot.slane %v2098, 6
        %v2163 = vrot.slane %v2099, 6
        %v2164 = vsel %vm1271, %v2162, %v2163
        %v2165 = vrot.slane %v2100, 6
        %v2166 = vrot.slane %v2101, 6
        %v2167 = vsel %vm1271, %v2165, %v2166
        %v2168 = vrot.slane %v2102, 6
        %v2169 = vrot.slane %v2103, 6
        %v2170 = vsel %vm1271, %v2168, %v2169
        %v2171 = vrot.slane %v2104, 6
        %v2172 = vrot.slane %v2105, 6
        %v2173 = vsel %vm1271, %v2171, %v2172
        %v2174 = vrot.slane %v2106, 6
        %v2175 = vrot.slane %v2107, 6
        %v2176 = vsel %vm1271, %v2174, %v2175
        %v2177 = vrot.slane %v2108, 6
        %v2178 = vrot.slane %v2109, 6
        %v2179 = vsel %vm1271, %v2177, %v2178
        %v2180 = vrot.slane %v2110, 6
        %v2181 = vrot.slane %v2111, 6
        %v2182 = vsel %vm1271, %v2180, %v2181
        %v2183 = vrot.slane %v2112, 6
        %v2184 = vrot.slane %v2113, 6
        %v2185 = vsel %vm1271, %v2183, %v2184
        %v2186 = vrot.slane %v2114, 6
        %v2187 = vrot.slane %v2115, 6
        %v2188 = vsel %vm1271, %v2186, %v2187
        %v2189 = vrot.slane %v2116, 6
        %v2190 = vrot.slane %v2117, 6
        %v2191 = vsel %vm1271, %v2189, %v2190
        %v2192 = vrot.slane %v2092, 6
        %v2193 = vrot.slane %v2093, 6
        %v2194 = vsel %vm1271, %v2192, %v2193
        %v2195 = vrot.slane %v2066, 6
        %v2196 = vrot.slane %v2067, 6
        %v2197 = vsel %vm1271, %v2195, %v2196
        %v2246 = vsel %vm1271, -inf, %v2150
        %v2247 = vsel %vm1271, -inf, %v2153
        %v2248 = vsel %vm1271, -inf, %v2156
        %v2249 = vsel %vm1271, -inf, %v2159
        %v2250 = vsel %vm1271, -inf, %v2162
        %v2251 = vsel %vm1271, -inf, %v2165
        %v2252 = vsel %vm1271, -inf, %v2168
        %v2253 = vsel %vm1271, -inf, %v2171
        %v2254 = vsel %vm1271, -inf, %v2174
        %v2255 = vsel %vm1271, -inf, %v2177
        %v2256 = vsel %vm1271, -inf, %v2180
        %v2257 = vsel %vm1271, -inf, %v2183
        %v2258 = vsel %vm1271, -inf, %v2186
        %v2259 = vsel %vm1271, -inf, %v2189
        %v2260 = vsel %vm1271, -inf, %v2192
        %v2261 = vsel %vm1271, -inf, %v2195
        %v2262 = vsel %vm1271, %v2151, -inf
        %v2263 = vsel %vm1271, %v2154, -inf
        %v2264 = vsel %vm1271, %v2157, -inf
        %v2265 = vsel %vm1271, %v2160, -inf
        %v2266 = vsel %vm1271, %v2163, -inf
        %v2267 = vsel %vm1271, %v2166, -inf
        %v2268 = vsel %vm1271, %v2169, -inf
        %v2269 = vsel %vm1271, %v2172, -inf
        %v2270 = vsel %vm1271, %v2175, -inf
        %v2271 = vsel %vm1271, %v2178, -inf
        %v2272 = vsel %vm1271, %v2181, -inf
        %v2273 = vsel %vm1271, %v2184, -inf
        %v2274 = vsel %vm1271, %v2187, -inf
        %v2275 = vsel %vm1271, %v2190, -inf
        %v2276 = vsel %vm1271, %v2193, -inf
        %v2277 = vsel %vm1271, %v2196, -inf
        %v2310 = vrot.slane %v2246, 1
        %v2311 = vrot.slane %v2152, 1
        %v2312 = vsel %vm1432, %v2310, %v2311
        %v2313 = vrot.slane %v2262, 1
        %v2314 = vsel %vm1432, %v2311, %v2313
        %v2315 = vrot.slane %v2247, 1
        %v2316 = vrot.slane %v2155, 1
        %v2317 = vsel %vm1432, %v2315, %v2316
        %v2318 = vrot.slane %v2263, 1
        %v2319 = vsel %vm1432, %v2316, %v2318
        %v2320 = vrot.slane %v2248, 1
        %v2321 = vrot.slane %v2158, 1
        %v2322 = vsel %vm1432, %v2320, %v2321
        %v2323 = vrot.slane %v2264, 1
        %v2324 = vsel %vm1432, %v2321, %v2323
        %v2325 = vrot.slane %v2249, 1
        %v2326 = vrot.slane %v2161, 1
        %v2327 = vsel %vm1432, %v2325, %v2326
        %v2328 = vrot.slane %v2265, 1
        %v2329 = vsel %vm1432, %v2326, %v2328
        %v2330 = vrot.slane %v2250, 1
        %v2331 = vrot.slane %v2164, 1
        %v2332 = vsel %vm1432, %v2330, %v2331
        %v2333 = vrot.slane %v2266, 1
        %v2334 = vsel %vm1432, %v2331, %v2333
        %v2335 = vrot.slane %v2251, 1
        %v2336 = vrot.slane %v2167, 1
        %v2337 = vsel %vm1432, %v2335, %v2336
        %v2338 = vrot.slane %v2267, 1
        %v2339 = vsel %vm1432, %v2336, %v2338
        %v2340 = vrot.slane %v2252, 1
        %v2341 = vrot.slane %v2170, 1
        %v2342 = vsel %vm1432, %v2340, %v2341
        %v2343 = vrot.slane %v2268, 1
        %v2344 = vsel %vm1432, %v2341, %v2343
        %v2345 = vrot.slane %v2253, 1
        %v2346 = vrot.slane %v2173, 1
        %v2347 = vsel %vm1432, %v2345, %v2346
        %v2348 = vrot.slane %v2269, 1
        %v2349 = vsel %vm1432, %v2346, %v2348
        %v2350 = vrot.slane %v2254, 1
        %v2351 = vrot.slane %v2176, 1
        %v2352 = vsel %vm1432, %v2350, %v2351
        %v2353 = vrot.slane %v2270, 1
        %v2354 = vsel %vm1432, %v2351, %v2353
        %v2355 = vrot.slane %v2255, 1
        %v2356 = vrot.slane %v2179, 1
        %v2357 = vsel %vm1432, %v2355, %v2356
        %v2358 = vrot.slane %v2271, 1
        %v2359 = vsel %vm1432, %v2356, %v2358
        %v2360 = vrot.slane %v2256, 1
        %v2361 = vrot.slane %v2182, 1
        %v2362 = vsel %vm1432, %v2360, %v2361
        %v2363 = vrot.slane %v2272, 1
        %v2364 = vsel %vm1432, %v2361, %v2363
        %v2365 = vrot.slane %v2257, 1
        %v2366 = vrot.slane %v2185, 1
        %v2367 = vsel %vm1432, %v2365, %v2366
        %v2368 = vrot.slane %v2273, 1
        %v2369 = vsel %vm1432, %v2366, %v2368
        %v2370 = vrot.slane %v2258, 1
        %v2371 = vrot.slane %v2188, 1
        %v2372 = vsel %vm1432, %v2370, %v2371
        %v2373 = vrot.slane %v2274, 1
        %v2374 = vsel %vm1432, %v2371, %v2373
        %v2375 = vrot.slane %v2259, 1
        %v2376 = vrot.slane %v2191, 1
        %v2377 = vsel %vm1432, %v2375, %v2376
        %v2378 = vrot.slane %v2275, 1
        %v2379 = vsel %vm1432, %v2376, %v2378
        %v2380 = vrot.slane %v2260, 1
        %v2381 = vrot.slane %v2194, 1
        %v2382 = vsel %vm1432, %v2380, %v2381
        %v2383 = vrot.slane %v2276, 1
        %v2384 = vsel %vm1432, %v2381, %v2383
        %v2385 = vrot.slane %v2261, 1
        %v2386 = vrot.slane %v2197, 1
        %v2387 = vsel %vm1432, %v2385, %v2386
        %v2388 = vrot.slane %v2277, 1
        %v2389 = vsel %vm1432, %v2386, %v2388
        %v2422 = vmax.f32 %v2246, %v2312
        %v2423 = vmax.f32 %v2152, %v2314
        %v2424 = vmax.f32 %v2247, %v2317
        %v2425 = vmax.f32 %v2155, %v2319
        %v2426 = vmax.f32 %v2248, %v2322
        %v2427 = vmax.f32 %v2158, %v2324
        %v2428 = vmax.f32 %v2249, %v2327
        %v2429 = vmax.f32 %v2161, %v2329
        %v2430 = vmax.f32 %v2250, %v2332
        %v2431 = vmax.f32 %v2164, %v2334
        %v2432 = vmax.f32 %v2251, %v2337
        %v2433 = vmax.f32 %v2167, %v2339
        %v2434 = vmax.f32 %v2252, %v2342
        %v2435 = vmax.f32 %v2170, %v2344
        %v2436 = vmax.f32 %v2253, %v2347
        %v2437 = vmax.f32 %v2173, %v2349
        %v2438 = vmax.f32 %v2254, %v2352
        %v2439 = vmax.f32 %v2176, %v2354
        %v2440 = vmax.f32 %v2255, %v2357
        %v2441 = vmax.f32 %v2179, %v2359
        %v2442 = vmax.f32 %v2256, %v2362
        %v2443 = vmax.f32 %v2182, %v2364
        %v2444 = vmax.f32 %v2257, %v2367
        %v2445 = vmax.f32 %v2185, %v2369
        %v2446 = vmax.f32 %v2258, %v2372
        %v2447 = vmax.f32 %v2188, %v2374
        %v2448 = vmax.f32 %v2259, %v2377
        %v2449 = vmax.f32 %v2191, %v2379
        %v2450 = vmax.f32 %v2260, %v2382
        %v2451 = vmax.f32 %v2194, %v2384
        %v2452 = vmax.f32 %v2261, %v2387
        %v2453 = vmax.f32 %v2197, %v2389
        %v2454 = vrot.slane %v2246, 2
        %v2455 = vrot.slane %v2152, 2
        %v2456 = vsel %vm1577, %v2454, %v2455
        %v2457 = vrot.slane %v2262, 2
        %v2458 = vsel %vm1577, %v2455, %v2457
        %v2459 = vrot.slane %v2247, 2
        %v2460 = vrot.slane %v2155, 2
        %v2461 = vsel %vm1577, %v2459, %v2460
        %v2462 = vrot.slane %v2263, 2
        %v2463 = vsel %vm1577, %v2460, %v2462
        %v2464 = vrot.slane %v2248, 2
        %v2465 = vrot.slane %v2158, 2
        %v2466 = vsel %vm1577, %v2464, %v2465
        %v2467 = vrot.slane %v2264, 2
        %v2468 = vsel %vm1577, %v2465, %v2467
        %v2469 = vrot.slane %v2249, 2
        %v2470 = vrot.slane %v2161, 2
        %v2471 = vsel %vm1577, %v2469, %v2470
        %v2472 = vrot.slane %v2265, 2
        %v2473 = vsel %vm1577, %v2470, %v2472
        %v2474 = vrot.slane %v2250, 2
        %v2475 = vrot.slane %v2164, 2
        %v2476 = vsel %vm1577, %v2474, %v2475
        %v2477 = vrot.slane %v2266, 2
        %v2478 = vsel %vm1577, %v2475, %v2477
        %v2479 = vrot.slane %v2251, 2
        %v2480 = vrot.slane %v2167, 2
        %v2481 = vsel %vm1577, %v2479, %v2480
        %v2482 = vrot.slane %v2267, 2
        %v2483 = vsel %vm1577, %v2480, %v2482
        %v2484 = vrot.slane %v2252, 2
        %v2485 = vrot.slane %v2170, 2
        %v2486 = vsel %vm1577, %v2484, %v2485
        %v2487 = vrot.slane %v2268, 2
        %v2488 = vsel %vm1577, %v2485, %v2487
        %v2489 = vrot.slane %v2253, 2
        %v2490 = vrot.slane %v2173, 2
        %v2491 = vsel %vm1577, %v2489, %v2490
        %v2492 = vrot.slane %v2269, 2
        %v2493 = vsel %vm1577, %v2490, %v2492
        %v2494 = vrot.slane %v2254, 2
        %v2495 = vrot.slane %v2176, 2
        %v2496 = vsel %vm1577, %v2494, %v2495
        %v2497 = vrot.slane %v2270, 2
        %v2498 = vsel %vm1577, %v2495, %v2497
        %v2499 = vrot.slane %v2255, 2
        %v2500 = vrot.slane %v2179, 2
        %v2501 = vsel %vm1577, %v2499, %v2500
        %v2502 = vrot.slane %v2271, 2
        %v2503 = vsel %vm1577, %v2500, %v2502
        %v2504 = vrot.slane %v2256, 2
        %v2505 = vrot.slane %v2182, 2
        %v2506 = vsel %vm1577, %v2504, %v2505
        %v2507 = vrot.slane %v2272, 2
        %v2508 = vsel %vm1577, %v2505, %v2507
        %v2509 = vrot.slane %v2257, 2
        %v2510 = vrot.slane %v2185, 2
        %v2511 = vsel %vm1577, %v2509, %v2510
        %v2512 = vrot.slane %v2273, 2
        %v2513 = vsel %vm1577, %v2510, %v2512
        %v2514 = vrot.slane %v2258, 2
        %v2515 = vrot.slane %v2188, 2
        %v2516 = vsel %vm1577, %v2514, %v2515
        %v2517 = vrot.slane %v2274, 2
        %v2518 = vsel %vm1577, %v2515, %v2517
        %v2519 = vrot.slane %v2259, 2
        %v2520 = vrot.slane %v2191, 2
        %v2521 = vsel %vm1577, %v2519, %v2520
        %v2522 = vrot.slane %v2275, 2
        %v2523 = vsel %vm1577, %v2520, %v2522
        %v2524 = vrot.slane %v2260, 2
        %v2525 = vrot.slane %v2194, 2
        %v2526 = vsel %vm1577, %v2524, %v2525
        %v2527 = vrot.slane %v2276, 2
        %v2528 = vsel %vm1577, %v2525, %v2527
        %v2529 = vrot.slane %v2261, 2
        %v2530 = vrot.slane %v2197, 2
        %v2531 = vsel %vm1577, %v2529, %v2530
        %v2532 = vrot.slane %v2277, 2
        %v2533 = vsel %vm1577, %v2530, %v2532
        %v2566 = vmax.f32 %v2422, %v2456
        %v2567 = vmax.f32 %v2423, %v2458
        %v2568 = vmax.f32 %v2424, %v2461
        %v2569 = vmax.f32 %v2425, %v2463
        %v2570 = vmax.f32 %v2426, %v2466
        %v2571 = vmax.f32 %v2427, %v2468
        %v2572 = vmax.f32 %v2428, %v2471
        %v2573 = vmax.f32 %v2429, %v2473
        %v2574 = vmax.f32 %v2430, %v2476
        %v2575 = vmax.f32 %v2431, %v2478
        %v2576 = vmax.f32 %v2432, %v2481
        %v2577 = vmax.f32 %v2433, %v2483
        %v2578 = vmax.f32 %v2434, %v2486
        %v2579 = vmax.f32 %v2435, %v2488
        %v2580 = vmax.f32 %v2436, %v2491
        %v2581 = vmax.f32 %v2437, %v2493
        %v2582 = vmax.f32 %v2438, %v2496
        %v2583 = vmax.f32 %v2439, %v2498
        %v2584 = vmax.f32 %v2440, %v2501
        %v2585 = vmax.f32 %v2441, %v2503
        %v2586 = vmax.f32 %v2442, %v2506
        %v2587 = vmax.f32 %v2443, %v2508
        %v2588 = vmax.f32 %v2444, %v2511
        %v2589 = vmax.f32 %v2445, %v2513
        %v2590 = vmax.f32 %v2446, %v2516
        %v2591 = vmax.f32 %v2447, %v2518
        %v2592 = vmax.f32 %v2448, %v2521
        %v2593 = vmax.f32 %v2449, %v2523
        %v2594 = vmax.f32 %v2450, %v2526
        %v2595 = vmax.f32 %v2451, %v2528
        %v2596 = vmax.f32 %v2452, %v2531
        %v2597 = vmax.f32 %v2453, %v2533
        %v2598 = vrot.slane %v2246, 3
        %v2599 = vrot.slane %v2152, 3
        %v2600 = vsel %vm1722, %v2598, %v2599
        %v2601 = vrot.slane %v2262, 3
        %v2602 = vsel %vm1722, %v2599, %v2601
        %v2603 = vrot.slane %v2247, 3
        %v2604 = vrot.slane %v2155, 3
        %v2605 = vsel %vm1722, %v2603, %v2604
        %v2606 = vrot.slane %v2263, 3
        %v2607 = vsel %vm1722, %v2604, %v2606
        %v2608 = vrot.slane %v2248, 3
        %v2609 = vrot.slane %v2158, 3
        %v2610 = vsel %vm1722, %v2608, %v2609
        %v2611 = vrot.slane %v2264, 3
        %v2612 = vsel %vm1722, %v2609, %v2611
        %v2613 = vrot.slane %v2249, 3
        %v2614 = vrot.slane %v2161, 3
        %v2615 = vsel %vm1722, %v2613, %v2614
        %v2616 = vrot.slane %v2265, 3
        %v2617 = vsel %vm1722, %v2614, %v2616
        %v2618 = vrot.slane %v2250, 3
        %v2619 = vrot.slane %v2164, 3
        %v2620 = vsel %vm1722, %v2618, %v2619
        %v2621 = vrot.slane %v2266, 3
        %v2622 = vsel %vm1722, %v2619, %v2621
        %v2623 = vrot.slane %v2251, 3
        %v2624 = vrot.slane %v2167, 3
        %v2625 = vsel %vm1722, %v2623, %v2624
        %v2626 = vrot.slane %v2267, 3
        %v2627 = vsel %vm1722, %v2624, %v2626
        %v2628 = vrot.slane %v2252, 3
        %v2629 = vrot.slane %v2170, 3
        %v2630 = vsel %vm1722, %v2628, %v2629
        %v2631 = vrot.slane %v2268, 3
        %v2632 = vsel %vm1722, %v2629, %v2631
        %v2633 = vrot.slane %v2253, 3
        %v2634 = vrot.slane %v2173, 3
        %v2635 = vsel %vm1722, %v2633, %v2634
        %v2636 = vrot.slane %v2269, 3
        %v2637 = vsel %vm1722, %v2634, %v2636
        %v2638 = vrot.slane %v2254, 3
        %v2639 = vrot.slane %v2176, 3
        %v2640 = vsel %vm1722, %v2638, %v2639
        %v2641 = vrot.slane %v2270, 3
        %v2642 = vsel %vm1722, %v2639, %v2641
        %v2643 = vrot.slane %v2255, 3
        %v2644 = vrot.slane %v2179, 3
        %v2645 = vsel %vm1722, %v2643, %v2644
        %v2646 = vrot.slane %v2271, 3
        %v2647 = vsel %vm1722, %v2644, %v2646
        %v2648 = vrot.slane %v2256, 3
        %v2649 = vrot.slane %v2182, 3
        %v2650 = vsel %vm1722, %v2648, %v2649
        %v2651 = vrot.slane %v2272, 3
        %v2652 = vsel %vm1722, %v2649, %v2651
        %v2653 = vrot.slane %v2257, 3
        %v2654 = vrot.slane %v2185, 3
        %v2655 = vsel %vm1722, %v2653, %v2654
        %v2656 = vrot.slane %v2273, 3
        %v2657 = vsel %vm1722, %v2654, %v2656
        %v2658 = vrot.slane %v2258, 3
        %v2659 = vrot.slane %v2188, 3
        %v2660 = vsel %vm1722, %v2658, %v2659
        %v2661 = vrot.slane %v2274, 3
        %v2662 = vsel %vm1722, %v2659, %v2661
        %v2663 = vrot.slane %v2259, 3
        %v2664 = vrot.slane %v2191, 3
        %v2665 = vsel %vm1722, %v2663, %v2664
        %v2666 = vrot.slane %v2275, 3
        %v2667 = vsel %vm1722, %v2664, %v2666
        %v2668 = vrot.slane %v2260, 3
        %v2669 = vrot.slane %v2194, 3
        %v2670 = vsel %vm1722, %v2668, %v2669
        %v2671 = vrot.slane %v2276, 3
        %v2672 = vsel %vm1722, %v2669, %v2671
        %v2673 = vrot.slane %v2261, 3
        %v2674 = vrot.slane %v2197, 3
        %v2675 = vsel %vm1722, %v2673, %v2674
        %v2676 = vrot.slane %v2277, 3
        %v2677 = vsel %vm1722, %v2674, %v2676
        %v2710 = vmax.f32 %v2566, %v2600
        %v2711 = vmax.f32 %v2567, %v2602
        %v2712 = vmax.f32 %v2568, %v2605
        %v2713 = vmax.f32 %v2569, %v2607
        %v2714 = vmax.f32 %v2570, %v2610
        %v2715 = vmax.f32 %v2571, %v2612
        %v2716 = vmax.f32 %v2572, %v2615
        %v2717 = vmax.f32 %v2573, %v2617
        %v2718 = vmax.f32 %v2574, %v2620
        %v2719 = vmax.f32 %v2575, %v2622
        %v2720 = vmax.f32 %v2576, %v2625
        %v2721 = vmax.f32 %v2577, %v2627
        %v2722 = vmax.f32 %v2578, %v2630
        %v2723 = vmax.f32 %v2579, %v2632
        %v2724 = vmax.f32 %v2580, %v2635
        %v2725 = vmax.f32 %v2581, %v2637
        %v2726 = vmax.f32 %v2582, %v2640
        %v2727 = vmax.f32 %v2583, %v2642
        %v2728 = vmax.f32 %v2584, %v2645
        %v2729 = vmax.f32 %v2585, %v2647
        %v2730 = vmax.f32 %v2586, %v2650
        %v2731 = vmax.f32 %v2587, %v2652
        %v2732 = vmax.f32 %v2588, %v2655
        %v2733 = vmax.f32 %v2589, %v2657
        %v2734 = vmax.f32 %v2590, %v2660
        %v2735 = vmax.f32 %v2591, %v2662
        %v2736 = vmax.f32 %v2592, %v2665
        %v2737 = vmax.f32 %v2593, %v2667
        %v2738 = vmax.f32 %v2594, %v2670
        %v2739 = vmax.f32 %v2595, %v2672
        %v2740 = vmax.f32 %v2596, %v2675
        %v2741 = vmax.f32 %v2597, %v2677
        %v2742 = vrot.slane %v2246, 4
        %v2743 = vrot.slane %v2152, 4
        %v2744 = vsel %vm1867, %v2742, %v2743
        %v2745 = vrot.slane %v2262, 4
        %v2746 = vsel %vm1867, %v2743, %v2745
        %v2747 = vrot.slane %v2247, 4
        %v2748 = vrot.slane %v2155, 4
        %v2749 = vsel %vm1867, %v2747, %v2748
        %v2750 = vrot.slane %v2263, 4
        %v2751 = vsel %vm1867, %v2748, %v2750
        %v2752 = vrot.slane %v2248, 4
        %v2753 = vrot.slane %v2158, 4
        %v2754 = vsel %vm1867, %v2752, %v2753
        %v2755 = vrot.slane %v2264, 4
        %v2756 = vsel %vm1867, %v2753, %v2755
        %v2757 = vrot.slane %v2249, 4
        %v2758 = vrot.slane %v2161, 4
        %v2759 = vsel %vm1867, %v2757, %v2758
        %v2760 = vrot.slane %v2265, 4
        %v2761 = vsel %vm1867, %v2758, %v2760
        %v2762 = vrot.slane %v2250, 4
        %v2763 = vrot.slane %v2164, 4
        %v2764 = vsel %vm1867, %v2762, %v2763
        %v2765 = vrot.slane %v2266, 4
        %v2766 = vsel %vm1867, %v2763, %v2765
        %v2767 = vrot.slane %v2251, 4
        %v2768 = vrot.slane %v2167, 4
        %v2769 = vsel %vm1867, %v2767, %v2768
        %v2770 = vrot.slane %v2267, 4
        %v2771 = vsel %vm1867, %v2768, %v2770
        %v2772 = vrot.slane %v2252, 4
        %v2773 = vrot.slane %v2170, 4
        %v2774 = vsel %vm1867, %v2772, %v2773
        %v2775 = vrot.slane %v2268, 4
        %v2776 = vsel %vm1867, %v2773, %v2775
        %v2777 = vrot.slane %v2253, 4
        %v2778 = vrot.slane %v2173, 4
        %v2779 = vsel %vm1867, %v2777, %v2778
        %v2780 = vrot.slane %v2269, 4
        %v2781 = vsel %vm1867, %v2778, %v2780
        %v2782 = vrot.slane %v2254, 4
        %v2783 = vrot.slane %v2176, 4
        %v2784 = vsel %vm1867, %v2782, %v2783
        %v2785 = vrot.slane %v2270, 4
        %v2786 = vsel %vm1867, %v2783, %v2785
        %v2787 = vrot.slane %v2255, 4
        %v2788 = vrot.slane %v2179, 4
        %v2789 = vsel %vm1867, %v2787, %v2788
        %v2790 = vrot.slane %v2271, 4
        %v2791 = vsel %vm1867, %v2788, %v2790
        %v2792 = vrot.slane %v2256, 4
        %v2793 = vrot.slane %v2182, 4
        %v2794 = vsel %vm1867, %v2792, %v2793
        %v2795 = vrot.slane %v2272, 4
        %v2796 = vsel %vm1867, %v2793, %v2795
        %v2797 = vrot.slane %v2257, 4
        %v2798 = vrot.slane %v2185, 4
        %v2799 = vsel %vm1867, %v2797, %v2798
        %v2800 = vrot.slane %v2273, 4
        %v2801 = vsel %vm1867, %v2798, %v2800
        %v2802 = vrot.slane %v2258, 4
        %v2803 = vrot.slane %v2188, 4
        %v2804 = vsel %vm1867, %v2802, %v2803
        %v2805 = vrot.slane %v2274, 4
        %v2806 = vsel %vm1867, %v2803, %v2805
        %v2807 = vrot.slane %v2259, 4
        %v2808 = vrot.slane %v2191, 4
        %v2809 = vsel %vm1867, %v2807, %v2808
        %v2810 = vrot.slane %v2275, 4
        %v2811 = vsel %vm1867, %v2808, %v2810
        %v2812 = vrot.slane %v2260, 4
        %v2813 = vrot.slane %v2194, 4
        %v2814 = vsel %vm1867, %v2812, %v2813
        %v2815 = vrot.slane %v2276, 4
        %v2816 = vsel %vm1867, %v2813, %v2815
        %v2817 = vrot.slane %v2261, 4
        %v2818 = vrot.slane %v2197, 4
        %v2819 = vsel %vm1867, %v2817, %v2818
        %v2820 = vrot.slane %v2277, 4
        %v2821 = vsel %vm1867, %v2818, %v2820
        %v2854 = vmax.f32 %v2710, %v2744
        %v2855 = vmax.f32 %v2711, %v2746
        %v2856 = vmax.f32 %v2712, %v2749
        %v2857 = vmax.f32 %v2713, %v2751
        %v2858 = vmax.f32 %v2714, %v2754
        %v2859 = vmax.f32 %v2715, %v2756
        %v2860 = vmax.f32 %v2716, %v2759
        %v2861 = vmax.f32 %v2717, %v2761
        %v2862 = vmax.f32 %v2718, %v2764
        %v2863 = vmax.f32 %v2719, %v2766
        %v2864 = vmax.f32 %v2720, %v2769
        %v2865 = vmax.f32 %v2721, %v2771
        %v2866 = vmax.f32 %v2722, %v2774
        %v2867 = vmax.f32 %v2723, %v2776
        %v2868 = vmax.f32 %v2724, %v2779
        %v2869 = vmax.f32 %v2725, %v2781
        %v2870 = vmax.f32 %v2726, %v2784
        %v2871 = vmax.f32 %v2727, %v2786
        %v2872 = vmax.f32 %v2728, %v2789
        %v2873 = vmax.f32 %v2729, %v2791
        %v2874 = vmax.f32 %v2730, %v2794
        %v2875 = vmax.f32 %v2731, %v2796
        %v2876 = vmax.f32 %v2732, %v2799
        %v2877 = vmax.f32 %v2733, %v2801
        %v2878 = vmax.f32 %v2734, %v2804
        %v2879 = vmax.f32 %v2735, %v2806
        %v2880 = vmax.f32 %v2736, %v2809
        %v2881 = vmax.f32 %v2737, %v2811
        %v2882 = vmax.f32 %v2738, %v2814
        %v2883 = vmax.f32 %v2739, %v2816
        %v2884 = vmax.f32 %v2740, %v2819
        %v2885 = vmax.f32 %v2741, %v2821
        %v2886 = vmax.f32 %v2854, %v2856
        %v2887 = vmax.f32 %v2855, %v2857
        %v2888 = vmax.f32 %v2856, %v2858
        %v2889 = vmax.f32 %v2857, %v2859
        %v2890 = vmax.f32 %v2858, %v2860
        %v2891 = vmax.f32 %v2859, %v2861
        %v2892 = vmax.f32 %v2860, %v2862
        %v2893 = vmax.f32 %v2861, %v2863
        %v2894 = vmax.f32 %v2862, %v2864
        %v2895 = vmax.f32 %v2863, %v2865
        %v2896 = vmax.f32 %v2864, %v2866
        %v2897 = vmax.f32 %v2865, %v2867
        %v2898 = vmax.f32 %v2866, %v2868
        %v2899 = vmax.f32 %v2867, %v2869
        %v2900 = vmax.f32 %v2868, %v2870
        %v2901 = vmax.f32 %v2869, %v2871
        %v2902 = vmax.f32 %v2870, %v2872
        %v2903 = vmax.f32 %v2871, %v2873
        %v2904 = vmax.f32 %v2872, %v2874
        %v2905 = vmax.f32 %v2873, %v2875
        %v2906 = vmax.f32 %v2874, %v2876
        %v2907 = vmax.f32 %v2875, %v2877
        %v2908 = vmax.f32 %v2876, %v2878
        %v2909 = vmax.f32 %v2877, %v2879
        %v2910 = vmax.f32 %v2878, %v2880
        %v2911 = vmax.f32 %v2879, %v2881
        %v2912 = vmax.f32 %v2880, %v2882
        %v2913 = vmax.f32 %v2881, %v2883
        %v2914 = vmax.f32 %v2886, %v2858
        %v2915 = vmax.f32 %v2887, %v2859
        %v2916 = vmax.f32 %v2888, %v2860
        %v2917 = vmax.f32 %v2889, %v2861
        %v2918 = vmax.f32 %v2890, %v2862
        %v2919 = vmax.f32 %v2891, %v2863
        %v2920 = vmax.f32 %v2892, %v2864
        %v2921 = vmax.f32 %v2893, %v2865
        %v2922 = vmax.f32 %v2894, %v2866
        %v2923 = vmax.f32 %v2895, %v2867
        %v2924 = vmax.f32 %v2896, %v2868
        %v2925 = vmax.f32 %v2897, %v2869
        %v2926 = vmax.f32 %v2898, %v2870
        %v2927 = vmax.f32 %v2899, %v2871
        %v2928 = vmax.f32 %v2900, %v2872
        %v2929 = vmax.f32 %v2901, %v2873
        %v2930 = vmax.f32 %v2902, %v2874
        %v2931 = vmax.f32 %v2903, %v2875
        %v2932 = vmax.f32 %v2904, %v2876
        %v2933 = vmax.f32 %v2905, %v2877
        %v2934 = vmax.f32 %v2906, %v2878
        %v2935 = vmax.f32 %v2907, %v2879
        %v2936 = vmax.f32 %v2908, %v2880
        %v2937 = vmax.f32 %v2909, %v2881
        %v2938 = vmax.f32 %v2910, %v2882
        %v2939 = vmax.f32 %v2911, %v2883
        %v2940 = vmax.f32 %v2912, %v2884
        %v2941 = vmax.f32 %v2913, %v2885
        %v2942 = vmax.f32 %v2914, %v2860
        %v2943 = vmax.f32 %v2915, %v2861
        %v2944 = vmax.f32 %v2916, %v2862
        %v2945 = vmax.f32 %v2917, %v2863
        %v2946 = vmax.f32 %v2918, %v2864
        %v2947 = vmax.f32 %v2919, %v2865
        %v2948 = vmax.f32 %v2920, %v2866
        %v2949 = vmax.f32 %v2921, %v2867
        %v2950 = vmax.f32 %v2922, %v2868
        %v2951 = vmax.f32 %v2923, %v2869
        %v2952 = vmax.f32 %v2924, %v2870
        %v2953 = vmax.f32 %v2925, %v2871
        %v2954 = vmax.f32 %v2926, %v2872
        %v2955 = vmax.f32 %v2927, %v2873
        %v2956 = vmax.f32 %v2928, %v2874
        %v2957 = vmax.f32 %v2929, %v2875
        %v2958 = vmax.f32 %v2930, %v2876
        %v2959 = vmax.f32 %v2931, %v2877
        %v2960 = vmax.f32 %v2932, %v2878
        %v2961 = vmax.f32 %v2933, %v2879
        %v2962 = vmax.f32 %v2934, %v2880
        %v2963 = vmax.f32 %v2935, %v2881
        %v2964 = vmax.f32 %v2936, %v2882
        %v2965 = vmax.f32 %v2937, %v2883
        %v2966 = vmax.f32 %v2938, %v2884
        %v2967 = vmax.f32 %v2939, %v2885
        %v2968 = vmax.f32 %v2942, %v2862
        %v2969 = vmax.f32 %v2943, %v2863
        %v2970 = vmax.f32 %v2944, %v2864
        %v2971 = vmax.f32 %v2945, %v2865
        %v2972 = vmax.f32 %v2946, %v2866
        %v2973 = vmax.f32 %v2947, %v2867
        %v2974 = vmax.f32 %v2948, %v2868
        %v2975 = vmax.f32 %v2949, %v2869
        %v2976 = vmax.f32 %v2950, %v2870
        %v2977 = vmax.f32 %v2951, %v2871
        %v2978 = vmax.f32 %v2952, %v2872
        %v2979 = vmax.f32 %v2953, %v2873
        %v2980 = vmax.f32 %v2954, %v2874
        %v2981 = vmax.f32 %v2955, %v2875
        %v2982 = vmax.f32 %v2956, %v2876
        %v2983 = vmax.f32 %v2957, %v2877
        %v2984 = vmax.f32 %v2958, %v2878
        %v2985 = vmax.f32 %v2959, %v2879
        %v2986 = vmax.f32 %v2960, %v2880
        %v2987 = vmax.f32 %v2961, %v2881
        %v2988 = vmax.f32 %v2962, %v2882
        %v2989 = vmax.f32 %v2963, %v2883
        %v2990 = vmax.f32 %v2964, %v2884
        %v2991 = vmax.f32 %v2965, %v2885
        %v3024 = vrot.slane %v2914, 6
        %v3025 = vrot.slane %v2915, 6
        %v3026 = vsel %vm1271, %v3024, %v3025
        %v3027 = vrot.slane %v2942, 6
        %v3028 = vrot.slane %v2943, 6
        %v3029 = vsel %vm1271, %v3027, %v3028
        %v3030 = vrot.slane %v2968, 6
        %v3031 = vrot.slane %v2969, 6
        %v3032 = vsel %vm1271, %v3030, %v3031
        %v3033 = vrot.slane %v2970, 6
        %v3034 = vrot.slane %v2971, 6
        %v3035 = vsel %vm1271, %v3033, %v3034
        %v3036 = vrot.slane %v2972, 6
        %v3037 = vrot.slane %v2973, 6
        %v3038 = vsel %vm1271, %v3036, %v3037
        %v3039 = vrot.slane %v2974, 6
        %v3040 = vrot.slane %v2975, 6
        %v3041 = vsel %vm1271, %v3039, %v3040
        %v3042 = vrot.slane %v2976, 6
        %v3043 = vrot.slane %v2977, 6
        %v3044 = vsel %vm1271, %v3042, %v3043
        %v3045 = vrot.slane %v2978, 6
        %v3046 = vrot.slane %v2979, 6
        %v3047 = vsel %vm1271, %v3045, %v3046
        %v3048 = vrot.slane %v2980, 6
        %v3049 = vrot.slane %v2981, 6
        %v3050 = vsel %vm1271, %v3048, %v3049
        %v3051 = vrot.slane %v2982, 6
        %v3052 = vrot.slane %v2983, 6
        %v3053 = vsel %vm1271, %v3051, %v3052
        %v3054 = vrot.slane %v2984, 6
        %v3055 = vrot.slane %v2985, 6
        %v3056 = vsel %vm1271, %v3054, %v3055
        %v3057 = vrot.slane %v2986, 6
        %v3058 = vrot.slane %v2987, 6
        %v3059 = vsel %vm1271, %v3057, %v3058
        %v3060 = vrot.slane %v2988, 6
        %v3061 = vrot.slane %v2989, 6
        %v3062 = vsel %vm1271, %v3060, %v3061
        %v3063 = vrot.slane %v2990, 6
        %v3064 = vrot.slane %v2991, 6
        %v3065 = vsel %vm1271, %v3063, %v3064
        %v3066 = vrot.slane %v2966, 6
        %v3067 = vrot.slane %v2967, 6
        %v3068 = vsel %vm1271, %v3066, %v3067
        %v3069 = vrot.slane %v2940, 6
        %v3070 = vrot.slane %v2941, 6
        %v3071 = vsel %vm1271, %v3069, %v3070
        %v3120 = vsel %vm1271, -inf, %v3024
        %v3121 = vsel %vm1271, -inf, %v3027
        %v3122 = vsel %vm1271, -inf, %v3030
        %v3123 = vsel %vm1271, -inf, %v3033
        %v3124 = vsel %vm1271, -inf, %v3036
        %v3125 = vsel %vm1271, -inf, %v3039
        %v3126 = vsel %vm1271, -inf, %v3042
        %v3127 = vsel %vm1271, -inf, %v3045
        %v3128 = vsel %vm1271, -inf, %v3048
        %v3129 = vsel %vm1271, -inf, %v3051
        %v3130 = vsel %vm1271, -inf, %v3054
        %v3131 = vsel %vm1271, -inf, %v3057
        %v3132 = vsel %vm1271, -inf, %v3060
        %v3133 = vsel %vm1271, -inf, %v3063
        %v3134 = vsel %vm1271, -inf, %v3066
        %v3135 = vsel %vm1271, -inf, %v3069
        %v3136 = vsel %vm1271, %v3025, -inf
        %v3137 = vsel %vm1271, %v3028, -inf
        %v3138 = vsel %vm1271, %v3031, -inf
        %v3139 = vsel %vm1271, %v3034, -inf
        %v3140 = vsel %vm1271, %v3037, -inf
        %v3141 = vsel %vm1271, %v3040, -inf
        %v3142 = vsel %vm1271, %v3043, -inf
        %v3143 = vsel %vm1271, %v3046, -inf
        %v3144 = vsel %vm1271, %v3049, -inf
        %v3145 = vsel %vm1271, %v3052, -inf
        %v3146 = vsel %vm1271, %v3055, -inf
        %v3147 = vsel %vm1271, %v3058, -inf
        %v3148 = vsel %vm1271, %v3061, -inf
        %v3149 = vsel %vm1271, %v3064, -inf
        %v3150 = vsel %vm1271, %v3067, -inf
        %v3151 = vsel %vm1271, %v3070, -inf
        %v3184 = vrot.slane %v3120, 1
        %v3185 = vrot.slane %v3026, 1
        %v3186 = vsel %vm1432, %v3184, %v3185
        %v3187 = vrot.slane %v3136, 1
        %v3188 = vsel %vm1432, %v3185, %v3187
        %v3189 = vrot.slane %v3121, 1
        %v3190 = vrot.slane %v3029, 1
        %v3191 = vsel %vm1432, %v3189, %v3190
        %v3192 = vrot.slane %v3137, 1
        %v3193 = vsel %vm1432, %v3190, %v3192
        %v3194 = vrot.slane %v3122, 1
        %v3195 = vrot.slane %v3032, 1
        %v3196 = vsel %vm1432, %v3194, %v3195
        %v3197 = vrot.slane %v3138, 1
        %v3198 = vsel %vm1432, %v3195, %v3197
        %v3199 = vrot.slane %v3123, 1
        %v3200 = vrot.slane %v3035, 1
        %v3201 = vsel %vm1432, %v3199, %v3200
        %v3202 = vrot.slane %v3139, 1
        %v3203 = vsel %vm1432, %v3200, %v3202
        %v3204 = vrot.slane %v3124, 1
        %v3205 = vrot.slane %v3038, 1
        %v3206 = vsel %vm1432, %v3204, %v3205
        %v3207 = vrot.slane %v3140, 1
        %v3208 = vsel %vm1432, %v3205, %v3207
        %v3209 = vrot.slane %v3125, 1
        %v3210 = vrot.slane %v3041, 1
        %v3211 = vsel %vm1432, %v3209, %v3210
        %v3212 = vrot.slane %v3141, 1
        %v3213 = vsel %vm1432, %v3210, %v3212
        %v3214 = vrot.slane %v3126, 1
        %v3215 = vrot.slane %v3044, 1
        %v3216 = vsel %vm1432, %v3214, %v3215
        %v3217 = vrot.slane %v3142, 1
        %v3218 = vsel %vm1432, %v3215, %v3217
        %v3219 = vrot.slane %v3127, 1
        %v3220 = vrot.slane %v3047, 1
        %v3221 = vsel %vm1432, %v3219, %v3220
        %v3222 = vrot.slane %v3143, 1
        %v3223 = vsel %vm1432, %v3220, %v3222
        %v3224 = vrot.slane %v3128, 1
        %v3225 = vrot.slane %v3050, 1
        %v3226 = vsel %vm1432, %v3224, %v3225
        %v3227 = vrot.slane %v3144, 1
        %v3228 = vsel %vm1432, %v3225, %v3227
        %v3229 = vrot.slane %v3129, 1
        %v3230 = vrot.slane %v3053, 1
        %v3231 = vsel %vm1432, %v3229, %v3230
        %v3232 = vrot.slane %v3145, 1
        %v3233 = vsel %vm1432, %v3230, %v3232
        %v3234 = vrot.slane %v3130, 1
        %v3235 = vrot.slane %v3056, 1
        %v3236 = vsel %vm1432, %v3234, %v3235
        %v3237 = vrot.slane %v3146, 1
        %v3238 = vsel %vm1432, %v3235, %v3237
        %v3239 = vrot.slane %v3131, 1
        %v3240 = vrot.slane %v3059, 1
        %v3241 = vsel %vm1432, %v3239, %v3240
        %v3242 = vrot.slane %v3147, 1
        %v3243 = vsel %vm1432, %v3240, %v3242
        %v3244 = vrot.slane %v3132, 1
        %v3245 = vrot.slane %v3062, 1
        %v3246 = vsel %vm1432, %v3244, %v3245
        %v3247 = vrot.slane %v3148, 1
        %v3248 = vsel %vm1432, %v3245, %v3247
        %v3249 = vrot.slane %v3133, 1
        %v3250 = vrot.slane %v3065, 1
        %v3251 = vsel %vm1432, %v3249, %v3250
        %v3252 = vrot.slane %v3149, 1
        %v3253 = vsel %vm1432, %v3250, %v3252
        %v3254 = vrot.slane %v3134, 1
        %v3255 = vrot.slane %v3068, 1
        %v3256 = vsel %vm1432, %v3254, %v3255
        %v3257 = vrot.slane %v3150, 1
        %v3258 = vsel %vm1432, %v3255, %v3257
        %v3259 = vrot.slane %v3135, 1
        %v3260 = vrot.slane %v3071, 1
        %v3261 = vsel %vm1432, %v3259, %v3260
        %v3262 = vrot.slane %v3151, 1
        %v3263 = vsel %vm1432, %v3260, %v3262
        %v3296 = vmax.f32 %v3120, %v3186
        %v3297 = vmax.f32 %v3026, %v3188
        %v3298 = vmax.f32 %v3121, %v3191
        %v3299 = vmax.f32 %v3029, %v3193
        %v3300 = vmax.f32 %v3122, %v3196
        %v3301 = vmax.f32 %v3032, %v3198
        %v3302 = vmax.f32 %v3123, %v3201
        %v3303 = vmax.f32 %v3035, %v3203
        %v3304 = vmax.f32 %v3124, %v3206
        %v3305 = vmax.f32 %v3038, %v3208
        %v3306 = vmax.f32 %v3125, %v3211
        %v3307 = vmax.f32 %v3041, %v3213
        %v3308 = vmax.f32 %v3126, %v3216
        %v3309 = vmax.f32 %v3044, %v3218
        %v3310 = vmax.f32 %v3127, %v3221
        %v3311 = vmax.f32 %v3047, %v3223
        %v3312 = vmax.f32 %v3128, %v3226
        %v3313 = vmax.f32 %v3050, %v3228
        %v3314 = vmax.f32 %v3129, %v3231
        %v3315 = vmax.f32 %v3053, %v3233
        %v3316 = vmax.f32 %v3130, %v3236
        %v3317 = vmax.f32 %v3056, %v3238
        %v3318 = vmax.f32 %v3131, %v3241
        %v3319 = vmax.f32 %v3059, %v3243
        %v3320 = vmax.f32 %v3132, %v3246
        %v3321 = vmax.f32 %v3062, %v3248
        %v3322 = vmax.f32 %v3133, %v3251
        %v3323 = vmax.f32 %v3065, %v3253
        %v3324 = vmax.f32 %v3134, %v3256
        %v3325 = vmax.f32 %v3068, %v3258
        %v3326 = vmax.f32 %v3135, %v3261
        %v3327 = vmax.f32 %v3071, %v3263
        %v3328 = vrot.slane %v3120, 2
        %v3329 = vrot.slane %v3026, 2
        %v3330 = vsel %vm1577, %v3328, %v3329
        %v3331 = vrot.slane %v3136, 2
        %v3332 = vsel %vm1577, %v3329, %v3331
        %v3333 = vrot.slane %v3121, 2
        %v3334 = vrot.slane %v3029, 2
        %v3335 = vsel %vm1577, %v3333, %v3334
        %v3336 = vrot.slane %v3137, 2
        %v3337 = vsel %vm1577, %v3334, %v3336
        %v3338 = vrot.slane %v3122, 2
        %v3339 = vrot.slane %v3032, 2
        %v3340 = vsel %vm1577, %v3338, %v3339
        %v3341 = vrot.slane %v3138, 2
        %v3342 = vsel %vm1577, %v3339, %v3341
        %v3343 = vrot.slane %v3123, 2
        %v3344 = vrot.slane %v3035, 2
        %v3345 = vsel %vm1577, %v3343, %v3344
        %v3346 = vrot.slane %v3139, 2
        %v3347 = vsel %vm1577, %v3344, %v3346
        %v3348 = vrot.slane %v3124, 2
        %v3349 = vrot.slane %v3038, 2
        %v3350 = vsel %vm1577, %v3348, %v3349
        %v3351 = vrot.slane %v3140, 2
        %v3352 = vsel %vm1577, %v3349, %v3351
        %v3353 = vrot.slane %v3125, 2
        %v3354 = vrot.slane %v3041, 2
        %v3355 = vsel %vm1577, %v3353, %v3354
        %v3356 = vrot.slane %v3141, 2
        %v3357 = vsel %vm1577, %v3354, %v3356
        %v3358 = vrot.slane %v3126, 2
        %v3359 = vrot.slane %v3044, 2
        %v3360 = vsel %vm1577, %v3358, %v3359
        %v3361 = vrot.slane %v3142, 2
        %v3362 = vsel %vm1577, %v3359, %v3361
        %v3363 = vrot.slane %v3127, 2
        %v3364 = vrot.slane %v3047, 2
        %v3365 = vsel %vm1577, %v3363, %v3364
        %v3366 = vrot.slane %v3143, 2
        %v3367 = vsel %vm1577, %v3364, %v3366
        %v3368 = vrot.slane %v3128, 2
        %v3369 = vrot.slane %v3050, 2
        %v3370 = vsel %vm1577, %v3368, %v3369
        %v3371 = vrot.slane %v3144, 2
        %v3372 = vsel %vm1577, %v3369, %v3371
        %v3373 = vrot.slane %v3129, 2
        %v3374 = vrot.slane %v3053, 2
        %v3375 = vsel %vm1577, %v3373, %v3374
        %v3376 = vrot.slane %v3145, 2
        %v3377 = vsel %vm1577, %v3374, %v3376
        %v3378 = vrot.slane %v3130, 2
        %v3379 = vrot.slane %v3056, 2
        %v3380 = vsel %vm1577, %v3378, %v3379
        %v3381 = vrot.slane %v3146, 2
        %v3382 = vsel %vm1577, %v3379, %v3381
        %v3383 = vrot.slane %v3131, 2
        %v3384 = vrot.slane %v3059, 2
        %v3385 = vsel %vm1577, %v3383, %v3384
        %v3386 = vrot.slane %v3147, 2
        %v3387 = vsel %vm1577, %v3384, %v3386
        %v3388 = vrot.slane %v3132, 2
        %v3389 = vrot.slane %v3062, 2
        %v3390 = vsel %vm1577, %v3388, %v3389
        %v3391 = vrot.slane %v3148, 2
        %v3392 = vsel %vm1577, %v3389, %v3391
        %v3393 = vrot.slane %v3133, 2
        %v3394 = vrot.slane %v3065, 2
        %v3395 = vsel %vm1577, %v3393, %v3394
        %v3396 = vrot.slane %v3149, 2
        %v3397 = vsel %vm1577, %v3394, %v3396
        %v3398 = vrot.slane %v3134, 2
        %v3399 = vrot.slane %v3068, 2
        %v3400 = vsel %vm1577, %v3398, %v3399
        %v3401 = vrot.slane %v3150, 2
        %v3402 = vsel %vm1577, %v3399, %v3401
        %v3403 = vrot.slane %v3135, 2
        %v3404 = vrot.slane %v3071, 2
        %v3405 = vsel %vm1577, %v3403, %v3404
        %v3406 = vrot.slane %v3151, 2
        %v3407 = vsel %vm1577, %v3404, %v3406
        %v3440 = vmax.f32 %v3296, %v3330
        %v3441 = vmax.f32 %v3297, %v3332
        %v3442 = vmax.f32 %v3298, %v3335
        %v3443 = vmax.f32 %v3299, %v3337
        %v3444 = vmax.f32 %v3300, %v3340
        %v3445 = vmax.f32 %v3301, %v3342
        %v3446 = vmax.f32 %v3302, %v3345
        %v3447 = vmax.f32 %v3303, %v3347
        %v3448 = vmax.f32 %v3304, %v3350
        %v3449 = vmax.f32 %v3305, %v3352
        %v3450 = vmax.f32 %v3306, %v3355
        %v3451 = vmax.f32 %v3307, %v3357
        %v3452 = vmax.f32 %v3308, %v3360
        %v3453 = vmax.f32 %v3309, %v3362
        %v3454 = vmax.f32 %v3310, %v3365
        %v3455 = vmax.f32 %v3311, %v3367
        %v3456 = vmax.f32 %v3312, %v3370
        %v3457 = vmax.f32 %v3313, %v3372
        %v3458 = vmax.f32 %v3314, %v3375
        %v3459 = vmax.f32 %v3315, %v3377
        %v3460 = vmax.f32 %v3316, %v3380
        %v3461 = vmax.f32 %v3317, %v3382
        %v3462 = vmax.f32 %v3318, %v3385
        %v3463 = vmax.f32 %v3319, %v3387
        %v3464 = vmax.f32 %v3320, %v3390
        %v3465 = vmax.f32 %v3321, %v3392
        %v3466 = vmax.f32 %v3322, %v3395
        %v3467 = vmax.f32 %v3323, %v3397
        %v3468 = vmax.f32 %v3324, %v3400
        %v3469 = vmax.f32 %v3325, %v3402
        %v3470 = vmax.f32 %v3326, %v3405
        %v3471 = vmax.f32 %v3327, %v3407
        %v3472 = vrot.slane %v3120, 3
        %v3473 = vrot.slane %v3026, 3
        %v3474 = vsel %vm1722, %v3472, %v3473
        %v3475 = vrot.slane %v3136, 3
        %v3476 = vsel %vm1722, %v3473, %v3475
        %v3477 = vrot.slane %v3121, 3
        %v3478 = vrot.slane %v3029, 3
        %v3479 = vsel %vm1722, %v3477, %v3478
        %v3480 = vrot.slane %v3137, 3
        %v3481 = vsel %vm1722, %v3478, %v3480
        %v3482 = vrot.slane %v3122, 3
        %v3483 = vrot.slane %v3032, 3
        %v3484 = vsel %vm1722, %v3482, %v3483
        %v3485 = vrot.slane %v3138, 3
        %v3486 = vsel %vm1722, %v3483, %v3485
        %v3487 = vrot.slane %v3123, 3
        %v3488 = vrot.slane %v3035, 3
        %v3489 = vsel %vm1722, %v3487, %v3488
        %v3490 = vrot.slane %v3139, 3
        %v3491 = vsel %vm1722, %v3488, %v3490
        %v3492 = vrot.slane %v3124, 3
        %v3493 = vrot.slane %v3038, 3
        %v3494 = vsel %vm1722, %v3492, %v3493
        %v3495 = vrot.slane %v3140, 3
        %v3496 = vsel %vm1722, %v3493, %v3495
        %v3497 = vrot.slane %v3125, 3
        %v3498 = vrot.slane %v3041, 3
        %v3499 = vsel %vm1722, %v3497, %v3498
        %v3500 = vrot.slane %v3141, 3
        %v3501 = vsel %vm1722, %v3498, %v3500
        %v3502 = vrot.slane %v3126, 3
        %v3503 = vrot.slane %v3044, 3
        %v3504 = vsel %vm1722, %v3502, %v3503
        %v3505 = vrot.slane %v3142, 3
        %v3506 = vsel %vm1722, %v3503, %v3505
        %v3507 = vrot.slane %v3127, 3
        %v3508 = vrot.slane %v3047, 3
        %v3509 = vsel %vm1722, %v3507, %v3508
        %v3510 = vrot.slane %v3143, 3
        %v3511 = vsel %vm1722, %v3508, %v3510
        %v3512 = vrot.slane %v3128, 3
        %v3513 = vrot.slane %v3050, 3
        %v3514 = vsel %vm1722, %v3512, %v3513
        %v3515 = vrot.slane %v3144, 3
        %v3516 = vsel %vm1722, %v3513, %v3515
        %v3517 = vrot.slane %v3129, 3
        %v3518 = vrot.slane %v3053, 3
        %v3519 = vsel %vm1722, %v3517, %v3518
        %v3520 = vrot.slane %v3145, 3
        %v3521 = vsel %vm1722, %v3518, %v3520
        %v3522 = vrot.slane %v3130, 3
        %v3523 = vrot.slane %v3056, 3
        %v3524 = vsel %vm1722, %v3522, %v3523
        %v3525 = vrot.slane %v3146, 3
        %v3526 = vsel %vm1722, %v3523, %v3525
        %v3527 = vrot.slane %v3131, 3
        %v3528 = vrot.slane %v3059, 3
        %v3529 = vsel %vm1722, %v3527, %v3528
        %v3530 = vrot.slane %v3147, 3
        %v3531 = vsel %vm1722, %v3528, %v3530
        %v3532 = vrot.slane %v3132, 3
        %v3533 = vrot.slane %v3062, 3
        %v3534 = vsel %vm1722, %v3532, %v3533
        %v3535 = vrot.slane %v3148, 3
        %v3536 = vsel %vm1722, %v3533, %v3535
        %v3537 = vrot.slane %v3133, 3
        %v3538 = vrot.slane %v3065, 3
        %v3539 = vsel %vm1722, %v3537, %v3538
        %v3540 = vrot.slane %v3149, 3
        %v3541 = vsel %vm1722, %v3538, %v3540
        %v3542 = vrot.slane %v3134, 3
        %v3543 = vrot.slane %v3068, 3
        %v3544 = vsel %vm1722, %v3542, %v3543
        %v3545 = vrot.slane %v3150, 3
        %v3546 = vsel %vm1722, %v3543, %v3545
        %v3547 = vrot.slane %v3135, 3
        %v3548 = vrot.slane %v3071, 3
        %v3549 = vsel %vm1722, %v3547, %v3548
        %v3550 = vrot.slane %v3151, 3
        %v3551 = vsel %vm1722, %v3548, %v3550
        %v3584 = vmax.f32 %v3440, %v3474
        %v3585 = vmax.f32 %v3441, %v3476
        %v3586 = vmax.f32 %v3442, %v3479
        %v3587 = vmax.f32 %v3443, %v3481
        %v3588 = vmax.f32 %v3444, %v3484
        %v3589 = vmax.f32 %v3445, %v3486
        %v3590 = vmax.f32 %v3446, %v3489
        %v3591 = vmax.f32 %v3447, %v3491
        %v3592 = vmax.f32 %v3448, %v3494
        %v3593 = vmax.f32 %v3449, %v3496
        %v3594 = vmax.f32 %v3450, %v3499
        %v3595 = vmax.f32 %v3451, %v3501
        %v3596 = vmax.f32 %v3452, %v3504
        %v3597 = vmax.f32 %v3453, %v3506
        %v3598 = vmax.f32 %v3454, %v3509
        %v3599 = vmax.f32 %v3455, %v3511
        %v3600 = vmax.f32 %v3456, %v3514
        %v3601 = vmax.f32 %v3457, %v3516
        %v3602 = vmax.f32 %v3458, %v3519
        %v3603 = vmax.f32 %v3459, %v3521
        %v3604 = vmax.f32 %v3460, %v3524
        %v3605 = vmax.f32 %v3461, %v3526
        %v3606 = vmax.f32 %v3462, %v3529
        %v3607 = vmax.f32 %v3463, %v3531
        %v3608 = vmax.f32 %v3464, %v3534
        %v3609 = vmax.f32 %v3465, %v3536
        %v3610 = vmax.f32 %v3466, %v3539
        %v3611 = vmax.f32 %v3467, %v3541
        %v3612 = vmax.f32 %v3468, %v3544
        %v3613 = vmax.f32 %v3469, %v3546
        %v3614 = vmax.f32 %v3470, %v3549
        %v3615 = vmax.f32 %v3471, %v3551
        %v3616 = vrot.slane %v3120, 4
        %v3617 = vrot.slane %v3026, 4
        %v3618 = vsel %vm1867, %v3616, %v3617
        %v3619 = vrot.slane %v3136, 4
        %v3620 = vsel %vm1867, %v3617, %v3619
        %v3621 = vrot.slane %v3121, 4
        %v3622 = vrot.slane %v3029, 4
        %v3623 = vsel %vm1867, %v3621, %v3622
        %v3624 = vrot.slane %v3137, 4
        %v3625 = vsel %vm1867, %v3622, %v3624
        %v3626 = vrot.slane %v3122, 4
        %v3627 = vrot.slane %v3032, 4
        %v3628 = vsel %vm1867, %v3626, %v3627
        %v3629 = vrot.slane %v3138, 4
        %v3630 = vsel %vm1867, %v3627, %v3629
        %v3631 = vrot.slane %v3123, 4
        %v3632 = vrot.slane %v3035, 4
        %v3633 = vsel %vm1867, %v3631, %v3632
        %v3634 = vrot.slane %v3139, 4
        %v3635 = vsel %vm1867, %v3632, %v3634
        %v3636 = vrot.slane %v3124, 4
        %v3637 = vrot.slane %v3038, 4
        %v3638 = vsel %vm1867, %v3636, %v3637
        %v3639 = vrot.slane %v3140, 4
        %v3640 = vsel %vm1867, %v3637, %v3639
        %v3641 = vrot.slane %v3125, 4
        %v3642 = vrot.slane %v3041, 4
        %v3643 = vsel %vm1867, %v3641, %v3642
        %v3644 = vrot.slane %v3141, 4
        %v3645 = vsel %vm1867, %v3642, %v3644
        %v3646 = vrot.slane %v3126, 4
        %v3647 = vrot.slane %v3044, 4
        %v3648 = vsel %vm1867, %v3646, %v3647
        %v3649 = vrot.slane %v3142, 4
        %v3650 = vsel %vm1867, %v3647, %v3649
        %v3651 = vrot.slane %v3127, 4
        %v3652 = vrot.slane %v3047, 4
        %v3653 = vsel %vm1867, %v3651, %v3652
        %v3654 = vrot.slane %v3143, 4
        %v3655 = vsel %vm1867, %v3652, %v3654
        %v3656 = vrot.slane %v3128, 4
        %v3657 = vrot.slane %v3050, 4
        %v3658 = vsel %vm1867, %v3656, %v3657
        %v3659 = vrot.slane %v3144, 4
        %v3660 = vsel %vm1867, %v3657, %v3659
        %v3661 = vrot.slane %v3129, 4
        %v3662 = vrot.slane %v3053, 4
        %v3663 = vsel %vm1867, %v3661, %v3662
        %v3664 = vrot.slane %v3145, 4
        %v3665 = vsel %vm1867, %v3662, %v3664
        %v3666 = vrot.slane %v3130, 4
        %v3667 = vrot.slane %v3056, 4
        %v3668 = vsel %vm1867, %v3666, %v3667
        %v3669 = vrot.slane %v3146, 4
        %v3670 = vsel %vm1867, %v3667, %v3669
        %v3671 = vrot.slane %v3131, 4
        %v3672 = vrot.slane %v3059, 4
        %v3673 = vsel %vm1867, %v3671, %v3672
        %v3674 = vrot.slane %v3147, 4
        %v3675 = vsel %vm1867, %v3672, %v3674
        %v3676 = vrot.slane %v3132, 4
        %v3677 = vrot.slane %v3062, 4
        %v3678 = vsel %vm1867, %v3676, %v3677
        %v3679 = vrot.slane %v3148, 4
        %v3680 = vsel %vm1867, %v3677, %v3679
        %v3681 = vrot.slane %v3133, 4
        %v3682 = vrot.slane %v3065, 4
        %v3683 = vsel %vm1867, %v3681, %v3682
        %v3684 = vrot.slane %v3149, 4
        %v3685 = vsel %vm1867, %v3682, %v3684
        %v3686 = vrot.slane %v3134, 4
        %v3687 = vrot.slane %v3068, 4
        %v3688 = vsel %vm1867, %v3686, %v3687
        %v3689 = vrot.slane %v3150, 4
        %v3690 = vsel %vm1867, %v3687, %v3689
        %v3691 = vrot.slane %v3135, 4
        %v3692 = vrot.slane %v3071, 4
        %v3693 = vsel %vm1867, %v3691, %v3692
        %v3694 = vrot.slane %v3151, 4
        %v3695 = vsel %vm1867, %v3692, %v3694
        %v3728 = vmax.f32 %v3584, %v3618
        %v3729 = vmax.f32 %v3585, %v3620
        %v3730 = vmax.f32 %v3586, %v3623
        %v3731 = vmax.f32 %v3587, %v3625
        %v3732 = vmax.f32 %v3588, %v3628
        %v3733 = vmax.f32 %v3589, %v3630
        %v3734 = vmax.f32 %v3590, %v3633
        %v3735 = vmax.f32 %v3591, %v3635
        %v3736 = vmax.f32 %v3592, %v3638
        %v3737 = vmax.f32 %v3593, %v3640
        %v3738 = vmax.f32 %v3594, %v3643
        %v3739 = vmax.f32 %v3595, %v3645
        %v3740 = vmax.f32 %v3596, %v3648
        %v3741 = vmax.f32 %v3597, %v3650
        %v3742 = vmax.f32 %v3598, %v3653
        %v3743 = vmax.f32 %v3599, %v3655
        %v3744 = vmax.f32 %v3600, %v3658
        %v3745 = vmax.f32 %v3601, %v3660
        %v3746 = vmax.f32 %v3602, %v3663
        %v3747 = vmax.f32 %v3603, %v3665
        %v3748 = vmax.f32 %v3604, %v3668
        %v3749 = vmax.f32 %v3605, %v3670
        %v3750 = vmax.f32 %v3606, %v3673
        %v3751 = vmax.f32 %v3607, %v3675
        %v3752 = vmax.f32 %v3608, %v3678
        %v3753 = vmax.f32 %v3609, %v3680
        %v3754 = vmax.f32 %v3610, %v3683
        %v3755 = vmax.f32 %v3611, %v3685
        %v3756 = vmax.f32 %v3612, %v3688
        %v3757 = vmax.f32 %v3613, %v3690
        %v3758 = vmax.f32 %v3614, %v3693
        %v3759 = vmax.f32 %v3615, %v3695
        %v3760 = vld [vmem:[%s3] sm:$0xff]
        %v3761 = vld [vmem:[%s3 + $0x8] sm:$0xff]
        %v3762 = vld [vmem:[%s3 + $0x10] sm:$0xff]
        %v3763 = vld [vmem:[%s3 + $0x18] sm:$0xff]
        %vm3764 = vcmask 64512
        %v3766 = vsel %vm3764, %v1980, 0
        %v3769 = vsel %vm3764, %v1981, 0
        %v3772 = vsel %vm3764, %v1982, 0
        %v3775 = vsel %vm3764, %v1983, 0
        %v3778 = vsel %vm3764, %v1984, 0
        %v3781 = vsel %vm3764, %v1985, 0
        %v3784 = vsel %vm3764, %v1986, 0
        %v3787 = vsel %vm3764, %v1987, 0
        %v3790 = vsel %vm3764, %v1988, 0
        %v3793 = vsel %vm3764, %v1989, 0
        %v3796 = vsel %vm3764, %v1990, 0
        %v3799 = vsel %vm3764, %v1991, 0
        %v3802 = vsel %vm3764, %v1992, 0
        %v3805 = vsel %vm3764, %v1993, 0
        %v3808 = vsel %vm3764, %v1994, 0
        %v3811 = vsel %vm3764, %v1995, 0
        %v3814 = vsel %vm3764, %v1996, 0
        %v3817 = vsel %vm3764, %v1997, 0
        %v3820 = vsel %vm3764, %v1998, 0
        %v3823 = vsel %vm3764, %v1999, 0
        %v3826 = vsel %vm3764, %v2000, 0
        %v3829 = vsel %vm3764, %v2001, 0
        %v3832 = vsel %vm3764, %v2002, 0
        %v3835 = vsel %vm3764, %v2003, 0
        %v3838 = vsel %vm3764, %v2004, 0
        %v3841 = vsel %vm3764, %v2005, 0
        %v3844 = vsel %vm3764, %v2006, 0
        %v3847 = vsel %vm3764, %v2007, 0
        %v3850 = vsel %vm3764, %v2008, 0
        %v3853 = vsel %vm3764, %v2009, 0
        %v3856 = vsel %vm3764, %v2010, 0
        %v3859 = vsel %vm3764, %v2011, 0
        %3861 = vmatpush.msra.mxu0 0.0
        %3862 = vmatpush.msra.mxu0 0.0
        %3863 = vmatpush.msra.mxu0 0.0
        %3864 = vmatpush.msra.mxu0 0.0
        %3865 = vmatpush.msra.mxu0 0.0
        %3866 = vmatpush.msra.mxu0 0.0
        %3867 = vmatpush.msra.mxu0 0.0
        %3868 = vmatpush.msra.mxu0 0.0
        %3869 = vmatpush.msra.mxu0 0.0
        %3870 = vmatpush.msra.mxu0 0.0
        %3871 = vmatpush.msra.mxu0 0.0
        %3872 = vmatpush.msra.mxu0 0.0
        %3873 = vmatpush.msra.mxu0 0.0
        %3874 = vmatpush.msra.mxu0 0.0
        %3875 = vmatpush.msra.mxu0 0.0
        %3876 = vmatpush.msra.mxu0 %v3761
        %3877 = vmatmul.f32.gmra.mxu0 %v3766
        %v3878 = vpop.f32.mrf.mxu0
        %v3879 = vadd.f32 0.0, %v3878
        %3880 = vmatmul.f32.gmra.mxu0 %v3769
        %v3881 = vpop.f32.mrf.mxu0
        %v3882 = vadd.f32 0.0, %v3881
        %3883 = vmatmul.f32.gmra.mxu0 %v3772
        %v3884 = vpop.f32.mrf.mxu0
        %v3885 = vadd.f32 0.0, %v3884
        %3886 = vmatmul.f32.gmra.mxu0 %v3775
        %v3887 = vpop.f32.mrf.mxu0
        %v3888 = vadd.f32 0.0, %v3887
        %3889 = vmatmul.f32.gmra.mxu0 %v3778
        %v3890 = vpop.f32.mrf.mxu0
        %v3891 = vadd.f32 0.0, %v3890
        %3892 = vmatmul.f32.gmra.mxu0 %v3781
        %v3893 = vpop.f32.mrf.mxu0
        %v3894 = vadd.f32 0.0, %v3893
        %3895 = vmatmul.f32.gmra.mxu0 %v3784
        %v3896 = vpop.f32.mrf.mxu0
        %v3897 = vadd.f32 0.0, %v3896
        %3898 = vmatmul.f32.gmra.mxu0 %v3787
        %v3899 = vpop.f32.mrf.mxu0
        %v3900 = vadd.f32 0.0, %v3899
        %3901 = vmatmul.f32.gmra.mxu0 %v3790
        %v3902 = vpop.f32.mrf.mxu0
        %v3903 = vadd.f32 0.0, %v3902
        %3904 = vmatmul.f32.gmra.mxu0 %v3793
        %v3905 = vpop.f32.mrf.mxu0
        %v3906 = vadd.f32 0.0, %v3905
        %3907 = vmatmul.f32.gmra.mxu0 %v3796
        %v3908 = vpop.f32.mrf.mxu0
        %v3909 = vadd.f32 0.0, %v3908
        %3910 = vmatmul.f32.gmra.mxu0 %v3799
        %v3911 = vpop.f32.mrf.mxu0
        %v3912 = vadd.f32 0.0, %v3911
        %3913 = vmatmul.f32.gmra.mxu0 %v3802
        %v3914 = vpop.f32.mrf.mxu0
        %v3915 = vadd.f32 0.0, %v3914
        %3916 = vmatmul.f32.gmra.mxu0 %v3805
        %v3917 = vpop.f32.mrf.mxu0
        %v3918 = vadd.f32 0.0, %v3917
        %3919 = vmatmul.f32.gmra.mxu0 %v3808
        %v3920 = vpop.f32.mrf.mxu0
        %v3921 = vadd.f32 0.0, %v3920
        %3922 = vmatmul.f32.gmra.mxu0 %v3811
        %v3923 = vpop.f32.mrf.mxu0
        %v3924 = vadd.f32 0.0, %v3923
        %3925 = vmatmul.f32.gmra.mxu0 %v3814
        %v3926 = vpop.f32.mrf.mxu0
        %v3927 = vadd.f32 0.0, %v3926
        %3928 = vmatmul.f32.gmra.mxu0 %v3817
        %v3929 = vpop.f32.mrf.mxu0
        %v3930 = vadd.f32 0.0, %v3929
        %3931 = vmatmul.f32.gmra.mxu0 %v3820
        %v3932 = vpop.f32.mrf.mxu0
        %v3933 = vadd.f32 0.0, %v3932
        %3934 = vmatmul.f32.gmra.mxu0 %v3823
        %v3935 = vpop.f32.mrf.mxu0
        %v3936 = vadd.f32 0.0, %v3935
        %3937 = vmatmul.f32.gmra.mxu0 %v3826
        %v3938 = vpop.f32.mrf.mxu0
        %v3939 = vadd.f32 0.0, %v3938
        %3940 = vmatmul.f32.gmra.mxu0 %v3829
        %v3941 = vpop.f32.mrf.mxu0
        %v3942 = vadd.f32 0.0, %v3941
        %3943 = vmatmul.f32.gmra.mxu0 %v3832
        %v3944 = vpop.f32.mrf.mxu0
        %v3945 = vadd.f32 0.0, %v3944
        %3946 = vmatmul.f32.gmra.mxu0 %v3835
        %v3947 = vpop.f32.mrf.mxu0
        %v3948 = vadd.f32 0.0, %v3947
        %3949 = vmatmul.f32.gmra.mxu0 %v3838
        %v3950 = vpop.f32.mrf.mxu0
        %v3951 = vadd.f32 0.0, %v3950
        %3952 = vmatmul.f32.gmra.mxu0 %v3841
        %v3953 = vpop.f32.mrf.mxu0
        %v3954 = vadd.f32 0.0, %v3953
        %3955 = vmatmul.f32.gmra.mxu0 %v3844
        %v3956 = vpop.f32.mrf.mxu0
        %v3957 = vadd.f32 0.0, %v3956
        %3958 = vmatmul.f32.gmra.mxu0 %v3847
        %v3959 = vpop.f32.mrf.mxu0
        %v3960 = vadd.f32 0.0, %v3959
        %3961 = vmatmul.f32.gmra.mxu0 %v3850
        %v3962 = vpop.f32.mrf.mxu0
        %v3963 = vadd.f32 0.0, %v3962
        %3964 = vmatmul.f32.gmra.mxu0 %v3853
        %v3965 = vpop.f32.mrf.mxu0
        %v3966 = vadd.f32 0.0, %v3965
        %3967 = vmatmul.f32.gmra.mxu0 %v3856
        %v3968 = vpop.f32.mrf.mxu0
        %v3969 = vadd.f32 0.0, %v3968
        %3970 = vmatmul.f32.gmra.mxu0 %v3859
        %v3971 = vpop.f32.mrf.mxu0
        %v3972 = vadd.f32 0.0, %v3971
        %3973 = vdwg.mxu0
        %v3975 = vsel %vm3764, %v1101, 0
        %v3978 = vsel %vm3764, %v1102, 0
        %v3981 = vsel %vm3764, %v1103, 0
        %v3984 = vsel %vm3764, %v1104, 0
        %v3987 = vsel %vm3764, %v1105, 0
        %v3990 = vsel %vm3764, %v1106, 0
        %v3993 = vsel %vm3764, %v1107, 0
        %v3996 = vsel %vm3764, %v1108, 0
        %v3999 = vsel %vm3764, %v1109, 0
        %v4002 = vsel %vm3764, %v1110, 0
        %v4005 = vsel %vm3764, %v1111, 0
        %v4008 = vsel %vm3764, %v1112, 0
        %v4011 = vsel %vm3764, %v1113, 0
        %v4014 = vsel %vm3764, %v1114, 0
        %v4017 = vsel %vm3764, %v1115, 0
        %v4020 = vsel %vm3764, %v1116, 0
        %v4023 = vsel %vm3764, %v1117, 0
        %v4026 = vsel %vm3764, %v1118, 0
        %v4029 = vsel %vm3764, %v1119, 0
        %v4032 = vsel %vm3764, %v1120, 0
        %v4035 = vsel %vm3764, %v1121, 0
        %v4038 = vsel %vm3764, %v1122, 0
        %v4041 = vsel %vm3764, %v1123, 0
        %v4044 = vsel %vm3764, %v1124, 0
        %v4047 = vsel %vm3764, %v1125, 0
        %v4050 = vsel %vm3764, %v1126, 0
        %v4053 = vsel %vm3764, %v1127, 0
        %v4056 = vsel %vm3764, %v1128, 0
        %v4059 = vsel %vm3764, %v1129, 0
        %v4062 = vsel %vm3764, %v1130, 0
        %v4065 = vsel %vm3764, %v1131, 0
        %v4068 = vsel %vm3764, %v1132, 0
        %4070 = vmatpush.msra.mxu0 0.0
        %4071 = vmatpush.msra.mxu0 0.0
        %4072 = vmatpush.msra.mxu0 0.0
        %4073 = vmatpush.msra.mxu0 0.0
        %4074 = vmatpush.msra.mxu0 0.0
        %4075 = vmatpush.msra.mxu0 0.0
        %4076 = vmatpush.msra.mxu0 0.0
        %4077 = vmatpush.msra.mxu0 0.0
        %4078 = vmatpush.msra.mxu0 0.0
        %4079 = vmatpush.msra.mxu0 0.0
        %4080 = vmatpush.msra.mxu0 0.0
        %4081 = vmatpush.msra.mxu0 0.0
        %4082 = vmatpush.msra.mxu0 0.0
        %4083 = vmatpush.msra.mxu0 0.0
        %4084 = vmatpush.msra.mxu0 0.0
        %4085 = vmatpush.msra.mxu0 %v3760
        %4086 = vmatmul.f32.gmra.mxu0 %v3975
        %v4087 = vpop.f32.mrf.mxu0
        %v4088 = vadd.f32 %v3879, %v4087
        %4089 = vmatmul.f32.gmra.mxu0 %v3978
        %v4090 = vpop.f32.mrf.mxu0
        %v4091 = vadd.f32 %v3882, %v4090
        %4092 = vmatmul.f32.gmra.mxu0 %v3981
        %v4093 = vpop.f32.mrf.mxu0
        %v4094 = vadd.f32 %v3885, %v4093
        %4095 = vmatmul.f32.gmra.mxu0 %v3984
        %v4096 = vpop.f32.mrf.mxu0
        %v4097 = vadd.f32 %v3888, %v4096
        %4098 = vmatmul.f32.gmra.mxu0 %v3987
        %v4099 = vpop.f32.mrf.mxu0
        %v4100 = vadd.f32 %v3891, %v4099
        %4101 = vmatmul.f32.gmra.mxu0 %v3990
        %v4102 = vpop.f32.mrf.mxu0
        %v4103 = vadd.f32 %v3894, %v4102
        %4104 = vmatmul.f32.gmra.mxu0 %v3993
        %v4105 = vpop.f32.mrf.mxu0
        %v4106 = vadd.f32 %v3897, %v4105
        %4107 = vmatmul.f32.gmra.mxu0 %v3996
        %v4108 = vpop.f32.mrf.mxu0
        %v4109 = vadd.f32 %v3900, %v4108
        %4110 = vmatmul.f32.gmra.mxu0 %v3999
        %v4111 = vpop.f32.mrf.mxu0
        %v4112 = vadd.f32 %v3903, %v4111
        %4113 = vmatmul.f32.gmra.mxu0 %v4002
        %v4114 = vpop.f32.mrf.mxu0
        %v4115 = vadd.f32 %v3906, %v4114
        %4116 = vmatmul.f32.gmra.mxu0 %v4005
        %v4117 = vpop.f32.mrf.mxu0
        %v4118 = vadd.f32 %v3909, %v4117
        %4119 = vmatmul.f32.gmra.mxu0 %v4008
        %v4120 = vpop.f32.mrf.mxu0
        %v4121 = vadd.f32 %v3912, %v4120
        %4122 = vmatmul.f32.gmra.mxu0 %v4011
        %v4123 = vpop.f32.mrf.mxu0
        %v4124 = vadd.f32 %v3915, %v4123
        %4125 = vmatmul.f32.gmra.mxu0 %v4014
        %v4126 = vpop.f32.mrf.mxu0
        %v4127 = vadd.f32 %v3918, %v4126
        %4128 = vmatmul.f32.gmra.mxu0 %v4017
        %v4129 = vpop.f32.mrf.mxu0
        %v4130 = vadd.f32 %v3921, %v4129
        %4131 = vmatmul.f32.gmra.mxu0 %v4020
        %v4132 = vpop.f32.mrf.mxu0
        %v4133 = vadd.f32 %v3924, %v4132
        %4134 = vmatmul.f32.gmra.mxu0 %v4023
        %v4135 = vpop.f32.mrf.mxu0
        %v4136 = vadd.f32 %v3927, %v4135
        %4137 = vmatmul.f32.gmra.mxu0 %v4026
        %v4138 = vpop.f32.mrf.mxu0
        %v4139 = vadd.f32 %v3930, %v4138
        %4140 = vmatmul.f32.gmra.mxu0 %v4029
        %v4141 = vpop.f32.mrf.mxu0
        %v4142 = vadd.f32 %v3933, %v4141
        %4143 = vmatmul.f32.gmra.mxu0 %v4032
        %v4144 = vpop.f32.mrf.mxu0
        %v4145 = vadd.f32 %v3936, %v4144
        %4146 = vmatmul.f32.gmra.mxu0 %v4035
        %v4147 = vpop.f32.mrf.mxu0
        %v4148 = vadd.f32 %v3939, %v4147
        %4149 = vmatmul.f32.gmra.mxu0 %v4038
        %v4150 = vpop.f32.mrf.mxu0
        %v4151 = vadd.f32 %v3942, %v4150
        %4152 = vmatmul.f32.gmra.mxu0 %v4041
        %v4153 = vpop.f32.mrf.mxu0
        %v4154 = vadd.f32 %v3945, %v4153
        %4155 = vmatmul.f32.gmra.mxu0 %v4044
        %v4156 = vpop.f32.mrf.mxu0
        %v4157 = vadd.f32 %v3948, %v4156
        %4158 = vmatmul.f32.gmra.mxu0 %v4047
        %v4159 = vpop.f32.mrf.mxu0
        %v4160 = vadd.f32 %v3951, %v4159
        %4161 = vmatmul.f32.gmra.mxu0 %v4050
        %v4162 = vpop.f32.mrf.mxu0
        %v4163 = vadd.f32 %v3954, %v4162
        %4164 = vmatmul.f32.gmra.mxu0 %v4053
        %v4165 = vpop.f32.mrf.mxu0
        %v4166 = vadd.f32 %v3957, %v4165
        %4167 = vmatmul.f32.gmra.mxu0 %v4056
        %v4168 = vpop.f32.mrf.mxu0
        %v4169 = vadd.f32 %v3960, %v4168
        %4170 = vmatmul.f32.gmra.mxu0 %v4059
        %v4171 = vpop.f32.mrf.mxu0
        %v4172 = vadd.f32 %v3963, %v4171
        %4173 = vmatmul.f32.gmra.mxu0 %v4062
        %v4174 = vpop.f32.mrf.mxu0
        %v4175 = vadd.f32 %v3966, %v4174
        %4176 = vmatmul.f32.gmra.mxu0 %v4065
        %v4177 = vpop.f32.mrf.mxu0
        %v4178 = vadd.f32 %v3969, %v4177
        %4179 = vmatmul.f32.gmra.mxu0 %v4068
        %v4180 = vpop.f32.mrf.mxu0
        %v4181 = vadd.f32 %v3972, %v4180
        %4182 = vdwg.mxu0
        %v4184 = vsel %vm3764, %v2854, 0
        %v4187 = vsel %vm3764, %v2855, 0
        %v4190 = vsel %vm3764, %v2856, 0
        %v4193 = vsel %vm3764, %v2857, 0
        %v4196 = vsel %vm3764, %v2858, 0
        %v4199 = vsel %vm3764, %v2859, 0
        %v4202 = vsel %vm3764, %v2860, 0
        %v4205 = vsel %vm3764, %v2861, 0
        %v4208 = vsel %vm3764, %v2862, 0
        %v4211 = vsel %vm3764, %v2863, 0
        %v4214 = vsel %vm3764, %v2864, 0
        %v4217 = vsel %vm3764, %v2865, 0
        %v4220 = vsel %vm3764, %v2866, 0
        %v4223 = vsel %vm3764, %v2867, 0
        %v4226 = vsel %vm3764, %v2868, 0
        %v4229 = vsel %vm3764, %v2869, 0
        %v4232 = vsel %vm3764, %v2870, 0
        %v4235 = vsel %vm3764, %v2871, 0
        %v4238 = vsel %vm3764, %v2872, 0
        %v4241 = vsel %vm3764, %v2873, 0
        %v4244 = vsel %vm3764, %v2874, 0
        %v4247 = vsel %vm3764, %v2875, 0
        %v4250 = vsel %vm3764, %v2876, 0
        %v4253 = vsel %vm3764, %v2877, 0
        %v4256 = vsel %vm3764, %v2878, 0
        %v4259 = vsel %vm3764, %v2879, 0
        %v4262 = vsel %vm3764, %v2880, 0
        %v4265 = vsel %vm3764, %v2881, 0
        %v4268 = vsel %vm3764, %v2882, 0
        %v4271 = vsel %vm3764, %v2883, 0
        %v4274 = vsel %vm3764, %v2884, 0
        %v4277 = vsel %vm3764, %v2885, 0
        %4279 = vmatpush.msra.mxu0 0.0
        %4280 = vmatpush.msra.mxu0 0.0
        %4281 = vmatpush.msra.mxu0 0.0
        %4282 = vmatpush.msra.mxu0 0.0
        %4283 = vmatpush.msra.mxu0 0.0
        %4284 = vmatpush.msra.mxu0 0.0
        %4285 = vmatpush.msra.mxu0 0.0
        %4286 = vmatpush.msra.mxu0 0.0
        %4287 = vmatpush.msra.mxu0 0.0
        %4288 = vmatpush.msra.mxu0 0.0
        %4289 = vmatpush.msra.mxu0 0.0
        %4290 = vmatpush.msra.mxu0 0.0
        %4291 = vmatpush.msra.mxu0 0.0
        %4292 = vmatpush.msra.mxu0 0.0
        %4293 = vmatpush.msra.mxu0 0.0
        %4294 = vmatpush.msra.mxu0 %v3762
        %4295 = vmatmul.f32.gmra.mxu0 %v4184
        %v4296 = vpop.f32.mrf.mxu0
        %v4297 = vadd.f32 0.0, %v4296
        %4298 = vmatmul.f32.gmra.mxu0 %v4187
        %v4299 = vpop.f32.mrf.mxu0
        %v4300 = vadd.f32 0.0, %v4299
        %4301 = vmatmul.f32.gmra.mxu0 %v4190
        %v4302 = vpop.f32.mrf.mxu0
        %v4303 = vadd.f32 0.0, %v4302
        %4304 = vmatmul.f32.gmra.mxu0 %v4193
        %v4305 = vpop.f32.mrf.mxu0
        %v4306 = vadd.f32 0.0, %v4305
        %4307 = vmatmul.f32.gmra.mxu0 %v4196
        %v4308 = vpop.f32.mrf.mxu0
        %v4309 = vadd.f32 0.0, %v4308
        %4310 = vmatmul.f32.gmra.mxu0 %v4199
        %v4311 = vpop.f32.mrf.mxu0
        %v4312 = vadd.f32 0.0, %v4311
        %4313 = vmatmul.f32.gmra.mxu0 %v4202
        %v4314 = vpop.f32.mrf.mxu0
        %v4315 = vadd.f32 0.0, %v4314
        %4316 = vmatmul.f32.gmra.mxu0 %v4205
        %v4317 = vpop.f32.mrf.mxu0
        %v4318 = vadd.f32 0.0, %v4317
        %4319 = vmatmul.f32.gmra.mxu0 %v4208
        %v4320 = vpop.f32.mrf.mxu0
        %v4321 = vadd.f32 0.0, %v4320
        %4322 = vmatmul.f32.gmra.mxu0 %v4211
        %v4323 = vpop.f32.mrf.mxu0
        %v4324 = vadd.f32 0.0, %v4323
        %4325 = vmatmul.f32.gmra.mxu0 %v4214
        %v4326 = vpop.f32.mrf.mxu0
        %v4327 = vadd.f32 0.0, %v4326
        %4328 = vmatmul.f32.gmra.mxu0 %v4217
        %v4329 = vpop.f32.mrf.mxu0
        %v4330 = vadd.f32 0.0, %v4329
        %4331 = vmatmul.f32.gmra.mxu0 %v4220
        %v4332 = vpop.f32.mrf.mxu0
        %v4333 = vadd.f32 0.0, %v4332
        %4334 = vmatmul.f32.gmra.mxu0 %v4223
        %v4335 = vpop.f32.mrf.mxu0
        %v4336 = vadd.f32 0.0, %v4335
        %4337 = vmatmul.f32.gmra.mxu0 %v4226
        %v4338 = vpop.f32.mrf.mxu0
        %v4339 = vadd.f32 0.0, %v4338
        %4340 = vmatmul.f32.gmra.mxu0 %v4229
        %v4341 = vpop.f32.mrf.mxu0
        %v4342 = vadd.f32 0.0, %v4341
        %4343 = vmatmul.f32.gmra.mxu0 %v4232
        %v4344 = vpop.f32.mrf.mxu0
        %v4345 = vadd.f32 0.0, %v4344
        %4346 = vmatmul.f32.gmra.mxu0 %v4235
        %v4347 = vpop.f32.mrf.mxu0
        %v4348 = vadd.f32 0.0, %v4347
        %4349 = vmatmul.f32.gmra.mxu0 %v4238
        %v4350 = vpop.f32.mrf.mxu0
        %v4351 = vadd.f32 0.0, %v4350
        %4352 = vmatmul.f32.gmra.mxu0 %v4241
        %v4353 = vpop.f32.mrf.mxu0
        %v4354 = vadd.f32 0.0, %v4353
        %4355 = vmatmul.f32.gmra.mxu0 %v4244
        %v4356 = vpop.f32.mrf.mxu0
        %v4357 = vadd.f32 0.0, %v4356
        %4358 = vmatmul.f32.gmra.mxu0 %v4247
        %v4359 = vpop.f32.mrf.mxu0
        %v4360 = vadd.f32 0.0, %v4359
        %4361 = vmatmul.f32.gmra.mxu0 %v4250
        %v4362 = vpop.f32.mrf.mxu0
        %v4363 = vadd.f32 0.0, %v4362
        %4364 = vmatmul.f32.gmra.mxu0 %v4253
        %v4365 = vpop.f32.mrf.mxu0
        %v4366 = vadd.f32 0.0, %v4365
        %4367 = vmatmul.f32.gmra.mxu0 %v4256
        %v4368 = vpop.f32.mrf.mxu0
        %v4369 = vadd.f32 0.0, %v4368
        %4370 = vmatmul.f32.gmra.mxu0 %v4259
        %v4371 = vpop.f32.mrf.mxu0
        %v4372 = vadd.f32 0.0, %v4371
        %4373 = vmatmul.f32.gmra.mxu0 %v4262
        %v4374 = vpop.f32.mrf.mxu0
        %v4375 = vadd.f32 0.0, %v4374
        %4376 = vmatmul.f32.gmra.mxu0 %v4265
        %v4377 = vpop.f32.mrf.mxu0
        %v4378 = vadd.f32 0.0, %v4377
        %4379 = vmatmul.f32.gmra.mxu0 %v4268
        %v4380 = vpop.f32.mrf.mxu0
        %v4381 = vadd.f32 0.0, %v4380
        %4382 = vmatmul.f32.gmra.mxu0 %v4271
        %v4383 = vpop.f32.mrf.mxu0
        %v4384 = vadd.f32 0.0, %v4383
        %4385 = vmatmul.f32.gmra.mxu0 %v4274
        %v4386 = vpop.f32.mrf.mxu0
        %v4387 = vadd.f32 0.0, %v4386
        %4388 = vmatmul.f32.gmra.mxu0 %v4277
        %v4389 = vpop.f32.mrf.mxu0
        %v4390 = vadd.f32 0.0, %v4389
        %4391 = vdwg.mxu0
        %v4392 = vadd.f32 %v4088, %v4297
        %v4393 = vadd.f32 %v4091, %v4300
        %v4394 = vadd.f32 %v4094, %v4303
        %v4395 = vadd.f32 %v4097, %v4306
        %v4396 = vadd.f32 %v4100, %v4309
        %v4397 = vadd.f32 %v4103, %v4312
        %v4398 = vadd.f32 %v4106, %v4315
        %v4399 = vadd.f32 %v4109, %v4318
        %v4400 = vadd.f32 %v4112, %v4321
        %v4401 = vadd.f32 %v4115, %v4324
        %v4402 = vadd.f32 %v4118, %v4327
        %v4403 = vadd.f32 %v4121, %v4330
        %v4404 = vadd.f32 %v4124, %v4333
        %v4405 = vadd.f32 %v4127, %v4336
        %v4406 = vadd.f32 %v4130, %v4339
        %v4407 = vadd.f32 %v4133, %v4342
        %v4408 = vadd.f32 %v4136, %v4345
        %v4409 = vadd.f32 %v4139, %v4348
        %v4410 = vadd.f32 %v4142, %v4351
        %v4411 = vadd.f32 %v4145, %v4354
        %v4412 = vadd.f32 %v4148, %v4357
        %v4413 = vadd.f32 %v4151, %v4360
        %v4414 = vadd.f32 %v4154, %v4363
        %v4415 = vadd.f32 %v4157, %v4366
        %v4416 = vadd.f32 %v4160, %v4369
        %v4417 = vadd.f32 %v4163, %v4372
        %v4418 = vadd.f32 %v4166, %v4375
        %v4419 = vadd.f32 %v4169, %v4378
        %v4420 = vadd.f32 %v4172, %v4381
        %v4421 = vadd.f32 %v4175, %v4384
        %v4422 = vadd.f32 %v4178, %v4387
        %v4423 = vadd.f32 %v4181, %v4390
        %v4425 = vsel %vm3764, %v3728, 0
        %v4428 = vsel %vm3764, %v3729, 0
        %v4431 = vsel %vm3764, %v3730, 0
        %v4434 = vsel %vm3764, %v3731, 0
        %v4437 = vsel %vm3764, %v3732, 0
        %v4440 = vsel %vm3764, %v3733, 0
        %v4443 = vsel %vm3764, %v3734, 0
        %v4446 = vsel %vm3764, %v3735, 0
        %v4449 = vsel %vm3764, %v3736, 0
        %v4452 = vsel %vm3764, %v3737, 0
        %v4455 = vsel %vm3764, %v3738, 0
        %v4458 = vsel %vm3764, %v3739, 0
        %v4461 = vsel %vm3764, %v3740, 0
        %v4464 = vsel %vm3764, %v3741, 0
        %v4467 = vsel %vm3764, %v3742, 0
        %v4470 = vsel %vm3764, %v3743, 0
        %v4473 = vsel %vm3764, %v3744, 0
        %v4476 = vsel %vm3764, %v3745, 0
        %v4479 = vsel %vm3764, %v3746, 0
        %v4482 = vsel %vm3764, %v3747, 0
        %v4485 = vsel %vm3764, %v3748, 0
        %v4488 = vsel %vm3764, %v3749, 0
        %v4491 = vsel %vm3764, %v3750, 0
        %v4494 = vsel %vm3764, %v3751, 0
        %v4497 = vsel %vm3764, %v3752, 0
        %v4500 = vsel %vm3764, %v3753, 0
        %v4503 = vsel %vm3764, %v3754, 0
        %v4506 = vsel %vm3764, %v3755, 0
        %v4509 = vsel %vm3764, %v3756, 0
        %v4512 = vsel %vm3764, %v3757, 0
        %v4515 = vsel %vm3764, %v3758, 0
        %v4518 = vsel %vm3764, %v3759, 0
        %4520 = vmatpush.msra.mxu0 0.0
        %4521 = vmatpush.msra.mxu0 0.0
        %4522 = vmatpush.msra.mxu0 0.0
        %4523 = vmatpush.msra.mxu0 0.0
        %4524 = vmatpush.msra.mxu0 0.0
        %4525 = vmatpush.msra.mxu0 0.0
        %4526 = vmatpush.msra.mxu0 0.0
        %4527 = vmatpush.msra.mxu0 0.0
        %4528 = vmatpush.msra.mxu0 0.0
        %4529 = vmatpush.msra.mxu0 0.0
        %4530 = vmatpush.msra.mxu0 0.0
        %4531 = vmatpush.msra.mxu0 0.0
        %4532 = vmatpush.msra.mxu0 0.0
        %4533 = vmatpush.msra.mxu0 0.0
        %4534 = vmatpush.msra.mxu0 0.0
        %4535 = vmatpush.msra.mxu0 %v3763
        %4536 = vmatmul.f32.gmra.mxu0 %v4425
        %v4537 = vpop.f32.mrf.mxu0
        %v4538 = vadd.f32 0.0, %v4537
        %4539 = vmatmul.f32.gmra.mxu0 %v4428
        %v4540 = vpop.f32.mrf.mxu0
        %v4541 = vadd.f32 0.0, %v4540
        %4542 = vmatmul.f32.gmra.mxu0 %v4431
        %v4543 = vpop.f32.mrf.mxu0
        %v4544 = vadd.f32 0.0, %v4543
        %4545 = vmatmul.f32.gmra.mxu0 %v4434
        %v4546 = vpop.f32.mrf.mxu0
        %v4547 = vadd.f32 0.0, %v4546
        %4548 = vmatmul.f32.gmra.mxu0 %v4437
        %v4549 = vpop.f32.mrf.mxu0
        %v4550 = vadd.f32 0.0, %v4549
        %4551 = vmatmul.f32.gmra.mxu0 %v4440
        %v4552 = vpop.f32.mrf.mxu0
        %v4553 = vadd.f32 0.0, %v4552
        %4554 = vmatmul.f32.gmra.mxu0 %v4443
        %v4555 = vpop.f32.mrf.mxu0
        %v4556 = vadd.f32 0.0, %v4555
        %4557 = vmatmul.f32.gmra.mxu0 %v4446
        %v4558 = vpop.f32.mrf.mxu0
        %v4559 = vadd.f32 0.0, %v4558
        %4560 = vmatmul.f32.gmra.mxu0 %v4449
        %v4561 = vpop.f32.mrf.mxu0
        %v4562 = vadd.f32 0.0, %v4561
        %4563 = vmatmul.f32.gmra.mxu0 %v4452
        %v4564 = vpop.f32.mrf.mxu0
        %v4565 = vadd.f32 0.0, %v4564
        %4566 = vmatmul.f32.gmra.mxu0 %v4455
        %v4567 = vpop.f32.mrf.mxu0
        %v4568 = vadd.f32 0.0, %v4567
        %4569 = vmatmul.f32.gmra.mxu0 %v4458
        %v4570 = vpop.f32.mrf.mxu0
        %v4571 = vadd.f32 0.0, %v4570
        %4572 = vmatmul.f32.gmra.mxu0 %v4461
        %v4573 = vpop.f32.mrf.mxu0
        %v4574 = vadd.f32 0.0, %v4573
        %4575 = vmatmul.f32.gmra.mxu0 %v4464
        %v4576 = vpop.f32.mrf.mxu0
        %v4577 = vadd.f32 0.0, %v4576
        %4578 = vmatmul.f32.gmra.mxu0 %v4467
        %v4579 = vpop.f32.mrf.mxu0
        %v4580 = vadd.f32 0.0, %v4579
        %4581 = vmatmul.f32.gmra.mxu0 %v4470
        %v4582 = vpop.f32.mrf.mxu0
        %v4583 = vadd.f32 0.0, %v4582
        %4584 = vmatmul.f32.gmra.mxu0 %v4473
        %v4585 = vpop.f32.mrf.mxu0
        %v4586 = vadd.f32 0.0, %v4585
        %4587 = vmatmul.f32.gmra.mxu0 %v4476
        %v4588 = vpop.f32.mrf.mxu0
        %v4589 = vadd.f32 0.0, %v4588
        %4590 = vmatmul.f32.gmra.mxu0 %v4479
        %v4591 = vpop.f32.mrf.mxu0
        %v4592 = vadd.f32 0.0, %v4591
        %4593 = vmatmul.f32.gmra.mxu0 %v4482
        %v4594 = vpop.f32.mrf.mxu0
        %v4595 = vadd.f32 0.0, %v4594
        %4596 = vmatmul.f32.gmra.mxu0 %v4485
        %v4597 = vpop.f32.mrf.mxu0
        %v4598 = vadd.f32 0.0, %v4597
        %4599 = vmatmul.f32.gmra.mxu0 %v4488
        %v4600 = vpop.f32.mrf.mxu0
        %v4601 = vadd.f32 0.0, %v4600
        %4602 = vmatmul.f32.gmra.mxu0 %v4491
        %v4603 = vpop.f32.mrf.mxu0
        %v4604 = vadd.f32 0.0, %v4603
        %4605 = vmatmul.f32.gmra.mxu0 %v4494
        %v4606 = vpop.f32.mrf.mxu0
        %v4607 = vadd.f32 0.0, %v4606
        %4608 = vmatmul.f32.gmra.mxu0 %v4497
        %v4609 = vpop.f32.mrf.mxu0
        %v4610 = vadd.f32 0.0, %v4609
        %4611 = vmatmul.f32.gmra.mxu0 %v4500
        %v4612 = vpop.f32.mrf.mxu0
        %v4613 = vadd.f32 0.0, %v4612
        %4614 = vmatmul.f32.gmra.mxu0 %v4503
        %v4615 = vpop.f32.mrf.mxu0
        %v4616 = vadd.f32 0.0, %v4615
        %4617 = vmatmul.f32.gmra.mxu0 %v4506
        %v4618 = vpop.f32.mrf.mxu0
        %v4619 = vadd.f32 0.0, %v4618
        %4620 = vmatmul.f32.gmra.mxu0 %v4509
        %v4621 = vpop.f32.mrf.mxu0
        %v4622 = vadd.f32 0.0, %v4621
        %4623 = vmatmul.f32.gmra.mxu0 %v4512
        %v4624 = vpop.f32.mrf.mxu0
        %v4625 = vadd.f32 0.0, %v4624
        %4626 = vmatmul.f32.gmra.mxu0 %v4515
        %v4627 = vpop.f32.mrf.mxu0
        %v4628 = vadd.f32 0.0, %v4627
        %4629 = vmatmul.f32.gmra.mxu0 %v4518
        %v4630 = vpop.f32.mrf.mxu0
        %v4631 = vadd.f32 0.0, %v4630
        %4632 = vdwg.mxu0
        %v4633 = vadd.f32 %v4392, %v4538
        %v4634 = vadd.f32 %v4393, %v4541
        %v4635 = vadd.f32 %v4394, %v4544
        %v4636 = vadd.f32 %v4395, %v4547
        %v4637 = vadd.f32 %v4396, %v4550
        %v4638 = vadd.f32 %v4397, %v4553
        %v4639 = vadd.f32 %v4398, %v4556
        %v4640 = vadd.f32 %v4399, %v4559
        %v4641 = vadd.f32 %v4400, %v4562
        %v4642 = vadd.f32 %v4401, %v4565
        %v4643 = vadd.f32 %v4402, %v4568
        %v4644 = vadd.f32 %v4403, %v4571
        %v4645 = vadd.f32 %v4404, %v4574
        %v4646 = vadd.f32 %v4405, %v4577
        %v4647 = vadd.f32 %v4406, %v4580
        %v4648 = vadd.f32 %v4407, %v4583
        %v4649 = vadd.f32 %v4408, %v4586
        %v4650 = vadd.f32 %v4409, %v4589
        %v4651 = vadd.f32 %v4410, %v4592
        %v4652 = vadd.f32 %v4411, %v4595
        %v4653 = vadd.f32 %v4412, %v4598
        %v4654 = vadd.f32 %v4413, %v4601
        %v4655 = vadd.f32 %v4414, %v4604
        %v4656 = vadd.f32 %v4415, %v4607
        %v4657 = vadd.f32 %v4416, %v4610
        %v4658 = vadd.f32 %v4417, %v4613
        %v4659 = vadd.f32 %v4418, %v4616
        %v4660 = vadd.f32 %v4419, %v4619
        %v4661 = vadd.f32 %v4420, %v4622
        %v4662 = vadd.f32 %v4421, %v4625
        %v4663 = vadd.f32 %v4422, %v4628
        %v4664 = vadd.f32 %v4423, %v4631
        %v4665 = vld [vmem:[%s4] sm:$0x1]
        %v4667 = vperm.slane %v4665, 0
        %v4669 = vadd.f32 %v4633, %v4667
        %v4670 = vadd.f32 %v4634, %v4667
        %v4671 = vadd.f32 %v4635, %v4667
        %v4672 = vadd.f32 %v4636, %v4667
        %v4673 = vadd.f32 %v4637, %v4667
        %v4674 = vadd.f32 %v4638, %v4667
        %v4675 = vadd.f32 %v4639, %v4667
        %v4676 = vadd.f32 %v4640, %v4667
        %v4677 = vadd.f32 %v4641, %v4667
        %v4678 = vadd.f32 %v4642, %v4667
        %v4679 = vadd.f32 %v4643, %v4667
        %v4680 = vadd.f32 %v4644, %v4667
        %v4681 = vadd.f32 %v4645, %v4667
        %v4682 = vadd.f32 %v4646, %v4667
        %v4683 = vadd.f32 %v4647, %v4667
        %v4684 = vadd.f32 %v4648, %v4667
        %v4685 = vadd.f32 %v4649, %v4667
        %v4686 = vadd.f32 %v4650, %v4667
        %v4687 = vadd.f32 %v4651, %v4667
        %v4688 = vadd.f32 %v4652, %v4667
        %v4689 = vadd.f32 %v4653, %v4667
        %v4690 = vadd.f32 %v4654, %v4667
        %v4691 = vadd.f32 %v4655, %v4667
        %v4692 = vadd.f32 %v4656, %v4667
        %v4693 = vadd.f32 %v4657, %v4667
        %v4694 = vadd.f32 %v4658, %v4667
        %v4695 = vadd.f32 %v4659, %v4667
        %v4696 = vadd.f32 %v4660, %v4667
        %v4697 = vadd.f32 %v4661, %v4667
        %v4698 = vadd.f32 %v4662, %v4667
        %v4699 = vadd.f32 %v4663, %v4667
        %v4700 = vadd.f32 %v4664, %v4667
        %v4701 = vsub.f32 0.0, %v4669
        %v4702 = vsub.f32 0.0, %v4670
        %v4703 = vsub.f32 0.0, %v4671
        %v4704 = vsub.f32 0.0, %v4672
        %v4705 = vsub.f32 0.0, %v4673
        %v4706 = vsub.f32 0.0, %v4674
        %v4707 = vsub.f32 0.0, %v4675
        %v4708 = vsub.f32 0.0, %v4676
        %v4709 = vsub.f32 0.0, %v4677
        %v4710 = vsub.f32 0.0, %v4678
        %v4711 = vsub.f32 0.0, %v4679
        %v4712 = vsub.f32 0.0, %v4680
        %v4713 = vsub.f32 0.0, %v4681
        %v4714 = vsub.f32 0.0, %v4682
        %v4715 = vsub.f32 0.0, %v4683
        %v4716 = vsub.f32 0.0, %v4684
        %v4717 = vsub.f32 0.0, %v4685
        %v4718 = vsub.f32 0.0, %v4686
        %v4719 = vsub.f32 0.0, %v4687
        %v4720 = vsub.f32 0.0, %v4688
        %v4721 = vsub.f32 0.0, %v4689
        %v4722 = vsub.f32 0.0, %v4690
        %v4723 = vsub.f32 0.0, %v4691
        %v4724 = vsub.f32 0.0, %v4692
        %v4725 = vsub.f32 0.0, %v4693
        %v4726 = vsub.f32 0.0, %v4694
        %v4727 = vsub.f32 0.0, %v4695
        %v4728 = vsub.f32 0.0, %v4696
        %v4729 = vsub.f32 0.0, %v4697
        %v4730 = vsub.f32 0.0, %v4698
        %v4731 = vsub.f32 0.0, %v4699
        %v4732 = vsub.f32 0.0, %v4700
        %v4733 = vmul.f32 %v4701, 1.442695
        %v4734 = vpow.pop %v4733
        %v4735 = vmul.f32 %v4702, 1.442695
        %v4736 = vpow.pop %v4735
        %v4737 = vmul.f32 %v4703, 1.442695
        %v4738 = vpow.pop %v4737
        %v4739 = vmul.f32 %v4704, 1.442695
        %v4740 = vpow.pop %v4739
        %v4741 = vmul.f32 %v4705, 1.442695
        %v4742 = vpow.pop %v4741
        %v4743 = vmul.f32 %v4706, 1.442695
        %v4744 = vpow.pop %v4743
        %v4745 = vmul.f32 %v4707, 1.442695
        %v4746 = vpow.pop %v4745
        %v4747 = vmul.f32 %v4708, 1.442695
        %v4748 = vpow.pop %v4747
        %v4749 = vmul.f32 %v4709, 1.442695
        %v4750 = vpow.pop %v4749
        %v4751 = vmul.f32 %v4710, 1.442695
        %v4752 = vpow.pop %v4751
        %v4753 = vmul.f32 %v4711, 1.442695
        %v4754 = vpow.pop %v4753
        %v4755 = vmul.f32 %v4712, 1.442695
        %v4756 = vpow.pop %v4755
        %v4757 = vmul.f32 %v4713, 1.442695
        %v4758 = vpow.pop %v4757
        %v4759 = vmul.f32 %v4714, 1.442695
        %v4760 = vpow.pop %v4759
        %v4761 = vmul.f32 %v4715, 1.442695
        %v4762 = vpow.pop %v4761
        %v4763 = vmul.f32 %v4716, 1.442695
        %v4764 = vpow.pop %v4763
        %v4765 = vmul.f32 %v4717, 1.442695
        %v4766 = vpow.pop %v4765
        %v4767 = vmul.f32 %v4718, 1.442695
        %v4768 = vpow.pop %v4767
        %v4769 = vmul.f32 %v4719, 1.442695
        %v4770 = vpow.pop %v4769
        %v4771 = vmul.f32 %v4720, 1.442695
        %v4772 = vpow.pop %v4771
        %v4773 = vmul.f32 %v4721, 1.442695
        %v4774 = vpow.pop %v4773
        %v4775 = vmul.f32 %v4722, 1.442695
        %v4776 = vpow.pop %v4775
        %v4777 = vmul.f32 %v4723, 1.442695
        %v4778 = vpow.pop %v4777
        %v4779 = vmul.f32 %v4724, 1.442695
        %v4780 = vpow.pop %v4779
        %v4781 = vmul.f32 %v4725, 1.442695
        %v4782 = vpow.pop %v4781
        %v4783 = vmul.f32 %v4726, 1.442695
        %v4784 = vpow.pop %v4783
        %v4785 = vmul.f32 %v4727, 1.442695
        %v4786 = vpow.pop %v4785
        %v4787 = vmul.f32 %v4728, 1.442695
        %v4788 = vpow.pop %v4787
        %v4789 = vmul.f32 %v4729, 1.442695
        %v4790 = vpow.pop %v4789
        %v4791 = vmul.f32 %v4730, 1.442695
        %v4792 = vpow.pop %v4791
        %v4793 = vmul.f32 %v4731, 1.442695
        %v4794 = vpow.pop %v4793
        %v4795 = vmul.f32 %v4732, 1.442695
        %v4796 = vpow.pop %v4795
        %v4797 = vadd.f32 %v4734, 1.0
        %v4798 = vadd.f32 %v4736, 1.0
        %v4799 = vadd.f32 %v4738, 1.0
        %v4800 = vadd.f32 %v4740, 1.0
        %v4801 = vadd.f32 %v4742, 1.0
        %v4802 = vadd.f32 %v4744, 1.0
        %v4803 = vadd.f32 %v4746, 1.0
        %v4804 = vadd.f32 %v4748, 1.0
        %v4805 = vadd.f32 %v4750, 1.0
        %v4806 = vadd.f32 %v4752, 1.0
        %v4807 = vadd.f32 %v4754, 1.0
        %v4808 = vadd.f32 %v4756, 1.0
        %v4809 = vadd.f32 %v4758, 1.0
        %v4810 = vadd.f32 %v4760, 1.0
        %v4811 = vadd.f32 %v4762, 1.0
        %v4812 = vadd.f32 %v4764, 1.0
        %v4813 = vadd.f32 %v4766, 1.0
        %v4814 = vadd.f32 %v4768, 1.0
        %v4815 = vadd.f32 %v4770, 1.0
        %v4816 = vadd.f32 %v4772, 1.0
        %v4817 = vadd.f32 %v4774, 1.0
        %v4818 = vadd.f32 %v4776, 1.0
        %v4819 = vadd.f32 %v4778, 1.0
        %v4820 = vadd.f32 %v4780, 1.0
        %v4821 = vadd.f32 %v4782, 1.0
        %v4822 = vadd.f32 %v4784, 1.0
        %v4823 = vadd.f32 %v4786, 1.0
        %v4824 = vadd.f32 %v4788, 1.0
        %v4825 = vadd.f32 %v4790, 1.0
        %v4826 = vadd.f32 %v4792, 1.0
        %v4827 = vadd.f32 %v4794, 1.0
        %v4828 = vadd.f32 %v4796, 1.0
        %v4829 = vrcp.pop %v4797
        %v4830 = vmul.f32 %v4797, %v4829
        %v4831 = vsub.f32 1.0, %v4830
        %v4832 = vmul.f32 %v4829, %v4831
        %v4833 = vadd.f32 %v4829, %v4832
        %vm4834 = vweird.f32 %v4797
        %vm4835 = vweird.f32 %v4829
        %vm4836 = vmor %vm4834, %vm4835
        %v4837 = vsel %vm4836, %v4829, %v4833
        %v4838 = vand.u32 2147483647, %v4797
        %vm4839 = vcmp.eq.f32.partialorder %v4838, 8.507059e+37
        %v4840 = vand.u32 %v4797, 2147483648
        %v4841 = vor.u32 1.1754944e-38, %v4840
        %v4842 = vsel %vm4839, %v4841, %v4837
        %v4843 = vmul.f32 1.0, %v4842
        %v4844 = vrcp.pop %v4798
        %v4845 = vmul.f32 %v4798, %v4844
        %v4846 = vsub.f32 1.0, %v4845
        %v4847 = vmul.f32 %v4844, %v4846
        %v4848 = vadd.f32 %v4844, %v4847
        %vm4849 = vweird.f32 %v4798
        %vm4850 = vweird.f32 %v4844
        %vm4851 = vmor %vm4849, %vm4850
        %v4852 = vsel %vm4851, %v4844, %v4848
        %v4853 = vand.u32 2147483647, %v4798
        %vm4854 = vcmp.eq.f32.partialorder %v4853, 8.507059e+37
        %v4855 = vand.u32 %v4798, 2147483648
        %v4856 = vor.u32 1.1754944e-38, %v4855
        %v4857 = vsel %vm4854, %v4856, %v4852
        %v4858 = vmul.f32 1.0, %v4857
        %v4859 = vrcp.pop %v4799
        %v4860 = vmul.f32 %v4799, %v4859
        %v4861 = vsub.f32 1.0, %v4860
        %v4862 = vmul.f32 %v4859, %v4861
        %v4863 = vadd.f32 %v4859, %v4862
        %vm4864 = vweird.f32 %v4799
        %vm4865 = vweird.f32 %v4859
        %vm4866 = vmor %vm4864, %vm4865
        %v4867 = vsel %vm4866, %v4859, %v4863
        %v4868 = vand.u32 2147483647, %v4799
        %vm4869 = vcmp.eq.f32.partialorder %v4868, 8.507059e+37
        %v4870 = vand.u32 %v4799, 2147483648
        %v4871 = vor.u32 1.1754944e-38, %v4870
        %v4872 = vsel %vm4869, %v4871, %v4867
        %v4873 = vmul.f32 1.0, %v4872
        %v4874 = vrcp.pop %v4800
        %v4875 = vmul.f32 %v4800, %v4874
        %v4876 = vsub.f32 1.0, %v4875
        %v4877 = vmul.f32 %v4874, %v4876
        %v4878 = vadd.f32 %v4874, %v4877
        %vm4879 = vweird.f32 %v4800
        %vm4880 = vweird.f32 %v4874
        %vm4881 = vmor %vm4879, %vm4880
        %v4882 = vsel %vm4881, %v4874, %v4878
        %v4883 = vand.u32 2147483647, %v4800
        %vm4884 = vcmp.eq.f32.partialorder %v4883, 8.507059e+37
        %v4885 = vand.u32 %v4800, 2147483648
        %v4886 = vor.u32 1.1754944e-38, %v4885
        %v4887 = vsel %vm4884, %v4886, %v4882
        %v4888 = vmul.f32 1.0, %v4887
        %v4889 = vrcp.pop %v4801
        %v4890 = vmul.f32 %v4801, %v4889
        %v4891 = vsub.f32 1.0, %v4890
        %v4892 = vmul.f32 %v4889, %v4891
        %v4893 = vadd.f32 %v4889, %v4892
        %vm4894 = vweird.f32 %v4801
        %vm4895 = vweird.f32 %v4889
        %vm4896 = vmor %vm4894, %vm4895
        %v4897 = vsel %vm4896, %v4889, %v4893
        %v4898 = vand.u32 2147483647, %v4801
        %vm4899 = vcmp.eq.f32.partialorder %v4898, 8.507059e+37
        %v4900 = vand.u32 %v4801, 2147483648
        %v4901 = vor.u32 1.1754944e-38, %v4900
        %v4902 = vsel %vm4899, %v4901, %v4897
        %v4903 = vmul.f32 1.0, %v4902
        %v4904 = vrcp.pop %v4802
        %v4905 = vmul.f32 %v4802, %v4904
        %v4906 = vsub.f32 1.0, %v4905
        %v4907 = vmul.f32 %v4904, %v4906
        %v4908 = vadd.f32 %v4904, %v4907
        %vm4909 = vweird.f32 %v4802
        %vm4910 = vweird.f32 %v4904
        %vm4911 = vmor %vm4909, %vm4910
        %v4912 = vsel %vm4911, %v4904, %v4908
        %v4913 = vand.u32 2147483647, %v4802
        %vm4914 = vcmp.eq.f32.partialorder %v4913, 8.507059e+37
        %v4915 = vand.u32 %v4802, 2147483648
        %v4916 = vor.u32 1.1754944e-38, %v4915
        %v4917 = vsel %vm4914, %v4916, %v4912
        %v4918 = vmul.f32 1.0, %v4917
        %v4919 = vrcp.pop %v4803
        %v4920 = vmul.f32 %v4803, %v4919
        %v4921 = vsub.f32 1.0, %v4920
        %v4922 = vmul.f32 %v4919, %v4921
        %v4923 = vadd.f32 %v4919, %v4922
        %vm4924 = vweird.f32 %v4803
        %vm4925 = vweird.f32 %v4919
        %vm4926 = vmor %vm4924, %vm4925
        %v4927 = vsel %vm4926, %v4919, %v4923
        %v4928 = vand.u32 2147483647, %v4803
        %vm4929 = vcmp.eq.f32.partialorder %v4928, 8.507059e+37
        %v4930 = vand.u32 %v4803, 2147483648
        %v4931 = vor.u32 1.1754944e-38, %v4930
        %v4932 = vsel %vm4929, %v4931, %v4927
        %v4933 = vmul.f32 1.0, %v4932
        %v4934 = vrcp.pop %v4804
        %v4935 = vmul.f32 %v4804, %v4934
        %v4936 = vsub.f32 1.0, %v4935
        %v4937 = vmul.f32 %v4934, %v4936
        %v4938 = vadd.f32 %v4934, %v4937
        %vm4939 = vweird.f32 %v4804
        %vm4940 = vweird.f32 %v4934
        %vm4941 = vmor %vm4939, %vm4940
        %v4942 = vsel %vm4941, %v4934, %v4938
        %v4943 = vand.u32 2147483647, %v4804
        %vm4944 = vcmp.eq.f32.partialorder %v4943, 8.507059e+37
        %v4945 = vand.u32 %v4804, 2147483648
        %v4946 = vor.u32 1.1754944e-38, %v4945
        %v4947 = vsel %vm4944, %v4946, %v4942
        %v4948 = vmul.f32 1.0, %v4947
        %v4949 = vrcp.pop %v4805
        %v4950 = vmul.f32 %v4805, %v4949
        %v4951 = vsub.f32 1.0, %v4950
        %v4952 = vmul.f32 %v4949, %v4951
        %v4953 = vadd.f32 %v4949, %v4952
        %vm4954 = vweird.f32 %v4805
        %vm4955 = vweird.f32 %v4949
        %vm4956 = vmor %vm4954, %vm4955
        %v4957 = vsel %vm4956, %v4949, %v4953
        %v4958 = vand.u32 2147483647, %v4805
        %vm4959 = vcmp.eq.f32.partialorder %v4958, 8.507059e+37
        %v4960 = vand.u32 %v4805, 2147483648
        %v4961 = vor.u32 1.1754944e-38, %v4960
        %v4962 = vsel %vm4959, %v4961, %v4957
        %v4963 = vmul.f32 1.0, %v4962
        %v4964 = vrcp.pop %v4806
        %v4965 = vmul.f32 %v4806, %v4964
        %v4966 = vsub.f32 1.0, %v4965
        %v4967 = vmul.f32 %v4964, %v4966
        %v4968 = vadd.f32 %v4964, %v4967
        %vm4969 = vweird.f32 %v4806
        %vm4970 = vweird.f32 %v4964
        %vm4971 = vmor %vm4969, %vm4970
        %v4972 = vsel %vm4971, %v4964, %v4968
        %v4973 = vand.u32 2147483647, %v4806
        %vm4974 = vcmp.eq.f32.partialorder %v4973, 8.507059e+37
        %v4975 = vand.u32 %v4806, 2147483648
        %v4976 = vor.u32 1.1754944e-38, %v4975
        %v4977 = vsel %vm4974, %v4976, %v4972
        %v4978 = vmul.f32 1.0, %v4977
        %v4979 = vrcp.pop %v4807
        %v4980 = vmul.f32 %v4807, %v4979
        %v4981 = vsub.f32 1.0, %v4980
        %v4982 = vmul.f32 %v4979, %v4981
        %v4983 = vadd.f32 %v4979, %v4982
        %vm4984 = vweird.f32 %v4807
        %vm4985 = vweird.f32 %v4979
        %vm4986 = vmor %vm4984, %vm4985
        %v4987 = vsel %vm4986, %v4979, %v4983
        %v4988 = vand.u32 2147483647, %v4807
        %vm4989 = vcmp.eq.f32.partialorder %v4988, 8.507059e+37
        %v4990 = vand.u32 %v4807, 2147483648
        %v4991 = vor.u32 1.1754944e-38, %v4990
        %v4992 = vsel %vm4989, %v4991, %v4987
        %v4993 = vmul.f32 1.0, %v4992
        %v4994 = vrcp.pop %v4808
        %v4995 = vmul.f32 %v4808, %v4994
        %v4996 = vsub.f32 1.0, %v4995
        %v4997 = vmul.f32 %v4994, %v4996
        %v4998 = vadd.f32 %v4994, %v4997
        %vm4999 = vweird.f32 %v4808
        %vm5000 = vweird.f32 %v4994
        %vm5001 = vmor %vm4999, %vm5000
        %v5002 = vsel %vm5001, %v4994, %v4998
        %v5003 = vand.u32 2147483647, %v4808
        %vm5004 = vcmp.eq.f32.partialorder %v5003, 8.507059e+37
        %v5005 = vand.u32 %v4808, 2147483648
        %v5006 = vor.u32 1.1754944e-38, %v5005
        %v5007 = vsel %vm5004, %v5006, %v5002
        %v5008 = vmul.f32 1.0, %v5007
        %v5009 = vrcp.pop %v4809
        %v5010 = vmul.f32 %v4809, %v5009
        %v5011 = vsub.f32 1.0, %v5010
        %v5012 = vmul.f32 %v5009, %v5011
        %v5013 = vadd.f32 %v5009, %v5012
        %vm5014 = vweird.f32 %v4809
        %vm5015 = vweird.f32 %v5009
        %vm5016 = vmor %vm5014, %vm5015
        %v5017 = vsel %vm5016, %v5009, %v5013
        %v5018 = vand.u32 2147483647, %v4809
        %vm5019 = vcmp.eq.f32.partialorder %v5018, 8.507059e+37
        %v5020 = vand.u32 %v4809, 2147483648
        %v5021 = vor.u32 1.1754944e-38, %v5020
        %v5022 = vsel %vm5019, %v5021, %v5017
        %v5023 = vmul.f32 1.0, %v5022
        %v5024 = vrcp.pop %v4810
        %v5025 = vmul.f32 %v4810, %v5024
        %v5026 = vsub.f32 1.0, %v5025
        %v5027 = vmul.f32 %v5024, %v5026
        %v5028 = vadd.f32 %v5024, %v5027
        %vm5029 = vweird.f32 %v4810
        %vm5030 = vweird.f32 %v5024
        %vm5031 = vmor %vm5029, %vm5030
        %v5032 = vsel %vm5031, %v5024, %v5028
        %v5033 = vand.u32 2147483647, %v4810
        %vm5034 = vcmp.eq.f32.partialorder %v5033, 8.507059e+37
        %v5035 = vand.u32 %v4810, 2147483648
        %v5036 = vor.u32 1.1754944e-38, %v5035
        %v5037 = vsel %vm5034, %v5036, %v5032
        %v5038 = vmul.f32 1.0, %v5037
        %v5039 = vrcp.pop %v4811
        %v5040 = vmul.f32 %v4811, %v5039
        %v5041 = vsub.f32 1.0, %v5040
        %v5042 = vmul.f32 %v5039, %v5041
        %v5043 = vadd.f32 %v5039, %v5042
        %vm5044 = vweird.f32 %v4811
        %vm5045 = vweird.f32 %v5039
        %vm5046 = vmor %vm5044, %vm5045
        %v5047 = vsel %vm5046, %v5039, %v5043
        %v5048 = vand.u32 2147483647, %v4811
        %vm5049 = vcmp.eq.f32.partialorder %v5048, 8.507059e+37
        %v5050 = vand.u32 %v4811, 2147483648
        %v5051 = vor.u32 1.1754944e-38, %v5050
        %v5052 = vsel %vm5049, %v5051, %v5047
        %v5053 = vmul.f32 1.0, %v5052
        %v5054 = vrcp.pop %v4812
        %v5055 = vmul.f32 %v4812, %v5054
        %v5056 = vsub.f32 1.0, %v5055
        %v5057 = vmul.f32 %v5054, %v5056
        %v5058 = vadd.f32 %v5054, %v5057
        %vm5059 = vweird.f32 %v4812
        %vm5060 = vweird.f32 %v5054
        %vm5061 = vmor %vm5059, %vm5060
        %v5062 = vsel %vm5061, %v5054, %v5058
        %v5063 = vand.u32 2147483647, %v4812
        %vm5064 = vcmp.eq.f32.partialorder %v5063, 8.507059e+37
        %v5065 = vand.u32 %v4812, 2147483648
        %v5066 = vor.u32 1.1754944e-38, %v5065
        %v5067 = vsel %vm5064, %v5066, %v5062
        %v5068 = vmul.f32 1.0, %v5067
        %v5069 = vrcp.pop %v4813
        %v5070 = vmul.f32 %v4813, %v5069
        %v5071 = vsub.f32 1.0, %v5070
        %v5072 = vmul.f32 %v5069, %v5071
        %v5073 = vadd.f32 %v5069, %v5072
        %vm5074 = vweird.f32 %v4813
        %vm5075 = vweird.f32 %v5069
        %vm5076 = vmor %vm5074, %vm5075
        %v5077 = vsel %vm5076, %v5069, %v5073
        %v5078 = vand.u32 2147483647, %v4813
        %vm5079 = vcmp.eq.f32.partialorder %v5078, 8.507059e+37
        %v5080 = vand.u32 %v4813, 2147483648
        %v5081 = vor.u32 1.1754944e-38, %v5080
        %v5082 = vsel %vm5079, %v5081, %v5077
        %v5083 = vmul.f32 1.0, %v5082
        %v5084 = vrcp.pop %v4814
        %v5085 = vmul.f32 %v4814, %v5084
        %v5086 = vsub.f32 1.0, %v5085
        %v5087 = vmul.f32 %v5084, %v5086
        %v5088 = vadd.f32 %v5084, %v5087
        %vm5089 = vweird.f32 %v4814
        %vm5090 = vweird.f32 %v5084
        %vm5091 = vmor %vm5089, %vm5090
        %v5092 = vsel %vm5091, %v5084, %v5088
        %v5093 = vand.u32 2147483647, %v4814
        %vm5094 = vcmp.eq.f32.partialorder %v5093, 8.507059e+37
        %v5095 = vand.u32 %v4814, 2147483648
        %v5096 = vor.u32 1.1754944e-38, %v5095
        %v5097 = vsel %vm5094, %v5096, %v5092
        %v5098 = vmul.f32 1.0, %v5097
        %v5099 = vrcp.pop %v4815
        %v5100 = vmul.f32 %v4815, %v5099
        %v5101 = vsub.f32 1.0, %v5100
        %v5102 = vmul.f32 %v5099, %v5101
        %v5103 = vadd.f32 %v5099, %v5102
        %vm5104 = vweird.f32 %v4815
        %vm5105 = vweird.f32 %v5099
        %vm5106 = vmor %vm5104, %vm5105
        %v5107 = vsel %vm5106, %v5099, %v5103
        %v5108 = vand.u32 2147483647, %v4815
        %vm5109 = vcmp.eq.f32.partialorder %v5108, 8.507059e+37
        %v5110 = vand.u32 %v4815, 2147483648
        %v5111 = vor.u32 1.1754944e-38, %v5110
        %v5112 = vsel %vm5109, %v5111, %v5107
        %v5113 = vmul.f32 1.0, %v5112
        %v5114 = vrcp.pop %v4816
        %v5115 = vmul.f32 %v4816, %v5114
        %v5116 = vsub.f32 1.0, %v5115
        %v5117 = vmul.f32 %v5114, %v5116
        %v5118 = vadd.f32 %v5114, %v5117
        %vm5119 = vweird.f32 %v4816
        %vm5120 = vweird.f32 %v5114
        %vm5121 = vmor %vm5119, %vm5120
        %v5122 = vsel %vm5121, %v5114, %v5118
        %v5123 = vand.u32 2147483647, %v4816
        %vm5124 = vcmp.eq.f32.partialorder %v5123, 8.507059e+37
        %v5125 = vand.u32 %v4816, 2147483648
        %v5126 = vor.u32 1.1754944e-38, %v5125
        %v5127 = vsel %vm5124, %v5126, %v5122
        %v5128 = vmul.f32 1.0, %v5127
        %v5129 = vrcp.pop %v4817
        %v5130 = vmul.f32 %v4817, %v5129
        %v5131 = vsub.f32 1.0, %v5130
        %v5132 = vmul.f32 %v5129, %v5131
        %v5133 = vadd.f32 %v5129, %v5132
        %vm5134 = vweird.f32 %v4817
        %vm5135 = vweird.f32 %v5129
        %vm5136 = vmor %vm5134, %vm5135
        %v5137 = vsel %vm5136, %v5129, %v5133
        %v5138 = vand.u32 2147483647, %v4817
        %vm5139 = vcmp.eq.f32.partialorder %v5138, 8.507059e+37
        %v5140 = vand.u32 %v4817, 2147483648
        %v5141 = vor.u32 1.1754944e-38, %v5140
        %v5142 = vsel %vm5139, %v5141, %v5137
        %v5143 = vmul.f32 1.0, %v5142
        %v5144 = vrcp.pop %v4818
        %v5145 = vmul.f32 %v4818, %v5144
        %v5146 = vsub.f32 1.0, %v5145
        %v5147 = vmul.f32 %v5144, %v5146
        %v5148 = vadd.f32 %v5144, %v5147
        %vm5149 = vweird.f32 %v4818
        %vm5150 = vweird.f32 %v5144
        %vm5151 = vmor %vm5149, %vm5150
        %v5152 = vsel %vm5151, %v5144, %v5148
        %v5153 = vand.u32 2147483647, %v4818
        %vm5154 = vcmp.eq.f32.partialorder %v5153, 8.507059e+37
        %v5155 = vand.u32 %v4818, 2147483648
        %v5156 = vor.u32 1.1754944e-38, %v5155
        %v5157 = vsel %vm5154, %v5156, %v5152
        %v5158 = vmul.f32 1.0, %v5157
        %v5159 = vrcp.pop %v4819
        %v5160 = vmul.f32 %v4819, %v5159
        %v5161 = vsub.f32 1.0, %v5160
        %v5162 = vmul.f32 %v5159, %v5161
        %v5163 = vadd.f32 %v5159, %v5162
        %vm5164 = vweird.f32 %v4819
        %vm5165 = vweird.f32 %v5159
        %vm5166 = vmor %vm5164, %vm5165
        %v5167 = vsel %vm5166, %v5159, %v5163
        %v5168 = vand.u32 2147483647, %v4819
        %vm5169 = vcmp.eq.f32.partialorder %v5168, 8.507059e+37
        %v5170 = vand.u32 %v4819, 2147483648
        %v5171 = vor.u32 1.1754944e-38, %v5170
        %v5172 = vsel %vm5169, %v5171, %v5167
        %v5173 = vmul.f32 1.0, %v5172
        %v5174 = vrcp.pop %v4820
        %v5175 = vmul.f32 %v4820, %v5174
        %v5176 = vsub.f32 1.0, %v5175
        %v5177 = vmul.f32 %v5174, %v5176
        %v5178 = vadd.f32 %v5174, %v5177
        %vm5179 = vweird.f32 %v4820
        %vm5180 = vweird.f32 %v5174
        %vm5181 = vmor %vm5179, %vm5180
        %v5182 = vsel %vm5181, %v5174, %v5178
        %v5183 = vand.u32 2147483647, %v4820
        %vm5184 = vcmp.eq.f32.partialorder %v5183, 8.507059e+37
        %v5185 = vand.u32 %v4820, 2147483648
        %v5186 = vor.u32 1.1754944e-38, %v5185
        %v5187 = vsel %vm5184, %v5186, %v5182
        %v5188 = vmul.f32 1.0, %v5187
        %v5189 = vrcp.pop %v4821
        %v5190 = vmul.f32 %v4821, %v5189
        %v5191 = vsub.f32 1.0, %v5190
        %v5192 = vmul.f32 %v5189, %v5191
        %v5193 = vadd.f32 %v5189, %v5192
        %vm5194 = vweird.f32 %v4821
        %vm5195 = vweird.f32 %v5189
        %vm5196 = vmor %vm5194, %vm5195
        %v5197 = vsel %vm5196, %v5189, %v5193
        %v5198 = vand.u32 2147483647, %v4821
        %vm5199 = vcmp.eq.f32.partialorder %v5198, 8.507059e+37
        %v5200 = vand.u32 %v4821, 2147483648
        %v5201 = vor.u32 1.1754944e-38, %v5200
        %v5202 = vsel %vm5199, %v5201, %v5197
        %v5203 = vmul.f32 1.0, %v5202
        %v5204 = vrcp.pop %v4822
        %v5205 = vmul.f32 %v4822, %v5204
        %v5206 = vsub.f32 1.0, %v5205
        %v5207 = vmul.f32 %v5204, %v5206
        %v5208 = vadd.f32 %v5204, %v5207
        %vm5209 = vweird.f32 %v4822
        %vm5210 = vweird.f32 %v5204
        %vm5211 = vmor %vm5209, %vm5210
        %v5212 = vsel %vm5211, %v5204, %v5208
        %v5213 = vand.u32 2147483647, %v4822
        %vm5214 = vcmp.eq.f32.partialorder %v5213, 8.507059e+37
        %v5215 = vand.u32 %v4822, 2147483648
        %v5216 = vor.u32 1.1754944e-38, %v5215
        %v5217 = vsel %vm5214, %v5216, %v5212
        %v5218 = vmul.f32 1.0, %v5217
        %v5219 = vrcp.pop %v4823
        %v5220 = vmul.f32 %v4823, %v5219
        %v5221 = vsub.f32 1.0, %v5220
        %v5222 = vmul.f32 %v5219, %v5221
        %v5223 = vadd.f32 %v5219, %v5222
        %vm5224 = vweird.f32 %v4823
        %vm5225 = vweird.f32 %v5219
        %vm5226 = vmor %vm5224, %vm5225
        %v5227 = vsel %vm5226, %v5219, %v5223
        %v5228 = vand.u32 2147483647, %v4823
        %vm5229 = vcmp.eq.f32.partialorder %v5228, 8.507059e+37
        %v5230 = vand.u32 %v4823, 2147483648
        %v5231 = vor.u32 1.1754944e-38, %v5230
        %v5232 = vsel %vm5229, %v5231, %v5227
        %v5233 = vmul.f32 1.0, %v5232
        %v5234 = vrcp.pop %v4824
        %v5235 = vmul.f32 %v4824, %v5234
        %v5236 = vsub.f32 1.0, %v5235
        %v5237 = vmul.f32 %v5234, %v5236
        %v5238 = vadd.f32 %v5234, %v5237
        %vm5239 = vweird.f32 %v4824
        %vm5240 = vweird.f32 %v5234
        %vm5241 = vmor %vm5239, %vm5240
        %v5242 = vsel %vm5241, %v5234, %v5238
        %v5243 = vand.u32 2147483647, %v4824
        %vm5244 = vcmp.eq.f32.partialorder %v5243, 8.507059e+37
        %v5245 = vand.u32 %v4824, 2147483648
        %v5246 = vor.u32 1.1754944e-38, %v5245
        %v5247 = vsel %vm5244, %v5246, %v5242
        %v5248 = vmul.f32 1.0, %v5247
        %v5249 = vrcp.pop %v4825
        %v5250 = vmul.f32 %v4825, %v5249
        %v5251 = vsub.f32 1.0, %v5250
        %v5252 = vmul.f32 %v5249, %v5251
        %v5253 = vadd.f32 %v5249, %v5252
        %vm5254 = vweird.f32 %v4825
        %vm5255 = vweird.f32 %v5249
        %vm5256 = vmor %vm5254, %vm5255
        %v5257 = vsel %vm5256, %v5249, %v5253
        %v5258 = vand.u32 2147483647, %v4825
        %vm5259 = vcmp.eq.f32.partialorder %v5258, 8.507059e+37
        %v5260 = vand.u32 %v4825, 2147483648
        %v5261 = vor.u32 1.1754944e-38, %v5260
        %v5262 = vsel %vm5259, %v5261, %v5257
        %v5263 = vmul.f32 1.0, %v5262
        %v5264 = vrcp.pop %v4826
        %v5265 = vmul.f32 %v4826, %v5264
        %v5266 = vsub.f32 1.0, %v5265
        %v5267 = vmul.f32 %v5264, %v5266
        %v5268 = vadd.f32 %v5264, %v5267
        %vm5269 = vweird.f32 %v4826
        %vm5270 = vweird.f32 %v5264
        %vm5271 = vmor %vm5269, %vm5270
        %v5272 = vsel %vm5271, %v5264, %v5268
        %v5273 = vand.u32 2147483647, %v4826
        %vm5274 = vcmp.eq.f32.partialorder %v5273, 8.507059e+37
        %v5275 = vand.u32 %v4826, 2147483648
        %v5276 = vor.u32 1.1754944e-38, %v5275
        %v5277 = vsel %vm5274, %v5276, %v5272
        %v5278 = vmul.f32 1.0, %v5277
        %v5279 = vrcp.pop %v4827
        %v5280 = vmul.f32 %v4827, %v5279
        %v5281 = vsub.f32 1.0, %v5280
        %v5282 = vmul.f32 %v5279, %v5281
        %v5283 = vadd.f32 %v5279, %v5282
        %vm5284 = vweird.f32 %v4827
        %vm5285 = vweird.f32 %v5279
        %vm5286 = vmor %vm5284, %vm5285
        %v5287 = vsel %vm5286, %v5279, %v5283
        %v5288 = vand.u32 2147483647, %v4827
        %vm5289 = vcmp.eq.f32.partialorder %v5288, 8.507059e+37
        %v5290 = vand.u32 %v4827, 2147483648
        %v5291 = vor.u32 1.1754944e-38, %v5290
        %v5292 = vsel %vm5289, %v5291, %v5287
        %v5293 = vmul.f32 1.0, %v5292
        %v5294 = vrcp.pop %v4828
        %v5295 = vmul.f32 %v4828, %v5294
        %v5296 = vsub.f32 1.0, %v5295
        %v5297 = vmul.f32 %v5294, %v5296
        %v5298 = vadd.f32 %v5294, %v5297
        %vm5299 = vweird.f32 %v4828
        %vm5300 = vweird.f32 %v5294
        %vm5301 = vmor %vm5299, %vm5300
        %v5302 = vsel %vm5301, %v5294, %v5298
        %v5303 = vand.u32 2147483647, %v4828
        %vm5304 = vcmp.eq.f32.partialorder %v5303, 8.507059e+37
        %v5305 = vand.u32 %v4828, 2147483648
        %v5306 = vor.u32 1.1754944e-38, %v5305
        %v5307 = vsel %vm5304, %v5306, %v5302
        %v5308 = vmul.f32 1.0, %v5307
        %v5309 = vmul.f32 %v4669, %v4843
        %v5310 = vmul.f32 %v4670, %v4858
        %v5311 = vmul.f32 %v4671, %v4873
        %v5312 = vmul.f32 %v4672, %v4888
        %v5313 = vmul.f32 %v4673, %v4903
        %v5314 = vmul.f32 %v4674, %v4918
        %v5315 = vmul.f32 %v4675, %v4933
        %v5316 = vmul.f32 %v4676, %v4948
        %v5317 = vmul.f32 %v4677, %v4963
        %v5318 = vmul.f32 %v4678, %v4978
        %v5319 = vmul.f32 %v4679, %v4993
        %v5320 = vmul.f32 %v4680, %v5008
        %v5321 = vmul.f32 %v4681, %v5023
        %v5322 = vmul.f32 %v4682, %v5038
        %v5323 = vmul.f32 %v4683, %v5053
        %v5324 = vmul.f32 %v4684, %v5068
        %v5325 = vmul.f32 %v4685, %v5083
        %v5326 = vmul.f32 %v4686, %v5098
        %v5327 = vmul.f32 %v4687, %v5113
        %v5328 = vmul.f32 %v4688, %v5128
        %v5329 = vmul.f32 %v4689, %v5143
        %v5330 = vmul.f32 %v4690, %v5158
        %v5331 = vmul.f32 %v4691, %v5173
        %v5332 = vmul.f32 %v4692, %v5188
        %v5333 = vmul.f32 %v4693, %v5203
        %v5334 = vmul.f32 %v4694, %v5218
        %v5335 = vmul.f32 %v4695, %v5233
        %v5336 = vmul.f32 %v4696, %v5248
        %v5337 = vmul.f32 %v4697, %v5263
        %v5338 = vmul.f32 %v4698, %v5278
        %v5339 = vmul.f32 %v4699, %v5293
        %v5340 = vmul.f32 %v4700, %v5308
        %5341 = vst.msk [vmem:[%s244] sm:$0xff] %vm283, %v5309
        %5342 = vst.msk [vmem:[%s244 + $0x8] sm:$0xff] %vm283, %v5310
        %5343 = vst.msk [vmem:[%s244 + $0x10] sm:$0xff] %vm283, %v5311
        %5344 = vst.msk [vmem:[%s244 + $0x18] sm:$0xff] %vm283, %v5312
        %5345 = vst.msk [vmem:[%s244 + $0x20] sm:$0xff] %vm283, %v5313
        %5346 = vst.msk [vmem:[%s244 + $0x28] sm:$0xff] %vm283, %v5314
        %5347 = vst.msk [vmem:[%s244 + $0x30] sm:$0xff] %vm283, %v5315
        %5348 = vst.msk [vmem:[%s244 + $0x38] sm:$0xff] %vm283, %v5316
        %5349 = vst.msk [vmem:[%s244 + $0x40] sm:$0xff] %vm283, %v5317
        %5350 = vst.msk [vmem:[%s244 + $0x48] sm:$0xff] %vm283, %v5318
        %5351 = vst.msk [vmem:[%s244 + $0x50] sm:$0xff] %vm283, %v5319
        %5352 = vst.msk [vmem:[%s244 + $0x58] sm:$0xff] %vm283, %v5320
        %5353 = vst.msk [vmem:[%s244 + $0x60] sm:$0xff] %vm283, %v5321
        %5354 = vst.msk [vmem:[%s244 + $0x68] sm:$0xff] %vm283, %v5322
        %5355 = vst.msk [vmem:[%s244 + $0x70] sm:$0xff] %vm283, %v5323
        %5356 = vst.msk [vmem:[%s244 + $0x78] sm:$0xff] %vm283, %v5324
        %5357 = vst.msk [vmem:[%s244 + $0x80] sm:$0xff] %vm283, %v5325
        %5358 = vst.msk [vmem:[%s244 + $0x88] sm:$0xff] %vm283, %v5326
        %5359 = vst.msk [vmem:[%s244 + $0x90] sm:$0xff] %vm283, %v5327
        %5360 = vst.msk [vmem:[%s244 + $0x98] sm:$0xff] %vm283, %v5328
        %5361 = vst.msk [vmem:[%s244 + $0xa0] sm:$0xff] %vm283, %v5329
        %5362 = vst.msk [vmem:[%s244 + $0xa8] sm:$0xff] %vm283, %v5330
        %5363 = vst.msk [vmem:[%s244 + $0xb0] sm:$0xff] %vm283, %v5331
        %5364 = vst.msk [vmem:[%s244 + $0xb8] sm:$0xff] %vm283, %v5332
        %5365 = vst.msk [vmem:[%s244 + $0xc0] sm:$0xff] %vm283, %v5333
        %5366 = vst.msk [vmem:[%s244 + $0xc8] sm:$0xff] %vm283, %v5334
        %5367 = vst.msk [vmem:[%s244 + $0xd0] sm:$0xff] %vm283, %v5335
        %5368 = vst.msk [vmem:[%s244 + $0xd8] sm:$0xff] %vm283, %v5336
        %5369 = vst.msk [vmem:[%s244 + $0xe0] sm:$0xff] %vm283, %v5337
        %5370 = vst.msk [vmem:[%s244 + $0xe8] sm:$0xff] %vm283, %v5338
        %5371 = vst.msk [vmem:[%s244 + $0xf0] sm:$0xff] %vm283, %v5339
        %5372 = vst.msk [vmem:[%s244 + $0xf8] sm:$0xff] %vm283, %v5340
        %s5373 = sand.u32 %s140, 1
        %s5374 = scalar_lea.sflag [#allocation4], %s5373
        %s5375 = sand.u32 %s140, 1
        %s5376 = smul.addr %s5375, 256
        %s5377 = scalar_lea.vmem [#allocation5], %s5376
        // Predicated region
        $region45: #{tpu_custom_call.1} parent=39 // pred_check
          %p5378 = pneg %p150
        $region46: #{tpu_custom_call.1} parent=39 // pred_check_branch
          %5380 = sbr.rel (%p5378) target = $region48
        $region47: #{tpu_custom_call.1} parent=39 // pred_region
          %5382 = vsyncadd %s5374, 0
          %s5383 = smul.addr %s22, 32
          %s5384 = smul.addr %s5383, 8
          %s5385 = scalar_lea.hbm %s5, %s5384
          %s5386 = sshll.u32 %s5377, 4
          %s5387 = int_to_ptr.vmem [resolvable:$true] %s5386
          %s5388 = sshll.u32 %s5385, 4
          %s5389 = int_to_ptr.hbm [resolvable:$true] %s5388
          %5394 = dma.vmem_to_hbm [thread:$0]  %s5387, 4096, %s5389, %s5374, 128, 128, 8
        $region48: #{tpu_custom_call.1} parent=39 // pred_fallthru
          _
      $region40: #{tpu_custom_call.1} parent=5 // pred_fallthru
        _
      %p5395 = scmp.le.s32.totalorder 2, %s17
      // Predicated region
      $region49: #{tpu_custom_call.1} parent=5 // pred_check
        %p5396 = pneg %p5395
      $region50: #{tpu_custom_call.1} parent=5 // pred_check_branch
        %5398 = sbr.rel (%p5396) target = $region52
      $region51: #{tpu_custom_call.1} parent=5 // pred_region
        %s5399 = ssub.s32 %s17, 2
        // Predicated region
        $region53: #{tpu_custom_call.1} parent=51 // pred_check
          %p5400 = pneg %p156
        $region54: #{tpu_custom_call.1} parent=51 // pred_check_branch
          %5402 = sbr.rel (%p5400) target = $region56
        $region55: #{tpu_custom_call.1} parent=51 // pred_region
          %s5403 = sand.u32 %s141, 1
          %s5404 = scalar_lea.sflag [#allocation4], %s5403
          %s5405 = sand.u32 %s141, 1
          %s5406 = smul.addr %s5405, 256
          %s5407 = scalar_lea.vmem [#allocation5], %s5406
          %5409 = dma.done %s5404, 4096
        $region56: #{tpu_custom_call.1} parent=51 // pred_fallthru
          _
      $region52: #{tpu_custom_call.1} parent=5 // pred_fallthru
        _
    $region6: #{tpu_custom_call.1} parent=1 // loop_footer
      %s21 = sadd.s32 1, %s17
    $region7: #{tpu_custom_call.1} parent=1 // loop_footer_branch
      %16 = sbr.rel target = $region3
    $region8: #{tpu_custom_call.1} parent=1 // loop_exit
      _
    %5410 = vsyncpa [#allocation3], 1
    %s5411 = scalar_lea.sflag [#allocation3], 1
    %5412 = vsyncpa %s5411, 1
    %5413 = vsyncpa [#allocation4], 1
    %s5414 = scalar_lea.sflag [#allocation4], 1
    %5415 = vsyncpa %s5414, 1

</llo_original>
